<compile_context>
chip_gen: v7x
topology: tpu7x:2x2x1
jax: 0.10.0
libtpu: 0.0.40
codegen_flags: <defaults>
</compile_context>

<pallas_src>
import functools

import jax
import jax.numpy as jnp
from jax import lax
from jax.experimental import pallas as pl
from jax.experimental.pallas import tpu as pltpu

NEG_SLOPE = 0.01          # nn.LeakyReLU() default negative_slope
HP = 128                  # hidden width padded to one lane group (real H = 32)
DEP = 128                 # edge-feature width padded to 128 (real dE = 8)
E_TILE = 128              # edge-chunk tile (v6e: bump to 256 when E allows)
N_TILE = 8                # node tile: >=2 "parallel" steps (both v7x TCs) and
                          # bounds the min/max intermediate to (8, E_TILE, HP)
Q = HP // 4               # 32-lane band per aggregate in the packed slab
BIG = 1e30
VMEM_LIMIT = 32 * 1024 * 1024   # fits v7x (64 MiB phys) as well as v5e/v6e


def _round_up(x, m):
    return ((x + m - 1) // m) * m


def _pad2(w, rows, cols):
    """Zero-pad a 2-D fp32 array up to (rows, cols)."""
    w = jnp.asarray(w, jnp.float32)
    return jnp.zeros((rows, cols), jnp.float32).at[:w.shape[0], :w.shape[1]].set(w)


# --------------------------------------------------------------------------- #
# Kernel 1: fused compound / protein KGE projections -> entity (N, HP)
# --------------------------------------------------------------------------- #
def _entity_init_kernel(comp_ref, wc_ref, bc_ref, prot_ref, wp_ref, bp_ref,
                        o_ref, *, nc):
    o_ref[:nc, :] = (jnp.dot(comp_ref[...], wc_ref[...],
                             preferred_element_type=jnp.float32) + bc_ref[...])
    o_ref[nc:, :] = (jnp.dot(prot_ref[...], wp_ref[...],
                             preferred_element_type=jnp.float32) + bp_ref[...])


def entity_init(prep):
    nc = prep['comp_emb'].shape[0]
    n = nc + prep['prot_emb'].shape[0]
    # TODO(synk): fold this tiny launch into the first PNA layer (needs in-kernel
    # one-hot gathers); kept separate since it is one small launch.
    return pl.pallas_call(
        functools.partial(_entity_init_kernel, nc=nc),
        out_shape=jax.ShapeDtypeStruct((n, HP), jnp.float32),
        compiler_params=pltpu.CompilerParams(vmem_limit_bytes=VMEM_LIMIT),
    )(prep['comp_emb'], prep['wc'], prep['bc'],
      prep['prot_emb'], prep['wp'], prep['bp'])


# --------------------------------------------------------------------------- #
# Kernel 2: one fused PNA conv layer  (grid = (node_tiles, edge_tiles))
# --------------------------------------------------------------------------- #
def _pna_layer_kernel(x_ref, ef_ref, s_ref, ns_ref,
                      wmsg_ref, bmsg_ref, wfin_ref, bfin_ref,
                      o_ref, acc_ref):
    """Per edge chunk: one fused bf16 message matmul (f32 accumulate), exact f32
    incidence matmuls for sum / sum-of-squares, and running min / max through an
    additive +/-BIG penalty whose live 3-D intermediate is only
    (N_TILE, E_TILE, HP).  At the last edge chunk: degree statistics, packed
    [mean|min|max|std] slab and ONE fused finalize matmul over
    [x | agg | agg*amp | agg*att] with the folded post_nn @ lin weight."""
    ei = pl.program_id(1)
    nt = acc_ref.shape[0]

    @pl.when(ei == 0)
    def _init():
        acc_ref[:, 0 * HP:1 * HP] = jnp.zeros((nt, HP), jnp.float32)        # sum
        acc_ref[:, 1 * HP:2 * HP] = jnp.full((nt, HP), BIG, jnp.float32)    # min
        acc_ref[:, 2 * HP:3 * HP] = jnp.full((nt, HP), -BIG, jnp.float32)   # max
        acc_ref[:, 3 * HP:4 * HP] = jnp.zeros((nt, HP), jnp.float32)        # sumsq

    # fused pre_nn + edge encoder:  msg = [x_dst | x_src | edge_attr] @ Wmsg + b
    msg = (jnp.dot(ef_ref[...], wmsg_ref[...],
                   preferred_element_type=jnp.float32) + bmsg_ref[...])      # (E_TILE, HP)

    s = s_ref[...]                                        # (nt, E_TILE) exact {0,1} f32
    acc_ref[:, 0 * HP:1 * HP] = acc_ref[:, 0 * HP:1 * HP] + jnp.dot(
        s, msg, preferred_element_type=jnp.float32)
    acc_ref[:, 3 * HP:4 * HP] = acc_ref[:, 3 * HP:4 * HP] + jnp.dot(
        s, msg * msg, preferred_element_type=jnp.float32)

    # running masked min / max: +/-BIG additive penalty on edges not owned by the
    # row; node tiling bounds the 3-D intermediate to (N_TILE, E_TILE, HP).
    # TODO(synk): for large graphs sort edges by dst and use a contiguous-segment
    # reduction instead of this dense-mask form.
    pen = (1.0 - s)[:, :, None] * BIG                     # (nt, E_TILE, 1)
    m3 = msg[None, :, :]                                  # (1, E_TILE, HP)
    acc_ref[:, 1 * HP:2 * HP] = jnp.minimum(acc_ref[:, 1 * HP:2 * HP],
                                            jnp.min(m3 + pen, axis=1))
    acc_ref[:, 2 * HP:3 * HP] = jnp.maximum(acc_ref[:, 2 * HP:3 * HP],
                                            jnp.max(m3 - pen, axis=1))

    @pl.when(ei == pl.num_programs(1) - 1)
    def _finalize():
        ns = ns_ref[...]                     # [has_in, 1/clamp(deg,1), amp, att]
        has_in = ns[:, 0:1] > 0.5
        inv_deg = ns[:, 1:2]
        amp = ns[:, 2:3]
        att = ns[:, 3:4]

        mean = acc_ref[:, 0 * HP:1 * HP] * inv_deg
        var = jnp.maximum(acc_ref[:, 3 * HP:4 * HP] * inv_deg - mean * mean, 0.0)
        std = jnp.sqrt(var + 1e-5)
        minv = jnp.where(has_in, acc_ref[:, 1 * HP:2 * HP], 0.0)   # PyG: empty -> 0
        maxv = jnp.where(has_in, acc_ref[:, 2 * HP:3 * HP], 0.0)

        # pack the real lanes of the four aggregates into one 128-lane slab
        agg = jnp.concatenate([mean[:, :Q], minv[:, :Q], maxv[:, :Q], std[:, :Q]],
                              axis=1)                               # (nt, HP)
        lhs = jnp.concatenate([x_ref[...], agg, agg * amp, agg * att], axis=1)
        o_ref[...] = (jnp.dot(lhs, wfin_ref[...],
                              preferred_element_type=jnp.float32) + bfin_ref[...])


def fused_pna_layer(entity, edge_feat, incidence, node_scalars, lw):
    n = entity.shape[0]
    e_pad = edge_feat.shape[0]
    n_tile = N_TILE if (n % N_TILE == 0 and n >= N_TILE) else n
    grid = (n // n_tile, e_pad // E_TILE)

    return pl.pallas_call(
        _pna_layer_kernel,
        out_shape=jax.ShapeDtypeStruct((n, HP), jnp.float32),
        grid_spec=pltpu.PrefetchScalarGridSpec(
            num_scalar_prefetch=0,
            grid=grid,
            in_specs=[
                pl.BlockSpec((n_tile, HP), lambda ni, ei: (ni, 0)),        # x
                pl.BlockSpec((E_TILE, 3 * HP), lambda ni, ei: (ei, 0)),    # [xd|xs|ea]
                pl.BlockSpec((n_tile, E_TILE), lambda ni, ei: (ni, ei)),   # incidence
                pl.BlockSpec((n_tile, 4), lambda ni, ei: (ni, 0)),         # node scalars
                # grid-invariant folded weights
                # TODO(synk): single-buffer these (pl.Buffered(1)) once pipeline_mode
                # is universally available; waste here is only ~2x ~250 KiB.
                pl.BlockSpec((3 * HP, HP), lambda ni, ei: (0, 0)),         # W_msg
                pl.BlockSpec((1, HP), lambda ni, ei: (0, 0)),              # b_msg
                pl.BlockSpec((4 * HP, HP), lambda ni, ei: (0, 0)),         # W_fin
                pl.BlockSpec((1, HP), lambda ni, ei: (0, 0)),              # b_fin
            ],
            out_specs=pl.BlockSpec((n_tile, HP), lambda ni, ei: (ni, 0)),
            scratch_shapes=[pltpu.VMEM((n_tile, 4 * HP), jnp.float32)],
        ),
        compiler_params=pltpu.CompilerParams(
            dimension_semantics=("parallel", "arbitrary"),
            vmem_limit_bytes=VMEM_LIMIT),
    )(entity, edge_feat, incidence, node_scalars,
      lw['w_msg'], lw['b_msg'], lw['w_fin'], lw['b_fin'])


def fold_layer_weights(layer, h):
    """Fold edge_encoder + pre_nn into one stacked message weight, and
    post_nn + lin into one fused finalize weight over
    lhs = [x | agg | agg*amp | agg*att], where agg packs the real h lanes of
    [mean|min|max|std] into 32-lane bands.  pre_layers = post_layers = 1, so no
    activation sits inside either fold."""
    pre_w = jnp.asarray(layer['pre_w'], jnp.float32)           # (3h, h): [x_i|x_j|enc_e]
    w_xi, w_xj, w_e = pre_w[:h], pre_w[h:2 * h], pre_w[2 * h:]
    w_edge = jnp.asarray(layer['edge_w'], jnp.float32) @ w_e   # (dE, h)
    b_msg = (jnp.asarray(layer['pre_b'], jnp.float32)
             + jnp.asarray(layer['edge_b'], jnp.float32) @ w_e)

    w_msg = jnp.zeros((3 * HP, HP), jnp.float32)
    w_msg = w_msg.at[0:h, :h].set(w_xi)                                 # x_dst lanes
    w_msg = w_msg.at[HP:HP + h, :h].set(w_xj)                           # x_src lanes
    w_msg = w_msg.at[2 * HP:2 * HP + w_edge.shape[0], :h].set(w_edge)   # edge lanes

    w_pl = (jnp.asarray(layer['post_w'], jnp.float32)
            @ jnp.asarray(layer['lin_w'], jnp.float32))                 # (13h, h)
    b_pl = (jnp.asarray(layer['post_b'], jnp.float32)
            @ jnp.asarray(layer['lin_w'], jnp.float32)
            + jnp.asarray(layer['lin_b'], jnp.float32))
    w_self = w_pl[:h]
    w_agg = w_pl[h:].reshape(3, 4, h, h)      # [identity|amp|att][mean|min|max|std]

    w_fin = jnp.zeros((4 * HP, HP), jnp.float32)
    w_fin = w_fin.at[0:h, :h].set(w_self)
    for s_i in range(3):
        base = (s_i + 1) * HP
        for a_i in range(4):
            w_fin = w_fin.at[base + a_i * Q: base + a_i * Q + h, :h].set(w_agg[s_i, a_i])

    return {
        'w_msg': w_msg.astype(jnp.bfloat16),   # only E-scaling matmul runs bf16
        'b_msg': _pad2(b_msg.reshape(1, -1), 1, HP),
        'w_fin': w_fin,                        # f32: exactness of folded linear
        'b_fin': _pad2(b_pl.reshape(1, -1), 1, HP),
    }


# --------------------------------------------------------------------------- #
# Kernel 3: fused final projections + LeakyReLU + L2-norm + IMC + masked loss
# --------------------------------------------------------------------------- #
def _final_imc_kernel(c_ref, p_ref, wc_ref, bc_ref, wp_ref, bp_ref,
                      w0_ref, w1_ref, cpi_ref, mask_ref, loss_ref, r_ref):
    fc = (jnp.dot(c_ref[...], wc_ref[...], preferred_element_type=jnp.float32)
          + bc_ref[...])
    fc = jnp.where(fc > 0.0, fc, NEG_SLOPE * fc)
    fc = fc * lax.rsqrt(jnp.maximum(jnp.sum(fc * fc, axis=1, keepdims=True), 1e-24))

    fp = (jnp.dot(p_ref[...], wp_ref[...], preferred_element_type=jnp.float32)
          + bp_ref[...])
    fp = jnp.where(fp > 0.0, fp, NEG_SLOPE * fp)
    fp = fp * lax.rsqrt(jnp.maximum(jnp.sum(fp * fp, axis=1, keepdims=True), 1e-24))

    a = jnp.dot(fc, w0_ref[...], preferred_element_type=jnp.float32)
    b = jnp.dot(fp, w1_ref[...], preferred_element_type=jnp.float32)
    r = lax.dot_general(a, b, (((1,), (1,)), ((), ())),
                        preferred_element_type=jnp.float32)          # a @ b.T
    r_ref[...] = r
    tmp = mask_ref[...] * (r - cpi_ref[...])
    loss_ref[...] = jnp.sum(tmp * tmp, axis=(0, 1), keepdims=True)


def final_and_imc(entity, entity_res, prep, cpi, cpi_mask):
    nc = prep['comp_emb'].shape[0]
    npn = prep['prot_emb'].shape[0]
    c_in = jnp.concatenate([entity[:nc], entity_res[:nc]], axis=1)          # (nc, 2HP)
    p_in = jnp.concatenate([entity[nc:nc + npn], entity_res[nc:nc + npn]], axis=1)
    return pl.pallas_call(
        _final_imc_kernel,
        out_shape=(jax.ShapeDtypeStruct((1, 1), jnp.float32),
                   jax.ShapeDtypeStruct((nc, npn), jnp.float32)),
        compiler_params=pltpu.CompilerParams(vmem_limit_bytes=VMEM_LIMIT),
    )(c_in, p_in, prep['wc_fin'], prep['bc_fin'], prep['wp_fin'], prep['bp_fin'],
      prep['w0p'], prep['w1p'],
      cpi.astype(jnp.float32), cpi_mask.astype(jnp.float32))


# ------------------------- one-time (un-traced) prep ------------------------- #
def prepare(params, graph):
    """Weight folding / padding / graph constants, computed once outside the
    jitted forward (the previous version re-did all of this per forward)."""
    src = jnp.asarray(graph['src'], jnp.int32)
    dst = jnp.asarray(graph['dst'], jnp.int32)
    edge_type = jnp.asarray(graph['edge_type'], jnp.int32)
    edge_weight = jnp.asarray(graph['edge_weight'], jnp.float32)

    nc = params['compound_embedding'].shape[0]
    npn = params['protein_embedding'].shape[0]
    n = nc + npn
    h = params['fc_kge_compound_w'].shape[1]
    assert h <= Q, "packed-aggregate layout assumes dim_hidden <= 32"
    e = src.shape[0]
    e_pad = _round_up(e, E_TILE)

    # graph constants
    in_deg = jnp.zeros((n,), jnp.float32).at[dst].add(1.0)
    inc = (dst[None, :] == jnp.arange(n, dtype=jnp.int32)[:, None]).astype(jnp.float32)
    incidence = jnp.zeros((n, e_pad), jnp.float32).at[:, :e].set(inc)
    avg_log = jnp.maximum(jnp.mean(jnp.log(in_deg + 1.0)), 1e-6)
    deg_c = jnp.maximum(in_deg, 1.0)
    log_deg = jnp.log(deg_c + 1.0)
    node_scalars = jnp.stack(
        [(in_deg > 0.0).astype(jnp.float32),   # has incoming edges
         1.0 / deg_c,                          # exact 1 / clamp(deg, 1)
         log_deg / avg_log,                    # amplification scaler
         avg_log / log_deg],                   # attenuation scaler
        axis=1)                                # (n, 4)

    src_p = jnp.zeros((e_pad,), jnp.int32).at[:e].set(src)
    dst_p = jnp.zeros((e_pad,), jnp.int32).at[:e].set(dst)

    # edge_attr = edge_weight * edge_emb(edge_type) (hoisted; weights are static)
    edge_attr = edge_weight * jnp.asarray(params['edge_emb'], jnp.float32)[edge_type]
    edge_attr_p = _pad2(edge_attr, e_pad, DEP)

    kc = _round_up(params['compound_embedding'].shape[1], 128)
    kp = _round_up(params['protein_embedding'].shape[1], 128)

    dfc = params['fc_final_compound_w'].shape[1]
    dfp = params['fc_final_protein_w'].shape[1]
    dfc_p = _round_up(dfc, 128)
    dfp_p = _round_up(dfp, 128)
    wfc = jnp.asarray(params['fc_final_compound_w'], jnp.float32)
    wfp = jnp.asarray(params['fc_final_protein_w'], jnp.float32)
    wc_fin = (jnp.zeros((2 * HP, dfc_p), jnp.float32)
              .at[:h, :dfc].set(wfc[:h]).at[HP:HP + h, :dfc].set(wfc[h:]))
    wp_fin = (jnp.zeros((2 * HP, dfp_p), jnp.float32)
              .at[:h, :dfp].set(wfp[:h]).at[HP:HP + h, :dfp].set(wfp[h:]))

    return {
        'comp_emb': _pad2(params['compound_embedding'], nc, kc),
        'wc': _pad2(params['fc_kge_compound_w'], kc, HP),
        'bc': _pad2(params['fc_kge_compound_b'].reshape(1, -1), 1, HP),
        'prot_emb': _pad2(params['protein_embedding'], npn, kp),
        'wp': _pad2(params['fc_kge_protein_w'], kp, HP),
        'bp': _pad2(params['fc_kge_protein_b'].reshape(1, -1), 1, HP),
        'layers': [fold_layer_weights(L, h) for L in params['pna_layers']],
        'src': src_p, 'dst': dst_p,
        'edge_attr': edge_attr_p,
        'incidence': incidence,
        'node_scalars': node_scalars,
        'wc_fin': wc_fin,
        'bc_fin': _pad2(params['fc_final_compound_b'].reshape(1, -1), 1, dfc_p),
        'wp_fin': wp_fin,
        'bp_fin': _pad2(params['fc_final_protein_b'].reshape(1, -1), 1, dfp_p),
        'w0p': _pad2(params['imc_w0p'], dfc_p, 128),
        'w1p': _pad2(params['imc_w1p'], dfp_p, 128),
    }


# ------------------------------ model forward -------------------------------- #
def forward(prep, cpi, cpi_mask):
    # 1) fused KGE projections -> entity (padded lanes stay exactly zero)
    entity0 = entity_init(prep)
    entity = entity0                                          # torch .clone()

    # 2) PNA conv layers: one fused Pallas kernel per layer
    for lw in prep['layers']:
        # data-dependent gathers + lane concat remain thin XLA glue per layer
        # TODO(synk): move the gathers in-kernel (PrefetchScalarGridSpec +
        # pl.Element row blocks) once graphs get large.
        ef = jnp.concatenate([entity[prep['dst']], entity[prep['src']],
                              prep['edge_attr']], axis=1).astype(jnp.bfloat16)
        entity = fused_pna_layer(entity, ef, prep['incidence'],
                                 prep['node_scalars'], lw)

    # 3) fused final projections + IMC reconstruction + masked loss
    loss, cpi_reconstruct = final_and_imc(entity, entity0, prep, cpi, cpi_mask)
    return loss[0, 0], cpi_reconstruct


# --------------------------------- main --------------------------------------- #
if __name__ == "__main__":
    key = jax.random.PRNGKey(0)
    keys = jax.random.split(key, 4)

    # small config consistent with the module's __init__
    n_compound, n_protein = 8, 8
    dim_kge_compound, dim_kge_protein = 16, 12
    dim_hidden = 32
    dim_edge = 8
    pna_n_layer = 2
    imc_k = 8
    dim_compound_final = 16
    dim_protein_final = 16
    n_nodes = n_compound + n_protein

    # ---- deterministic synthetic graph (ring guarantees >=1 incoming edge) ---
    kg1, kg2, kg3, kg4, kg5 = jax.random.split(keys[0], 5)
    ring_src = jnp.arange(n_nodes, dtype=jnp.int32)
    ring_dst = (ring_src + 1) % n_nodes
    n_extra = 240                       # E = 256 -> 2 edge chunks per layer
    extra_src = jax.random.randint(kg1, (n_extra,), 0, n_nodes, dtype=jnp.int32)
    extra_dst = jax.random.randint(kg2, (n_extra,), 0, n_nodes, dtype=jnp.int32)
    src = jnp.concatenate([ring_src, extra_src])
    dst = jnp.concatenate([ring_dst, extra_dst])
    n_edges = int(src.shape[0])
    edge_type = jax.random.randint(kg3, (n_edges,), 0, 4, dtype=jnp.int32)
    edge_weight = jax.random.uniform(kg4, (n_edges, 1), jnp.float32, 0.5, 1.5)

    cpi = jax.random.bernoulli(kg5, 0.3, (n_compound, n_protein)).astype(jnp.float32)
    cpi_mask = jax.random.bernoulli(keys[1], 0.8,
                                    (n_compound, n_protein)).astype(jnp.float32)

    # ---- deterministic parameter init (xavier_uniform for 2-D params) --------
    key_iter = iter(jax.random.split(keys[2], 64))

    def nk():
        return next(key_iter)

    def xavier(k, shape):
        fan_in, fan_out = shape
        bound = (6.0 / (fan_in + fan_out)) ** 0.5
        return jax.random.uniform(k, shape, jnp.float32, -bound, bound)

    params = {
        'compound_embedding': xavier(nk(), (n_compound, dim_kge_compound)),
        'protein_embedding': xavier(nk(), (n_protein, dim_kge_protein)),
        'edge_emb': xavier(nk(), (4, dim_edge)),
        'fc_kge_compound_w': xavier(nk(), (dim_kge_compound, dim_hidden)),
        'fc_kge_compound_b': jnp.zeros((dim_hidden,), jnp.float32),
        'fc_kge_protein_w': xavier(nk(), (dim_kge_protein, dim_hidden)),
        'fc_kge_protein_b': jnp.zeros((dim_hidden,), jnp.float32),
        'pna_layers': [],
        'fc_final_compound_w': xavier(nk(), (2 * dim_hidden, dim_compound_final)),
        'fc_final_compound_b': jnp.zeros((dim_compound_final,), jnp.float32),
        'fc_final_protein_w': xavier(nk(), (2 * dim_hidden, dim_protein_final)),
        'fc_final_protein_b': jnp.zeros((dim_protein_final,), jnp.float32),
        'imc_w0p': xavier(nk(), (dim_compound_final, imc_k)),
        'imc_w1p': xavier(nk(), (dim_protein_final, imc_k)),
    }
    for _ in range(pna_n_layer):
        params['pna_layers'].append({
            'edge_w': xavier(nk(), (dim_edge, dim_hidden)),
            'edge_b': jnp.zeros((dim_hidden,), jnp.float32),
            'pre_w': xavier(nk(), (3 * dim_hidden, dim_hidden)),
            'pre_b': jnp.zeros((dim_hidden,), jnp.float32),
            'post_w': xavier(nk(), (13 * dim_hidden, dim_hidden)),
            'post_b': jnp.zeros((dim_hidden,), jnp.float32),
            'lin_w': xavier(nk(), (dim_hidden, dim_hidden)),
            'lin_b': jnp.zeros((dim_hidden,), jnp.float32),
        })

    graph = {'src': src, 'dst': dst, 'edge_type': edge_type,
             'edge_weight': edge_weight}

    prep = prepare(params, graph)          # one-time weight folding / padding
    fwd = jax.jit(forward)
    loss, cpi_reconstruct = fwd(prep, cpi, cpi_mask)
    jax.block_until_ready((loss, cpi_reconstruct))
    assert cpi_reconstruct.shape == (n_compound, n_protein)
    assert loss.shape == ()
    assert bool(jnp.isfinite(loss))
    print("KERNEL_OK")
</pallas_src>

<mosaic_0001>
module attributes {stable_mosaic.version = 11 : i64} {
  func.func @_entity_init_kernel(%arg0: memref<8x128xf32, #tpu.memory_space<vmem>>, %arg1: memref<128x128xf32, #tpu.memory_space<vmem>>, %arg2: memref<1x128xf32, #tpu.memory_space<vmem>>, %arg3: memref<8x128xf32, #tpu.memory_space<vmem>>, %arg4: memref<128x128xf32, #tpu.memory_space<vmem>>, %arg5: memref<1x128xf32, #tpu.memory_space<vmem>>, %arg6: memref<16x128xf32, #tpu.memory_space<vmem>>) attributes {dimension_semantics = [], scalar_prefetch = 0 : i64, scratch_operands = 0 : i64, tpu.core_type = #tpu.core_type<tc>} {
    %c0 = arith.constant 0 : index
    %c0_0 = arith.constant 0 : index
    %0 = vector.load %arg0[%c0, %c0_0] : memref<8x128xf32, #tpu.memory_space<vmem>>, vector<8x128xf32>
    %c0_1 = arith.constant 0 : index
    %c0_2 = arith.constant 0 : index
    %1 = vector.load %arg1[%c0_1, %c0_2] : memref<128x128xf32, #tpu.memory_space<vmem>>, vector<128x128xf32>
    %cst = arith.constant dense<0.000000e+00> : vector<8x128xf32>
    %2 = tpu.matmul %0, %1, %cst {dimension_numbers = #tpu.dot_dimension_numbers<[1], [0], [0], [1], [0, 0, 1, 1], [], []>} : vector<8x128xf32>, vector<128x128xf32>, vector<8x128xf32> -> vector<8x128xf32>
    %c0_3 = arith.constant 0 : index
    %c0_4 = arith.constant 0 : index
    %3 = vector.load %arg2[%c0_3, %c0_4] : memref<1x128xf32, #tpu.memory_space<vmem>>, vector<1x128xf32>
    %4 = vector.broadcast %3 : vector<1x128xf32> to vector<8x128xf32>
    %5 = arith.addf %2, %4 : vector<8x128xf32>
    %c0_5 = arith.constant 0 : index
    %c0_6 = arith.constant 0 : index
    %6 = vector.load %arg6[%c0_5, %c0_6] : memref<16x128xf32, #tpu.memory_space<vmem>>, vector<8x128xf32>
    tpu.vector_store %arg6[%c0_5, %c0_6], %5 {strides = array<i32>} : memref<16x128xf32, #tpu.memory_space<vmem>>, vector<8x128xf32>,
    %c0_7 = arith.constant 0 : index
    %c0_8 = arith.constant 0 : index
    %7 = vector.load %arg3[%c0_7, %c0_8] : memref<8x128xf32, #tpu.memory_space<vmem>>, vector<8x128xf32>
    %c0_9 = arith.constant 0 : index
    %c0_10 = arith.constant 0 : index
    %8 = vector.load %arg4[%c0_9, %c0_10] : memref<128x128xf32, #tpu.memory_space<vmem>>, vector<128x128xf32>
    %cst_11 = arith.constant dense<0.000000e+00> : vector<8x128xf32>
    %9 = tpu.matmul %7, %8, %cst_11 {dimension_numbers = #tpu.dot_dimension_numbers<[1], [0], [0], [1], [0, 0, 1, 1], [], []>} : vector<8x128xf32>, vector<128x128xf32>, vector<8x128xf32> -> vector<8x128xf32>
    %c0_12 = arith.constant 0 : index
    %c0_13 = arith.constant 0 : index
    %10 = vector.load %arg5[%c0_12, %c0_13] : memref<1x128xf32, #tpu.memory_space<vmem>>, vector<1x128xf32>
    %11 = vector.broadcast %10 : vector<1x128xf32> to vector<8x128xf32>
    %12 = arith.addf %9, %11 : vector<8x128xf32>
    %c8 = arith.constant 8 : index
    %c0_14 = arith.constant 0 : index
    %13 = vector.load %arg6[%c8, %c0_14] : memref<16x128xf32, #tpu.memory_space<vmem>>, vector<8x128xf32>
    tpu.vector_store %arg6[%c8, %c0_14], %12 {strides = array<i32>} : memref<16x128xf32, #tpu.memory_space<vmem>>, vector<8x128xf32>,
    return
  }
}

module attributes {stable_mosaic.version = 11 : i64} {
  func.func @_pna_layer_kernel(%arg0: i32, %arg1: i32, %arg2: memref<8x128xf32, #tpu.memory_space<vmem>>, %arg3: memref<128x384xbf16, #tpu.memory_space<vmem>>, %arg4: memref<8x128xf32, #tpu.memory_space<vmem>>, %arg5: memref<8x4xf32, #tpu.memory_space<vmem>>, %arg6: memref<384x128xbf16, #tpu.memory_space<vmem>>, %arg7: memref<1x128xf32, #tpu.memory_space<vmem>>, %arg8: memref<512x128xf32, #tpu.memory_space<vmem>>, %arg9: memref<1x128xf32, #tpu.memory_space<vmem>>, %arg10: memref<8x128xf32, #tpu.memory_space<vmem>>, %arg11: memref<8x512xf32, #tpu.memory_space<vmem>>) attributes {dimension_semantics = [#tpu.dimension_semantics<parallel>, #tpu.dimension_semantics<arbitrary>], iteration_bounds = array<i64: 2, 2>, scalar_prefetch = 0 : i64, scratch_operands = 1 : i64, tpu.core_type = #tpu.core_type<tc>, window_params = [{transform_indices = @transform_0, window_bounds = array<i64: 8, 128>}, {transform_indices = @transform_1, window_bounds = array<i64: 128, 384>}, {transform_indices = @transform_2, window_bounds = array<i64: 8, 128>}, {transform_indices = @transform_3, window_bounds = array<i64: 8, 4>}, {pipeline_mode = #tpu.pipeline_mode<synchronous>, transform_indices = @transform_4, window_bounds = array<i64: 384, 128>}, {pipeline_mode = #tpu.pipeline_mode<synchronous>, transform_indices = @transform_5, window_bounds = array<i64: 1, 128>}, {pipeline_mode = #tpu.pipeline_mode<synchronous>, transform_indices = @transform_6, window_bounds = array<i64: 512, 128>}, {pipeline_mode = #tpu.pipeline_mode<synchronous>, transform_indices = @transform_7, window_bounds = array<i64: 1, 128>}, {transform_indices = @transform_8, window_bounds = array<i64: 8, 128>}]} {
    %c0_i32 = arith.constant 0 : i32
    %0 = arith.cmpi eq, %arg1, %c0_i32 : i32
    %1 = arith.extui %0 : i1 to i32
    %c0_i32_0 = arith.constant 0 : i32
    %2 = arith.cmpi ne, %1, %c0_i32_0 : i32
    scf.if %2 {
      %cst_28 = arith.constant 0.000000e+00 : f32
      %42 = vector.broadcast %cst_28 : f32 to vector<8x128xf32>
      %c0_29 = arith.constant 0 : index
      %c0_30 = arith.constant 0 : index
      %43 = vector.load %arg11[%c0_29, %c0_30] : memref<8x512xf32, #tpu.memory_space<vmem>>, vector<8x128xf32>
      tpu.vector_store %arg11[%c0_29, %c0_30], %42 {strides = array<i32>} : memref<8x512xf32, #tpu.memory_space<vmem>>, vector<8x128xf32>,
      %cst_31 = arith.constant 1.000000e+30 : f32
      %44 = vector.broadcast %cst_31 : f32 to vector<8x128xf32>
      %c0_32 = arith.constant 0 : index
      %c128_33 = arith.constant 128 : index
      %45 = vector.load %arg11[%c0_32, %c128_33] : memref<8x512xf32, #tpu.memory_space<vmem>>, vector<8x128xf32>
      tpu.vector_store %arg11[%c0_32, %c128_33], %44 {strides = array<i32>} : memref<8x512xf32, #tpu.memory_space<vmem>>, vector<8x128xf32>,
      %cst_34 = arith.constant -1.000000e+30 : f32
      %46 = vector.broadcast %cst_34 : f32 to vector<8x128xf32>
      %c0_35 = arith.constant 0 : index
      %c256_36 = arith.constant 256 : index
      %47 = vector.load %arg11[%c0_35, %c256_36] : memref<8x512xf32, #tpu.memory_space<vmem>>, vector<8x128xf32>
      tpu.vector_store %arg11[%c0_35, %c256_36], %46 {strides = array<i32>} : memref<8x512xf32, #tpu.memory_space<vmem>>, vector<8x128xf32>,
      %cst_37 = arith.constant 0.000000e+00 : f32
      %48 = vector.broadcast %cst_37 : f32 to vector<8x128xf32>
      %c0_38 = arith.constant 0 : index
      %c384_39 = arith.constant 384 : index
      %49 = vector.load %arg11[%c0_38, %c384_39] : memref<8x512xf32, #tpu.memory_space<vmem>>, vector<8x128xf32>
      tpu.vector_store %arg11[%c0_38, %c384_39], %48 {strides = array<i32>} : memref<8x512xf32, #tpu.memory_space<vmem>>, vector<8x128xf32>,
    } else {
    }
    %c0 = arith.constant 0 : index
    %c0_1 = arith.constant 0 : index
    %3 = vector.load %arg3[%c0, %c0_1] : memref<128x384xbf16, #tpu.memory_space<vmem>>, vector<128x384xbf16>
    %c0_2 = arith.constant 0 : index
    %c0_3 = arith.constant 0 : index
    %4 = vector.load %arg6[%c0_2, %c0_3] : memref<384x128xbf16, #tpu.memory_space<vmem>>, vector<384x128xbf16>
    %cst = arith.constant dense<0.000000e+00> : vector<128x128xf32>
    %5 = tpu.matmul %3, %4, %cst {dimension_numbers = #tpu.dot_dimension_numbers<[1], [0], [0], [1], [0, 0, 1, 1], [], []>} : vector<128x384xbf16>, vector<384x128xbf16>, vector<128x128xf32> -> vector<128x128xf32>
    %c0_4 = arith.constant 0 : index
    %c0_5 = arith.constant 0 : index
    %6 = vector.load %arg7[%c0_4, %c0_5] : memref<1x128xf32, #tpu.memory_space<vmem>>, vector<1x128xf32>
    %7 = vector.broadcast %6 : vector<1x128xf32> to vector<128x128xf32>
    %8 = arith.addf %5, %7 : vector<128x128xf32>
    %c0_6 = arith.constant 0 : index
    %c0_7 = arith.constant 0 : index
    %9 = vector.load %arg4[%c0_6, %c0_7] : memref<8x128xf32, #tpu.memory_space<vmem>>, vector<8x128xf32>
    %c0_8 = arith.constant 0 : index
    %c0_9 = arith.constant 0 : index
    %10 = vector.load %arg11[%c0_8, %c0_9] : memref<8x512xf32, #tpu.memory_space<vmem>>, vector<8x128xf32>
    %cst_10 = arith.constant dense<0.000000e+00> : vector<8x128xf32>
    %11 = tpu.matmul %9, %8, %cst_10 {dimension_numbers = #tpu.dot_dimension_numbers<[1], [0], [0], [1], [0, 0, 1, 1], [], []>} : vector<8x128xf32>, vector<128x128xf32>, vector<8x128xf32> -> vector<8x128xf32>
    %12 = arith.addf %10, %11 : vector<8x128xf32>
    %c0_11 = arith.constant 0 : index
    %c0_12 = arith.constant 0 : index
    %13 = vector.load %arg11[%c0_11, %c0_12] : memref<8x512xf32, #tpu.memory_space<vmem>>, vector<8x128xf32>
    tpu.vector_store %arg11[%c0_11, %c0_12], %12 {strides = array<i32>} : memref<8x512xf32, #tpu.memory_space<vmem>>, vector<8x128xf32>,
    %c0_13 = arith.constant 0 : index
    %c384 = arith.constant 384 : index
    %14 = vector.load %arg11[%c0_13, %c384] : memref<8x512xf32, #tpu.memory_space<vmem>>, vector<8x128xf32>
    %15 = arith.mulf %8, %8 : vector<128x128xf32>
    %cst_14 = arith.constant dense<0.000000e+00> : vector<8x128xf32>
    %16 = tpu.matmul %9, %15, %cst_14 {dimension_numbers = #tpu.dot_dimension_numbers<[1], [0], [0], [1], [0, 0, 1, 1], [], []>} : vector<8x128xf32>, vector<128x128xf32>, vector<8x128xf32> -> vector<8x128xf32>
    %17 = arith.addf %14, %16 : vector<8x128xf32>
    %c0_15 = arith.constant 0 : index
    %c384_16 = arith.constant 384 : index
    %18 = vector.load %arg11[%c0_15, %c384_16] : memref<8x512xf32, #tpu.memory_space<vmem>>, vector<8x128xf32>
    tpu.vector_store %arg11[%c0_15, %c384_16], %17 {strides = array<i32>} : memref<8x512xf32, #tpu.memory_space<vmem>>, vector<8x128xf32>,
    %cst_17 = arith.constant 1.000000e+00 : f32
    %19 = vector.broadcast %cst_17 : f32 to vector<8x128xf32>
    %20 = arith.subf %19, %9 : vector<8x128xf32>
    %21 = vector.shape_cast %20 : vector<8x128xf32> to vector<8x128x1xf32>
    %cst_18 = arith.constant 1.000000e+30 : f32
    %22 = vector.broadcast %cst_18 : f32 to vector<8x128x1xf32>
    %23 = arith.mulf %21, %22 : vector<8x128x1xf32>
    %24 = vector.shape_cast %8 : vector<128x128xf32> to vector<1x128x128xf32>
    %c0_19 = arith.constant 0 : index
    %c128 = arith.constant 128 : index
    %25 = vector.load %arg11[%c0_19, %c128] : memref<8x512xf32, #tpu.memory_space<vmem>>, vector<8x128xf32>
    %26 = vector.broadcast %24 : vector<1x128x128xf32> to vector<8x128x128xf32>
    %27 = vector.broadcast %23 : vector<8x128x1xf32> to vector<8x128x128xf32>
    %28 = arith.addf %26, %27 : vector<8x128x128xf32>
    %cst_20 = arith.constant dense<0x7F800000> : vector<8x128xf32>
    %29 = vector.multi_reduction <minimumf>, %28, %cst_20 [1] : vector<8x128x128xf32> to vector<8x128xf32>
    %30 = arith.minimumf %25, %29 : vector<8x128xf32>
    %c0_21 = arith.constant 0 : index
    %c128_22 = arith.constant 128 : index
    %31 = vector.load %arg11[%c0_21, %c128_22] : memref<8x512xf32, #tpu.memory_space<vmem>>, vector<8x128xf32>
    tpu.vector_store %arg11[%c0_21, %c128_22], %30 {strides = array<i32>} : memref<8x512xf32, #tpu.memory_space<vmem>>, vector<8x128xf32>,
    %c0_23 = arith.constant 0 : index
    %c256 = arith.constant 256 : index
    %32 = vector.load %arg11[%c0_23, %c256] : memref<8x512xf32, #tpu.memory_space<vmem>>, vector<8x128xf32>
    %33 = vector.broadcast %24 : vector<1x128x128xf32> to vector<8x128x128xf32>
    %34 = vector.broadcast %23 : vector<8x128x1xf32> to vector<8x128x128xf32>
    %35 = arith.subf %33, %34 : vector<8x128x128xf32>
    %cst_24 = arith.constant dense<0xFF800000> : vector<8x128xf32>
    %36 = vector.multi_reduction <maximumf>, %35, %cst_24 [1] : vector<8x128x128xf32> to vector<8x128xf32>
    %37 = arith.maximumf %32, %36 : vector<8x128xf32>
    %c0_25 = arith.constant 0 : index
    %c256_26 = arith.constant 256 : index
    %38 = vector.load %arg11[%c0_25, %c256_26] : memref<8x512xf32, #tpu.memory_space<vmem>>, vector<8x128xf32>
    tpu.vector_store %arg11[%c0_25, %c256_26], %37 {strides = array<i32>} : memref<8x512xf32, #tpu.memory_space<vmem>>, vector<8x128xf32>,
    %c1_i32 = arith.constant 1 : i32
    %39 = arith.cmpi eq, %arg1, %c1_i32 : i32
    %40 = arith.extui %39 : i1 to i32
    %c0_i32_27 = arith.constant 0 : i32
    %41 = arith.cmpi ne, %40, %c0_i32_27 : i32
    scf.if %41 {
      %c0_28 = arith.constant 0 : index
      %c0_29 = arith.constant 0 : index
      %42 = vector.load %arg5[%c0_28, %c0_29] : memref<8x4xf32, #tpu.memory_space<vmem>>, vector<8x4xf32>
      %43 = vector.extract_strided_slice %42 {offsets = [0, 0], sizes = [8, 1], strides = [1, 1]} : vector<8x4xf32> to vector<8x1xf32>
      %cst_30 = arith.constant 5.000000e-01 : f32
      %44 = vector.broadcast %cst_30 : f32 to vector<8x1xf32>
      %45 = arith.cmpf ogt, %43, %44 : vector<8x1xf32>
      %46 = vector.extract_strided_slice %42 {offsets = [0, 1], sizes = [8, 1], strides = [1, 1]} : vector<8x4xf32> to vector<8x1xf32>
      %47 = vector.extract_strided_slice %42 {offsets = [0, 2], sizes = [8, 1], strides = [1, 1]} : vector<8x4xf32> to vector<8x1xf32>
      %48 = vector.extract_strided_slice %42 {offsets = [0, 3], sizes = [8, 1], strides = [1, 1]} : vector<8x4xf32> to vector<8x1xf32>
      %c0_31 = arith.constant 0 : index
      %c0_32 = arith.constant 0 : index
      %49 = vector.load %arg11[%c0_31, %c0_32] : memref<8x512xf32, #tpu.memory_space<vmem>>, vector<8x128xf32>
      %50 = vector.broadcast %46 : vector<8x1xf32> to vector<8x128xf32>
      %51 = arith.mulf %49, %50 : vector<8x128xf32>
      %c0_33 = arith.constant 0 : index
      %c384_34 = arith.constant 384 : index
      %52 = vector.load %arg11[%c0_33, %c384_34] : memref<8x512xf32, #tpu.memory_space<vmem>>, vector<8x128xf32>
      %53 = vector.broadcast %46 : vector<8x1xf32> to vector<8x128xf32>
      %54 = arith.mulf %52, %53 : vector<8x128xf32>
      %55 = arith.mulf %51, %51 : vector<8x128xf32>
      %56 = arith.subf %54, %55 : vector<8x128xf32>
      %cst_35 = arith.constant 0.000000e+00 : f32
      %57 = vector.broadcast %cst_35 : f32 to vector<8x128xf32>
      %58 = arith.maximumf %56, %57 : vector<8x128xf32>
      %cst_36 = arith.constant 9.99999974E-6 : f32
      %59 = vector.broadcast %cst_36 : f32 to vector<8x128xf32>
      %60 = arith.addf %58, %59 : vector<8x128xf32>
      %61 = math.sqrt %60 : vector<8x128xf32>
      %c0_37 = arith.constant 0 : index
      %c128_38 = arith.constant 128 : index
      %62 = vector.load %arg11[%c0_37, %c128_38] : memref<8x512xf32, #tpu.memory_space<vmem>>, vector<8x128xf32>
      %cst_39 = arith.constant 0.000000e+00 : f32
      %63 = vector.shape_cast %45 : vector<8x1xi1> to vector<8x1xi1>
      %64 = vector.broadcast %63 : vector<8x1xi1> to vector<8x128xi1>
      %65 = vector.broadcast %cst_39 : f32 to vector<8x128xf32>
      %66 = arith.select %64, %62, %65 : vector<8x128xi1>, vector<8x128xf32>
      %c0_40 = arith.constant 0 : index
      %c256_41 = arith.constant 256 : index
      %67 = vector.load %arg11[%c0_40, %c256_41] : memref<8x512xf32, #tpu.memory_space<vmem>>, vector<8x128xf32>
      %cst_42 = arith.constant 0.000000e+00 : f32
      %68 = vector.shape_cast %45 : vector<8x1xi1> to vector<8x1xi1>
      %69 = vector.broadcast %68 : vector<8x1xi1> to vector<8x128xi1>
      %70 = vector.broadcast %cst_42 : f32 to vector<8x128xf32>
      %71 = arith.select %69, %67, %70 : vector<8x128xi1>, vector<8x128xf32>
      %72 = vector.extract_strided_slice %51 {offsets = [0, 0], sizes = [8, 32], strides = [1, 1]} : vector<8x128xf32> to vector<8x32xf32>
      %73 = vector.extract_strided_slice %66 {offsets = [0, 0], sizes = [8, 32], strides = [1, 1]} : vector<8x128xf32> to vector<8x32xf32>
      %74 = vector.extract_strided_slice %71 {offsets = [0, 0], sizes = [8, 32], strides = [1, 1]} : vector<8x128xf32> to vector<8x32xf32>
      %75 = vector.extract_strided_slice %61 {offsets = [0, 0], sizes = [8, 32], strides = [1, 1]} : vector<8x128xf32> to vector<8x32xf32>
      %76 = tpu.concatenate %72, %73, %74, %75 in 1 : vector<8x32xf32>, vector<8x32xf32>, vector<8x32xf32>, vector<8x32xf32> -> vector<8x128xf32>
      %c0_43 = arith.constant 0 : index
      %c0_44 = arith.constant 0 : index
      %77 = vector.load %arg2[%c0_43, %c0_44] : memref<8x128xf32, #tpu.memory_space<vmem>>, vector<8x128xf32>
      %78 = vector.broadcast %47 : vector<8x1xf32> to vector<8x128xf32>
      %79 = arith.mulf %76, %78 : vector<8x128xf32>
      %80 = vector.broadcast %48 : vector<8x1xf32> to vector<8x128xf32>
      %81 = arith.mulf %76, %80 : vector<8x128xf32>
      %82 = tpu.concatenate %77, %76, %79, %81 in 1 : vector<8x128xf32>, vector<8x128xf32>, vector<8x128xf32>, vector<8x128xf32> -> vector<8x512xf32>
      %c0_45 = arith.constant 0 : index
      %c0_46 = arith.constant 0 : index
      %83 = vector.load %arg8[%c0_45, %c0_46] : memref<512x128xf32, #tpu.memory_space<vmem>>, vector<512x128xf32>
      %cst_47 = arith.constant dense<0.000000e+00> : vector<8x128xf32>
      %84 = tpu.matmul %82, %83, %cst_47 {dimension_numbers = #tpu.dot_dimension_numbers<[1], [0], [0], [1], [0, 0, 1, 1], [], []>} : vector<8x512xf32>, vector<512x128xf32>, vector<8x128xf32> -> vector<8x128xf32>
      %c0_48 = arith.constant 0 : index
      %c0_49 = arith.constant 0 : index
      %85 = vector.load %arg9[%c0_48, %c0_49] : memref<1x128xf32, #tpu.memory_space<vmem>>, vector<1x128xf32>
      %86 = vector.broadcast %85 : vector<1x128xf32> to vector<8x128xf32>
      %87 = arith.addf %84, %86 : vector<8x128xf32>
      %c0_50 = arith.constant 0 : index
      %c0_51 = arith.constant 0 : index
      %88 = vector.load %arg10[%c0_50, %c0_51] : memref<8x128xf32, #tpu.memory_space<vmem>>, vector<8x128xf32>
      tpu.vector_store %arg10[%c0_50, %c0_51], %87 {strides = array<i32>} : memref<8x128xf32, #tpu.memory_space<vmem>>, vector<8x128xf32>,
    } else {
    }
    return
  }
  func.func @transform_0(%arg0: i32, %arg1: i32) -> (i32, i32) {
    %c0_i32 = arith.constant 0 : i32
    %c0_i32_0 = arith.constant 0 : i32
    return %arg0, %c0_i32 : i32, i32
  }
  func.func @transform_1(%arg0: i32, %arg1: i32) -> (i32, i32) {
    %c0_i32 = arith.constant 0 : i32
    %c0_i32_0 = arith.constant 0 : i32
    return %arg1, %c0_i32 : i32, i32
  }
  func.func @transform_2(%arg0: i32, %arg1: i32) -> (i32, i32) {
    %c0_i32 = arith.constant 0 : i32
    return %arg0, %arg1 : i32, i32
  }
  func.func @transform_3(%arg0: i32, %arg1: i32) -> (i32, i32) {
    %c0_i32 = arith.constant 0 : i32
    %c0_i32_0 = arith.constant 0 : i32
    return %arg0, %c0_i32 : i32, i32
  }
  func.func @transform_4(%arg0: i32, %arg1: i32) -> (i32, i32) {
    %c0_i32 = arith.constant 0 : i32
    %c0_i32_0 = arith.constant 0 : i32
    %c0_i32_1 = arith.constant 0 : i32
    return %c0_i32, %c0_i32_0 : i32, i32
  }
  func.func @transform_5(%arg0: i32, %arg1: i32) -> (i32, i32) {
    %c0_i32 = arith.constant 0 : i32
    %c0_i32_0 = arith.constant 0 : i32
    %c0_i32_1 = arith.constant 0 : i32
    return %c0_i32, %c0_i32_0 : i32, i32
  }
  func.func @transform_6(%arg0: i32, %arg1: i32) -> (i32, i32) {
    %c0_i32 = arith.constant 0 : i32
    %c0_i32_0 = arith.constant 0 : i32
    %c0_i32_1 = arith.constant 0 : i32
    return %c0_i32, %c0_i32_0 : i32, i32
  }
  func.func @transform_7(%arg0: i32, %arg1: i32) -> (i32, i32) {
    %c0_i32 = arith.constant 0 : i32
    %c0_i32_0 = arith.constant 0 : i32
    %c0_i32_1 = arith.constant 0 : i32
    return %c0_i32, %c0_i32_0 : i32, i32
  }
  func.func @transform_8(%arg0: i32, %arg1: i32) -> (i32, i32) {
    %c0_i32 = arith.constant 0 : i32
    %c0_i32_0 = arith.constant 0 : i32
    return %arg0, %c0_i32 : i32, i32
  }
}

module attributes {stable_mosaic.version = 11 : i64} {
  func.func @_final_imc_kernel(%arg0: memref<8x256xf32, #tpu.memory_space<vmem>>, %arg1: memref<8x256xf32, #tpu.memory_space<vmem>>, %arg2: memref<256x128xf32, #tpu.memory_space<vmem>>, %arg3: memref<1x128xf32, #tpu.memory_space<vmem>>, %arg4: memref<256x128xf32, #tpu.memory_space<vmem>>, %arg5: memref<1x128xf32, #tpu.memory_space<vmem>>, %arg6: memref<128x128xf32, #tpu.memory_space<vmem>>, %arg7: memref<128x128xf32, #tpu.memory_space<vmem>>, %arg8: memref<8x8xf32, #tpu.memory_space<vmem>>, %arg9: memref<8x8xf32, #tpu.memory_space<vmem>>, %arg10: memref<1x1xf32, #tpu.memory_space<vmem>>, %arg11: memref<8x8xf32, #tpu.memory_space<vmem>>) attributes {dimension_semantics = [], scalar_prefetch = 0 : i64, scratch_operands = 0 : i64, tpu.core_type = #tpu.core_type<tc>} {
    %c0 = arith.constant 0 : index
    %c0_0 = arith.constant 0 : index
    %0 = vector.load %arg0[%c0, %c0_0] : memref<8x256xf32, #tpu.memory_space<vmem>>, vector<8x256xf32>
    %c0_1 = arith.constant 0 : index
    %c0_2 = arith.constant 0 : index
    %1 = vector.load %arg2[%c0_1, %c0_2] : memref<256x128xf32, #tpu.memory_space<vmem>>, vector<256x128xf32>
    %cst = arith.constant dense<0.000000e+00> : vector<8x128xf32>
    %2 = tpu.matmul %0, %1, %cst {dimension_numbers = #tpu.dot_dimension_numbers<[1], [0], [0], [1], [0, 0, 1, 1], [], []>} : vector<8x256xf32>, vector<256x128xf32>, vector<8x128xf32> -> vector<8x128xf32>
    %c0_3 = arith.constant 0 : index
    %c0_4 = arith.constant 0 : index
    %3 = vector.load %arg3[%c0_3, %c0_4] : memref<1x128xf32, #tpu.memory_space<vmem>>, vector<1x128xf32>
    %4 = vector.broadcast %3 : vector<1x128xf32> to vector<8x128xf32>
    %5 = arith.addf %2, %4 : vector<8x128xf32>
    %cst_5 = arith.constant 0.000000e+00 : f32
    %6 = vector.broadcast %cst_5 : f32 to vector<8x128xf32>
    %7 = arith.cmpf ogt, %5, %6 : vector<8x128xf32>
    %cst_6 = arith.constant 0.00999999977 : f32
    %8 = vector.broadcast %cst_6 : f32 to vector<8x128xf32>
    %9 = arith.mulf %8, %5 : vector<8x128xf32>
    %10 = arith.select %7, %5, %9 : vector<8x128xi1>, vector<8x128xf32>
    %11 = arith.mulf %10, %10 : vector<8x128xf32>
    %cst_7 = arith.constant dense<0.000000e+00> : vector<8xf32>
    %12 = vector.multi_reduction <add>, %11, %cst_7 [1] : vector<8x128xf32> to vector<8xf32>
    %13 = vector.shape_cast %12 : vector<8xf32> to vector<8x1xf32>
    %cst_8 = arith.constant 1.000000e-24 : f32
    %14 = vector.broadcast %cst_8 : f32 to vector<8x1xf32>
    %15 = arith.maximumf %13, %14 : vector<8x1xf32>
    %16 = math.rsqrt %15 : vector<8x1xf32>
    %17 = vector.broadcast %16 : vector<8x1xf32> to vector<8x128xf32>
    %18 = arith.mulf %10, %17 : vector<8x128xf32>
    %c0_9 = arith.constant 0 : index
    %c0_10 = arith.constant 0 : index
    %19 = vector.load %arg1[%c0_9, %c0_10] : memref<8x256xf32, #tpu.memory_space<vmem>>, vector<8x256xf32>
    %c0_11 = arith.constant 0 : index
    %c0_12 = arith.constant 0 : index
    %20 = vector.load %arg4[%c0_11, %c0_12] : memref<256x128xf32, #tpu.memory_space<vmem>>, vector<256x128xf32>
    %cst_13 = arith.constant dense<0.000000e+00> : vector<8x128xf32>
    %21 = tpu.matmul %19, %20, %cst_13 {dimension_numbers = #tpu.dot_dimension_numbers<[1], [0], [0], [1], [0, 0, 1, 1], [], []>} : vector<8x256xf32>, vector<256x128xf32>, vector<8x128xf32> -> vector<8x128xf32>
    %c0_14 = arith.constant 0 : index
    %c0_15 = arith.constant 0 : index
    %22 = vector.load %arg5[%c0_14, %c0_15] : memref<1x128xf32, #tpu.memory_space<vmem>>, vector<1x128xf32>
    %23 = vector.broadcast %22 : vector<1x128xf32> to vector<8x128xf32>
    %24 = arith.addf %21, %23 : vector<8x128xf32>
    %cst_16 = arith.constant 0.000000e+00 : f32
    %25 = vector.broadcast %cst_16 : f32 to vector<8x128xf32>
    %26 = arith.cmpf ogt, %24, %25 : vector<8x128xf32>
    %cst_17 = arith.constant 0.00999999977 : f32
    %27 = vector.broadcast %cst_17 : f32 to vector<8x128xf32>
    %28 = arith.mulf %27, %24 : vector<8x128xf32>
    %29 = arith.select %26, %24, %28 : vector<8x128xi1>, vector<8x128xf32>
    %30 = arith.mulf %29, %29 : vector<8x128xf32>
    %cst_18 = arith.constant dense<0.000000e+00> : vector<8xf32>
    %31 = vector.multi_reduction <add>, %30, %cst_18 [1] : vector<8x128xf32> to vector<8xf32>
    %32 = vector.shape_cast %31 : vector<8xf32> to vector<8x1xf32>
    %cst_19 = arith.constant 1.000000e-24 : f32
    %33 = vector.broadcast %cst_19 : f32 to vector<8x1xf32>
    %34 = arith.maximumf %32, %33 : vector<8x1xf32>
    %35 = math.rsqrt %34 : vector<8x1xf32>
    %36 = vector.broadcast %35 : vector<8x1xf32> to vector<8x128xf32>
    %37 = arith.mulf %29, %36 : vector<8x128xf32>
    %c0_20 = arith.constant 0 : index
    %c0_21 = arith.constant 0 : index
    %38 = vector.load %arg6[%c0_20, %c0_21] : memref<128x128xf32, #tpu.memory_space<vmem>>, vector<128x128xf32>
    %cst_22 = arith.constant dense<0.000000e+00> : vector<8x128xf32>
    %39 = tpu.matmul %18, %38, %cst_22 {dimension_numbers = #tpu.dot_dimension_numbers<[1], [0], [0], [1], [0, 0, 1, 1], [], []>} : vector<8x128xf32>, vector<128x128xf32>, vector<8x128xf32> -> vector<8x128xf32>
    %c0_23 = arith.constant 0 : index
    %c0_24 = arith.constant 0 : index
    %40 = vector.load %arg7[%c0_23, %c0_24] : memref<128x128xf32, #tpu.memory_space<vmem>>, vector<128x128xf32>
    %cst_25 = arith.constant dense<0.000000e+00> : vector<8x128xf32>
    %41 = tpu.matmul %37, %40, %cst_25 {dimension_numbers = #tpu.dot_dimension_numbers<[1], [0], [0], [1], [0, 0, 1, 1], [], []>} : vector<8x128xf32>, vector<128x128xf32>, vector<8x128xf32> -> vector<8x128xf32>
    %cst_26 = arith.constant dense<0.000000e+00> : vector<8x8xf32>
    %42 = tpu.matmul %39, %41, %cst_26 {dimension_numbers = #tpu.dot_dimension_numbers<[1], [1], [0], [0], [0, 0, 1, 0], [], []>} : vector<8x128xf32>, vector<8x128xf32>, vector<8x8xf32> -> vector<8x8xf32>
    %c0_27 = arith.constant 0 : index
    %c0_28 = arith.constant 0 : index
    %43 = vector.load %arg11[%c0_27, %c0_28] : memref<8x8xf32, #tpu.memory_space<vmem>>, vector<8x8xf32>
    tpu.vector_store %arg11[%c0_27, %c0_28], %42 {strides = array<i32>} : memref<8x8xf32, #tpu.memory_space<vmem>>, vector<8x8xf32>,
    %c0_29 = arith.constant 0 : index
    %c0_30 = arith.constant 0 : index
    %44 = vector.load %arg9[%c0_29, %c0_30] : memref<8x8xf32, #tpu.memory_space<vmem>>, vector<8x8xf32>
    %c0_31 = arith.constant 0 : index
    %c0_32 = arith.constant 0 : index
    %45 = vector.load %arg8[%c0_31, %c0_32] : memref<8x8xf32, #tpu.memory_space<vmem>>, vector<8x8xf32>
    %46 = arith.subf %42, %45 : vector<8x8xf32>
    %47 = arith.mulf %44, %46 : vector<8x8xf32>
    %48 = arith.mulf %47, %47 : vector<8x8xf32>
    %49 = vector.shape_cast %48 : vector<8x8xf32> to vector<1x8x8xf32>
    %cst_33 = arith.constant dense<0.000000e+00> : vector<1xf32>
    %50 = vector.multi_reduction <add>, %49, %cst_33 [1, 2] : vector<1x8x8xf32> to vector<1xf32>
    %51 = vector.shape_cast %50 : vector<1xf32> to vector<1x1x1xf32>
    %52 = vector.extract %51[0, 0, 0] : f32 from vector<1x1x1xf32>
    %53 = vector.broadcast %52 : f32 to vector<1x1xf32>
    %c0_34 = arith.constant 0 : index
    %c0_35 = arith.constant 0 : index
    %54 = vector.load %arg10[%c0_34, %c0_35] : memref<1x1xf32, #tpu.memory_space<vmem>>, vector<1x1xf32>
    tpu.vector_store %arg10[%c0_34, %c0_35], %53 {strides = array<i32>} : memref<1x1xf32, #tpu.memory_space<vmem>>, vector<1x1xf32>,
    return
  }
}

</mosaic_0001>

<llo_original>
// kernel: forward.4
$region0: #{forward.4}
  #allocation0 [shape = 'u32[]', space=smem, size = 0x4, offset = 0x4, fixed_abs, tag = 'smem constant byte address 0x4 - core index']
  #allocation1 [shape = 'u32[144,128]{1,0:T(1,128)}', space=vmem, size = 0x12000, scoped, tag = 'internal scratch']
  %s0 = inlined_call_operand.vmem [shape: f32[8,128], index: 0, kind: input, shape index: {}]
  %s1 = inlined_call_operand.hbm [shape: f32[128,128], index: 1, kind: input, shape index: {}]
  %s2 = inlined_call_operand.vmem [shape: f32[1,128], index: 2, kind: input, shape index: {}]
  %s3 = inlined_call_operand.vmem [shape: f32[8,128], index: 3, kind: input, shape index: {}]
  %s4 = inlined_call_operand.hbm [shape: f32[128,128], index: 4, kind: input, shape index: {}]
  %s5 = inlined_call_operand.vmem [shape: f32[1,128], index: 5, kind: input, shape index: {}]
  %s6 = inlined_call_operand.vmem [shape: f32[16,128], index: 6, kind: output, shape index: {}]
  %s7 = sld [smem:[#allocation0]]
  $region42: #{forward.4} parent=0
    _
  %s9 = ssub.s32 1, %s7
  %s10 = scalar_select 0, %s9, %s7
  $region1: #{forward.4} parent=0
    #allocation2 [shape = 'u8[65536]{0}', space=vmem, size = 0x10000, scoped, tag = 'input window, operand 1, single buffered']
    #allocation3 [shape = 's32[1]{0}', space=sflag, size = 0x4, scoped, tag = 'scoped memory for forward.4']
    #allocation4 [shape = 'u8[65536]{0}', space=vmem, size = 0x10000, scoped, tag = 'input window, operand 4, single buffered']
    #allocation5 [shape = 's32[1]{0}', space=sflag, size = 0x4, scoped, tag = 'scoped memory for forward.4']
    %11 = vsyncpa [#allocation3], 0
    %12 = vsyncpa [#allocation5], 0
    // Predicated region
    $region2: #{forward.4} parent=1 // pred_check
      _
    $region3: #{forward.4} parent=1 // pred_check_branch
      %14 = sbr.rel (0) target = $region5
    $region4: #{forward.4} parent=1 // pred_region
      _
    $region5: #{forward.4} parent=1 // pred_fallthru
      _
    // Predicated region
    $region6: #{forward.4} parent=1 // pred_check
      _
    $region7: #{forward.4} parent=1 // pred_check_branch
      %16 = sbr.rel (0) target = $region9
    $region8: #{forward.4} parent=1 // pred_region
      %s18 = ssub.s32 2048, 2048
      %19 = vsyncadd [#allocation3], %s18
      %s20 = sshll.u32 [#allocation2], 4
      %s21 = int_to_ptr.vmem [resolvable:$true] %s20
      %26 = dma.hbm_to_vmem [thread:$0]  %s1, 2048, %s21, [#allocation3], 128, 128, 8
    $region9: #{forward.4} parent=1 // pred_fallthru
      _
    // Predicated region
    $region10: #{forward.4} parent=1 // pred_check
      _
    $region11: #{forward.4} parent=1 // pred_check_branch
      %28 = sbr.rel (0) target = $region13
    $region12: #{forward.4} parent=1 // pred_region
      _
    $region13: #{forward.4} parent=1 // pred_fallthru
      _
    // Predicated region
    $region14: #{forward.4} parent=1 // pred_check
      _
    $region15: #{forward.4} parent=1 // pred_check_branch
      %30 = sbr.rel (0) target = $region17
    $region16: #{forward.4} parent=1 // pred_region
      _
    $region17: #{forward.4} parent=1 // pred_fallthru
      _
    // Predicated region
    $region18: #{forward.4} parent=1 // pred_check
      _
    $region19: #{forward.4} parent=1 // pred_check_branch
      %32 = sbr.rel (0) target = $region21
    $region20: #{forward.4} parent=1 // pred_region
      %s34 = ssub.s32 2048, 2048
      %35 = vsyncadd [#allocation5], %s34
      %s36 = sshll.u32 [#allocation4], 4
      %s37 = int_to_ptr.vmem [resolvable:$true] %s36
      %42 = dma.hbm_to_vmem [thread:$0]  %s4, 2048, %s37, [#allocation5], 128, 128, 8
    $region21: #{forward.4} parent=1 // pred_fallthru
      _
    // Predicated region
    $region22: #{forward.4} parent=1 // pred_check
      _
    $region23: #{forward.4} parent=1 // pred_check_branch
      %44 = sbr.rel (0) target = $region25
    $region24: #{forward.4} parent=1 // pred_region
      _
    $region25: #{forward.4} parent=1 // pred_fallthru
      _
    // Predicated region
    $region26: #{forward.4} parent=1 // pred_check
      _
    $region27: #{forward.4} parent=1 // pred_check_branch
      %46 = sbr.rel (0) target = $region29
    $region28: #{forward.4} parent=1 // pred_region
      %47 = dma.done [#allocation3], 2048
    $region29: #{forward.4} parent=1 // pred_fallthru
      _
    // Predicated region
    $region30: #{forward.4} parent=1 // pred_check
      _
    $region31: #{forward.4} parent=1 // pred_check_branch
      %49 = sbr.rel (0) target = $region33
    $region32: #{forward.4} parent=1 // pred_region
      %50 = dma.done [#allocation5], 2048
    $region33: #{forward.4} parent=1 // pred_fallthru
      _
    %v51 = vld [vmem:[%s0] sm:$0xff]
    %v52 = vld [vmem:[#allocation2] sm:$0xff]
    %v53 = vld [vmem:[#allocation2 + $0x8] sm:$0xff]
    %v54 = vld [vmem:[#allocation2 + $0x10] sm:$0xff]
    %v55 = vld [vmem:[#allocation2 + $0x18] sm:$0xff]
    %v56 = vld [vmem:[#allocation2 + $0x20] sm:$0xff]
    %v57 = vld [vmem:[#allocation2 + $0x28] sm:$0xff]
    %v58 = vld [vmem:[#allocation2 + $0x30] sm:$0xff]
    %v59 = vld [vmem:[#allocation2 + $0x38] sm:$0xff]
    %v60 = vld [vmem:[#allocation2 + $0x40] sm:$0xff]
    %v61 = vld [vmem:[#allocation2 + $0x48] sm:$0xff]
    %v62 = vld [vmem:[#allocation2 + $0x50] sm:$0xff]
    %v63 = vld [vmem:[#allocation2 + $0x58] sm:$0xff]
    %v64 = vld [vmem:[#allocation2 + $0x60] sm:$0xff]
    %v65 = vld [vmem:[#allocation2 + $0x68] sm:$0xff]
    %v66 = vld [vmem:[#allocation2 + $0x70] sm:$0xff]
    %v67 = vld [vmem:[#allocation2 + $0x78] sm:$0xff]
    %v68 = vld [vmem:[%s2] sm:$0x1]
    %v70 = vlaneseq
    %v71 = vshrl.u32 %v70, 7
    %v72 = vsub.s32 0, %v71
    %v73 = vrot.slane %v68, %v72
    %75 = vmatprep.subr.mxu0 0.0
    %76 = vmatpush1.msra.mxu0 %v52
    %77 = vmatprep.subr.mxu0 0.0
    %78 = vmatpush1.msra.mxu0 %v53
    %79 = vmatprep.subr.mxu0 0.0
    %80 = vmatpush1.msra.mxu0 %v54
    %81 = vmatprep.subr.mxu0 0.0
    %82 = vmatpush1.msra.mxu0 %v55
    %83 = vmatprep.subr.mxu0 0.0
    %84 = vmatpush1.msra.mxu0 %v56
    %85 = vmatprep.subr.mxu0 0.0
    %86 = vmatpush1.msra.mxu0 %v57
    %87 = vmatprep.subr.mxu0 0.0
    %88 = vmatpush1.msra.mxu0 %v58
    %89 = vmatprep.subr.mxu0 0.0
    %90 = vmatpush1.msra.mxu0 %v59
    %91 = vmatprep.subr.mxu0 0.0
    %92 = vmatpush1.msra.mxu0 %v60
    %93 = vmatprep.subr.mxu0 0.0
    %94 = vmatpush1.msra.mxu0 %v61
    %95 = vmatprep.subr.mxu0 0.0
    %96 = vmatpush1.msra.mxu0 %v62
    %97 = vmatprep.subr.mxu0 0.0
    %98 = vmatpush1.msra.mxu0 %v63
    %99 = vmatprep.subr.mxu0 0.0
    %100 = vmatpush1.msra.mxu0 %v64
    %101 = vmatprep.subr.mxu0 0.0
    %102 = vmatpush1.msra.mxu0 %v65
    %103 = vmatprep.subr.mxu0 0.0
    %104 = vmatpush1.msra.mxu0 %v66
    %105 = vmatprep.subr.mxu0 0.0
    %106 = vmatpush1.msra.mxu0 %v67
    %107 = vmatprep.subr.mxu0 0.0
    %108 = vmatpush1.msra.mxu0 0.0
    %109 = vmatprep.subr.mxu0 0.0
    %110 = vmatpush1.msra.mxu0 0.0
    %111 = vmatprep.subr.mxu0 0.0
    %112 = vmatpush1.msra.mxu0 0.0
    %113 = vmatprep.subr.mxu0 0.0
    %114 = vmatpush1.msra.mxu0 0.0
    %115 = vmatprep.subr.mxu0 0.0
    %116 = vmatpush1.msra.mxu0 0.0
    %117 = vmatprep.subr.mxu0 0.0
    %118 = vmatpush1.msra.mxu0 0.0
    %119 = vmatprep.subr.mxu0 0.0
    %120 = vmatpush1.msra.mxu0 0.0
    %121 = vmatprep.subr.mxu0 0.0
    %122 = vmatpush1.msra.mxu0 0.0
    %123 = vmatprep.subr.mxu0 0.0
    %124 = vmatpush1.msra.mxu0 0.0
    %125 = vmatprep.subr.mxu0 0.0
    %126 = vmatpush1.msra.mxu0 0.0
    %127 = vmatprep.subr.mxu0 0.0
    %128 = vmatpush1.msra.mxu0 0.0
    %129 = vmatprep.subr.mxu0 0.0
    %130 = vmatpush1.msra.mxu0 0.0
    %131 = vmatprep.subr.mxu0 0.0
    %132 = vmatpush1.msra.mxu0 0.0
    %133 = vmatprep.subr.mxu0 0.0
    %134 = vmatpush1.msra.mxu0 0.0
    %135 = vmatprep.subr.mxu0 0.0
    %136 = vmatpush1.msra.mxu0 0.0
    %137 = vmatprep.subr.mxu0 0.0
    %138 = vmatpush1.msra.mxu0 0.0
    %139 = vmatprep.mubr.f32.mxu0 0.0
    %140 = vmatmul.mubr.f32.gmra.mrb[0].mxu0 %v51
    %v141 = vpop.f32.mrb[0].mxu0
    %v142 = vadd.f32 %v73, %v141
    %v143 = vpop.f32.mrb[0].mxu0
    %144 = vdwg.mxu0
    %145 = vst [vmem:[%s6] sm:$0xff] %v142
    %v146 = vld [vmem:[%s3] sm:$0xff]
    %v147 = vld [vmem:[#allocation4] sm:$0xff]
    %v148 = vld [vmem:[#allocation4 + $0x8] sm:$0xff]
    %v149 = vld [vmem:[#allocation4 + $0x10] sm:$0xff]
    %v150 = vld [vmem:[#allocation4 + $0x18] sm:$0xff]
    %v151 = vld [vmem:[#allocation4 + $0x20] sm:$0xff]
    %v152 = vld [vmem:[#allocation4 + $0x28] sm:$0xff]
    %v153 = vld [vmem:[#allocation4 + $0x30] sm:$0xff]
    %v154 = vld [vmem:[#allocation4 + $0x38] sm:$0xff]
    %v155 = vld [vmem:[#allocation4 + $0x40] sm:$0xff]
    %v156 = vld [vmem:[#allocation4 + $0x48] sm:$0xff]
    %v157 = vld [vmem:[#allocation4 + $0x50] sm:$0xff]
    %v158 = vld [vmem:[#allocation4 + $0x58] sm:$0xff]
    %v159 = vld [vmem:[#allocation4 + $0x60] sm:$0xff]
    %v160 = vld [vmem:[#allocation4 + $0x68] sm:$0xff]
    %v161 = vld [vmem:[#allocation4 + $0x70] sm:$0xff]
    %v162 = vld [vmem:[#allocation4 + $0x78] sm:$0xff]
    %v163 = vld [vmem:[%s5] sm:$0x1]
    %v165 = vlaneseq
    %v166 = vshrl.u32 %v165, 7
    %v167 = vsub.s32 0, %v166
    %v168 = vrot.slane %v163, %v167
    %170 = vmatprep.subr.mxu0 0.0
    %171 = vmatpush1.msra.mxu0 %v147
    %172 = vmatprep.subr.mxu0 0.0
    %173 = vmatpush1.msra.mxu0 %v148
    %174 = vmatprep.subr.mxu0 0.0
    %175 = vmatpush1.msra.mxu0 %v149
    %176 = vmatprep.subr.mxu0 0.0
    %177 = vmatpush1.msra.mxu0 %v150
    %178 = vmatprep.subr.mxu0 0.0
    %179 = vmatpush1.msra.mxu0 %v151
    %180 = vmatprep.subr.mxu0 0.0
    %181 = vmatpush1.msra.mxu0 %v152
    %182 = vmatprep.subr.mxu0 0.0
    %183 = vmatpush1.msra.mxu0 %v153
    %184 = vmatprep.subr.mxu0 0.0
    %185 = vmatpush1.msra.mxu0 %v154
    %186 = vmatprep.subr.mxu0 0.0
    %187 = vmatpush1.msra.mxu0 %v155
    %188 = vmatprep.subr.mxu0 0.0
    %189 = vmatpush1.msra.mxu0 %v156
    %190 = vmatprep.subr.mxu0 0.0
    %191 = vmatpush1.msra.mxu0 %v157
    %192 = vmatprep.subr.mxu0 0.0
    %193 = vmatpush1.msra.mxu0 %v158
    %194 = vmatprep.subr.mxu0 0.0
    %195 = vmatpush1.msra.mxu0 %v159
    %196 = vmatprep.subr.mxu0 0.0
    %197 = vmatpush1.msra.mxu0 %v160
    %198 = vmatprep.subr.mxu0 0.0
    %199 = vmatpush1.msra.mxu0 %v161
    %200 = vmatprep.subr.mxu0 0.0
    %201 = vmatpush1.msra.mxu0 %v162
    %202 = vmatprep.subr.mxu0 0.0
    %203 = vmatpush1.msra.mxu0 0.0
    %204 = vmatprep.subr.mxu0 0.0
    %205 = vmatpush1.msra.mxu0 0.0
    %206 = vmatprep.subr.mxu0 0.0
    %207 = vmatpush1.msra.mxu0 0.0
    %208 = vmatprep.subr.mxu0 0.0
    %209 = vmatpush1.msra.mxu0 0.0
    %210 = vmatprep.subr.mxu0 0.0
    %211 = vmatpush1.msra.mxu0 0.0
    %212 = vmatprep.subr.mxu0 0.0
    %213 = vmatpush1.msra.mxu0 0.0
    %214 = vmatprep.subr.mxu0 0.0
    %215 = vmatpush1.msra.mxu0 0.0
    %216 = vmatprep.subr.mxu0 0.0
    %217 = vmatpush1.msra.mxu0 0.0
    %218 = vmatprep.subr.mxu0 0.0
    %219 = vmatpush1.msra.mxu0 0.0
    %220 = vmatprep.subr.mxu0 0.0
    %221 = vmatpush1.msra.mxu0 0.0
    %222 = vmatprep.subr.mxu0 0.0
    %223 = vmatpush1.msra.mxu0 0.0
    %224 = vmatprep.subr.mxu0 0.0
    %225 = vmatpush1.msra.mxu0 0.0
    %226 = vmatprep.subr.mxu0 0.0
    %227 = vmatpush1.msra.mxu0 0.0
    %228 = vmatprep.subr.mxu0 0.0
    %229 = vmatpush1.msra.mxu0 0.0
    %230 = vmatprep.subr.mxu0 0.0
    %231 = vmatpush1.msra.mxu0 0.0
    %232 = vmatprep.subr.mxu0 0.0
    %233 = vmatpush1.msra.mxu0 0.0
    %234 = vmatprep.mubr.f32.mxu0 0.0
    %235 = vmatmul.mubr.f32.gmra.mrb[0].mxu0 %v146
    %v236 = vpop.f32.mrb[0].mxu0
    %v237 = vadd.f32 %v168, %v236
    %v238 = vpop.f32.mrb[0].mxu0
    %239 = vdwg.mxu0
    %240 = vst [vmem:[%s6 + $0x8] sm:$0xff] %v237
    // Predicated region
    $region34: #{forward.4} parent=1 // pred_check
      _
    $region35: #{forward.4} parent=1 // pred_check_branch
      %242 = sbr.rel (0) target = $region37
    $region36: #{forward.4} parent=1 // pred_region
      _
    $region37: #{forward.4} parent=1 // pred_fallthru
      _
    // Predicated region
    $region38: #{forward.4} parent=1 // pred_check
      _
    $region39: #{forward.4} parent=1 // pred_check_branch
      %244 = sbr.rel (0) target = $region41
    $region40: #{forward.4} parent=1 // pred_region
      _
    $region41: #{forward.4} parent=1 // pred_fallthru
      _
    %245 = vsyncpa [#allocation3], 1
    %246 = vsyncpa [#allocation5], 1

// kernel: forward.7
$region0: #{forward.7}
  #allocation0 [shape = 'u32[]', space=smem, size = 0x4, offset = 0x4, fixed_abs, tag = 'smem constant byte address 0x4 - core index']
  #allocation1 [shape = 'u32[144,128]{1,0:T(1,128)}', space=vmem, size = 0x12000, scoped, tag = 'internal scratch']
  %s0 = inlined_call_operand.vmem [shape: f32[8,256], index: 0, kind: input, shape index: {}]
  %s1 = inlined_call_operand.vmem [shape: f32[8,256], index: 1, kind: input, shape index: {}]
  %s2 = inlined_call_operand.vmem [shape: f32[256,128], index: 2, kind: input, shape index: {}]
  %s3 = inlined_call_operand.vmem [shape: f32[1,128], index: 3, kind: input, shape index: {}]
  %s4 = inlined_call_operand.vmem [shape: f32[256,128], index: 4, kind: input, shape index: {}]
  %s5 = inlined_call_operand.vmem [shape: f32[1,128], index: 5, kind: input, shape index: {}]
  %s6 = inlined_call_operand.vmem [shape: f32[128,128], index: 6, kind: input, shape index: {}]
  %s7 = inlined_call_operand.vmem [shape: f32[128,128], index: 7, kind: input, shape index: {}]
  %s8 = inlined_call_operand.vmem [shape: f32[8,8], index: 8, kind: input, shape index: {}]
  %s9 = inlined_call_operand.vmem [shape: f32[8,8], index: 9, kind: input, shape index: {}]
  %s10 = inlined_call_operand.hbm [shape: f32[1,1], index: 10, kind: output, shape index: {0}]
  %s11 = inlined_call_operand.hbm [shape: f32[8,8], index: 11, kind: output, shape index: {1}]
  %12 = xla_tuple %s10, %s11
  %s13 = sld [smem:[#allocation0]]
  $region58: #{forward.7} parent=0
    _
  %s15 = ssub.s32 1, %s13
  %s16 = scalar_select 0, %s15, %s13
  $region1: #{forward.7} parent=0
    #allocation2 [shape = 'u8[512]{0}', space=vmem, size = 0x400, scoped, tag = 'output window, operand 0, single buffered']
    #allocation3 [shape = 's32[1]{0}', space=sflag, size = 0x4, scoped, tag = 'scoped memory for forward.7']
    #allocation4 [shape = 'u8[4096]{0}', space=vmem, size = 0x1000, scoped, tag = 'output window, operand 1, single buffered']
    #allocation5 [shape = 's32[1]{0}', space=sflag, size = 0x4, scoped, tag = 'scoped memory for forward.7']
    %17 = vsyncpa [#allocation3], 0
    %18 = vsyncpa [#allocation5], 0
    // Predicated region
    $region2: #{forward.7} parent=1 // pred_check
      _
    $region3: #{forward.7} parent=1 // pred_check_branch
      %20 = sbr.rel (0) target = $region5
    $region4: #{forward.7} parent=1 // pred_region
      _
    $region5: #{forward.7} parent=1 // pred_fallthru
      _
    // Predicated region
    $region6: #{forward.7} parent=1 // pred_check
      _
    $region7: #{forward.7} parent=1 // pred_check_branch
      %22 = sbr.rel (0) target = $region9
    $region8: #{forward.7} parent=1 // pred_region
      _
    $region9: #{forward.7} parent=1 // pred_fallthru
      _
    // Predicated region
    $region10: #{forward.7} parent=1 // pred_check
      _
    $region11: #{forward.7} parent=1 // pred_check_branch
      %24 = sbr.rel (0) target = $region13
    $region12: #{forward.7} parent=1 // pred_region
      _
    $region13: #{forward.7} parent=1 // pred_fallthru
      _
    // Predicated region
    $region14: #{forward.7} parent=1 // pred_check
      _
    $region15: #{forward.7} parent=1 // pred_check_branch
      %26 = sbr.rel (0) target = $region17
    $region16: #{forward.7} parent=1 // pred_region
      _
    $region17: #{forward.7} parent=1 // pred_fallthru
      _
    // Predicated region
    $region18: #{forward.7} parent=1 // pred_check
      _
    $region19: #{forward.7} parent=1 // pred_check_branch
      %28 = sbr.rel (0) target = $region21
    $region20: #{forward.7} parent=1 // pred_region
      _
    $region21: #{forward.7} parent=1 // pred_fallthru
      _
    // Predicated region
    $region22: #{forward.7} parent=1 // pred_check
      _
    $region23: #{forward.7} parent=1 // pred_check_branch
      %30 = sbr.rel (0) target = $region25
    $region24: #{forward.7} parent=1 // pred_region
      _
    $region25: #{forward.7} parent=1 // pred_fallthru
      _
    // Predicated region
    $region26: #{forward.7} parent=1 // pred_check
      _
    $region27: #{forward.7} parent=1 // pred_check_branch
      %32 = sbr.rel (0) target = $region29
    $region28: #{forward.7} parent=1 // pred_region
      _
    $region29: #{forward.7} parent=1 // pred_fallthru
      _
    // Predicated region
    $region30: #{forward.7} parent=1 // pred_check
      _
    $region31: #{forward.7} parent=1 // pred_check_branch
      %34 = sbr.rel (0) target = $region33
    $region32: #{forward.7} parent=1 // pred_region
      _
    $region33: #{forward.7} parent=1 // pred_fallthru
      _
    // Predicated region
    $region34: #{forward.7} parent=1 // pred_check
      _
    $region35: #{forward.7} parent=1 // pred_check_branch
      %36 = sbr.rel (0) target = $region37
    $region36: #{forward.7} parent=1 // pred_region
      _
    $region37: #{forward.7} parent=1 // pred_fallthru
      _
    // Predicated region
    $region38: #{forward.7} parent=1 // pred_check
      _
    $region39: #{forward.7} parent=1 // pred_check_branch
      %38 = sbr.rel (0) target = $region41
    $region40: #{forward.7} parent=1 // pred_region
      _
    $region41: #{forward.7} parent=1 // pred_fallthru
      _
    %v39 = vld [vmem:[%s0] sm:$0xff]
    %v40 = vld [vmem:[%s0 + $0x8] sm:$0xff]
    %v41 = vld [vmem:[%s2] sm:$0xff]
    %v42 = vld [vmem:[%s2 + $0x8] sm:$0xff]
    %v43 = vld [vmem:[%s2 + $0x10] sm:$0xff]
    %v44 = vld [vmem:[%s2 + $0x18] sm:$0xff]
    %v45 = vld [vmem:[%s2 + $0x20] sm:$0xff]
    %v46 = vld [vmem:[%s2 + $0x28] sm:$0xff]
    %v47 = vld [vmem:[%s2 + $0x30] sm:$0xff]
    %v48 = vld [vmem:[%s2 + $0x38] sm:$0xff]
    %v49 = vld [vmem:[%s2 + $0x40] sm:$0xff]
    %v50 = vld [vmem:[%s2 + $0x48] sm:$0xff]
    %v51 = vld [vmem:[%s2 + $0x50] sm:$0xff]
    %v52 = vld [vmem:[%s2 + $0x58] sm:$0xff]
    %v53 = vld [vmem:[%s2 + $0x60] sm:$0xff]
    %v54 = vld [vmem:[%s2 + $0x68] sm:$0xff]
    %v55 = vld [vmem:[%s2 + $0x70] sm:$0xff]
    %v56 = vld [vmem:[%s2 + $0x78] sm:$0xff]
    %v57 = vld [vmem:[%s2 + $0x80] sm:$0xff]
    %v58 = vld [vmem:[%s2 + $0x88] sm:$0xff]
    %v59 = vld [vmem:[%s2 + $0x90] sm:$0xff]
    %v60 = vld [vmem:[%s2 + $0x98] sm:$0xff]
    %v61 = vld [vmem:[%s2 + $0xa0] sm:$0xff]
    %v62 = vld [vmem:[%s2 + $0xa8] sm:$0xff]
    %v63 = vld [vmem:[%s2 + $0xb0] sm:$0xff]
    %v64 = vld [vmem:[%s2 + $0xb8] sm:$0xff]
    %v65 = vld [vmem:[%s2 + $0xc0] sm:$0xff]
    %v66 = vld [vmem:[%s2 + $0xc8] sm:$0xff]
    %v67 = vld [vmem:[%s2 + $0xd0] sm:$0xff]
    %v68 = vld [vmem:[%s2 + $0xd8] sm:$0xff]
    %v69 = vld [vmem:[%s2 + $0xe0] sm:$0xff]
    %v70 = vld [vmem:[%s2 + $0xe8] sm:$0xff]
    %v71 = vld [vmem:[%s2 + $0xf0] sm:$0xff]
    %v72 = vld [vmem:[%s2 + $0xf8] sm:$0xff]
    %v73 = vld [vmem:[%s3] sm:$0x1]
    %v75 = vlaneseq
    %v76 = vshrl.u32 %v75, 7
    %v77 = vsub.s32 0, %v76
    %v78 = vrot.slane %v73, %v77
    %80 = vmatprep.subr.mxu0 0.0
    %81 = vmatpush1.msra.mxu0 %v41
    %82 = vmatprep.subr.mxu0 0.0
    %83 = vmatpush1.msra.mxu0 %v42
    %84 = vmatprep.subr.mxu0 0.0
    %85 = vmatpush1.msra.mxu0 %v43
    %86 = vmatprep.subr.mxu0 0.0
    %87 = vmatpush1.msra.mxu0 %v44
    %88 = vmatprep.subr.mxu0 0.0
    %89 = vmatpush1.msra.mxu0 %v45
    %90 = vmatprep.subr.mxu0 0.0
    %91 = vmatpush1.msra.mxu0 %v46
    %92 = vmatprep.subr.mxu0 0.0
    %93 = vmatpush1.msra.mxu0 %v47
    %94 = vmatprep.subr.mxu0 0.0
    %95 = vmatpush1.msra.mxu0 %v48
    %96 = vmatprep.subr.mxu0 0.0
    %97 = vmatpush1.msra.mxu0 %v49
    %98 = vmatprep.subr.mxu0 0.0
    %99 = vmatpush1.msra.mxu0 %v50
    %100 = vmatprep.subr.mxu0 0.0
    %101 = vmatpush1.msra.mxu0 %v51
    %102 = vmatprep.subr.mxu0 0.0
    %103 = vmatpush1.msra.mxu0 %v52
    %104 = vmatprep.subr.mxu0 0.0
    %105 = vmatpush1.msra.mxu0 %v53
    %106 = vmatprep.subr.mxu0 0.0
    %107 = vmatpush1.msra.mxu0 %v54
    %108 = vmatprep.subr.mxu0 0.0
    %109 = vmatpush1.msra.mxu0 %v55
    %110 = vmatprep.subr.mxu0 0.0
    %111 = vmatpush1.msra.mxu0 %v56
    %112 = vmatprep.subr.mxu0 0.0
    %113 = vmatpush1.msra.mxu0 %v57
    %114 = vmatprep.subr.mxu0 0.0
    %115 = vmatpush1.msra.mxu0 %v58
    %116 = vmatprep.subr.mxu0 0.0
    %117 = vmatpush1.msra.mxu0 %v59
    %118 = vmatprep.subr.mxu0 0.0
    %119 = vmatpush1.msra.mxu0 %v60
    %120 = vmatprep.subr.mxu0 0.0
    %121 = vmatpush1.msra.mxu0 %v61
    %122 = vmatprep.subr.mxu0 0.0
    %123 = vmatpush1.msra.mxu0 %v62
    %124 = vmatprep.subr.mxu0 0.0
    %125 = vmatpush1.msra.mxu0 %v63
    %126 = vmatprep.subr.mxu0 0.0
    %127 = vmatpush1.msra.mxu0 %v64
    %128 = vmatprep.subr.mxu0 0.0
    %129 = vmatpush1.msra.mxu0 %v65
    %130 = vmatprep.subr.mxu0 0.0
    %131 = vmatpush1.msra.mxu0 %v66
    %132 = vmatprep.subr.mxu0 0.0
    %133 = vmatpush1.msra.mxu0 %v67
    %134 = vmatprep.subr.mxu0 0.0
    %135 = vmatpush1.msra.mxu0 %v68
    %136 = vmatprep.subr.mxu0 0.0
    %137 = vmatpush1.msra.mxu0 %v69
    %138 = vmatprep.subr.mxu0 0.0
    %139 = vmatpush1.msra.mxu0 %v70
    %140 = vmatprep.subr.mxu0 0.0
    %141 = vmatpush1.msra.mxu0 %v71
    %142 = vmatprep.subr.mxu0 0.0
    %143 = vmatpush1.msra.mxu0 %v72
    %144 = vmatprep.mubr.f32.mxu0 %v40
    %145 = vmatmul.mubr.f32.gmra.mrb[0].mxu0 %v39
    %v146 = vpop.f32.mrb[0].mxu0
    %v147 = vadd.f32 %v78, %v146
    %v148 = vpop.f32.mrb[0].mxu0
    %149 = vdwg.mxu0
    %vm150 = vcmp.gt.f32.partialorder %v147, 0.0
    %v151 = vmul.f32 %v147, 0.01
    %v152 = vsel %vm150, %v147, %v151
    %v153 = vmul.f32 %v152, %v152
    %154 = vadd.xlane.f32.xlu0 %v153
    %v155 = vpop.xlane.xlu0 %154
    %v156 = vmax.f32 %v155, 1e-24
    %v157 = vrsqrt.pop %v156
    %v158 = vmul.f32 %v152, %v157
    %v159 = vld [vmem:[%s1] sm:$0xff]
    %v160 = vld [vmem:[%s1 + $0x8] sm:$0xff]
    %v161 = vld [vmem:[%s4] sm:$0xff]
    %v162 = vld [vmem:[%s4 + $0x8] sm:$0xff]
    %v163 = vld [vmem:[%s4 + $0x10] sm:$0xff]
    %v164 = vld [vmem:[%s4 + $0x18] sm:$0xff]
    %v165 = vld [vmem:[%s4 + $0x20] sm:$0xff]
    %v166 = vld [vmem:[%s4 + $0x28] sm:$0xff]
    %v167 = vld [vmem:[%s4 + $0x30] sm:$0xff]
    %v168 = vld [vmem:[%s4 + $0x38] sm:$0xff]
    %v169 = vld [vmem:[%s4 + $0x40] sm:$0xff]
    %v170 = vld [vmem:[%s4 + $0x48] sm:$0xff]
    %v171 = vld [vmem:[%s4 + $0x50] sm:$0xff]
    %v172 = vld [vmem:[%s4 + $0x58] sm:$0xff]
    %v173 = vld [vmem:[%s4 + $0x60] sm:$0xff]
    %v174 = vld [vmem:[%s4 + $0x68] sm:$0xff]
    %v175 = vld [vmem:[%s4 + $0x70] sm:$0xff]
    %v176 = vld [vmem:[%s4 + $0x78] sm:$0xff]
    %v177 = vld [vmem:[%s4 + $0x80] sm:$0xff]
    %v178 = vld [vmem:[%s4 + $0x88] sm:$0xff]
    %v179 = vld [vmem:[%s4 + $0x90] sm:$0xff]
    %v180 = vld [vmem:[%s4 + $0x98] sm:$0xff]
    %v181 = vld [vmem:[%s4 + $0xa0] sm:$0xff]
    %v182 = vld [vmem:[%s4 + $0xa8] sm:$0xff]
    %v183 = vld [vmem:[%s4 + $0xb0] sm:$0xff]
    %v184 = vld [vmem:[%s4 + $0xb8] sm:$0xff]
    %v185 = vld [vmem:[%s4 + $0xc0] sm:$0xff]
    %v186 = vld [vmem:[%s4 + $0xc8] sm:$0xff]
    %v187 = vld [vmem:[%s4 + $0xd0] sm:$0xff]
    %v188 = vld [vmem:[%s4 + $0xd8] sm:$0xff]
    %v189 = vld [vmem:[%s4 + $0xe0] sm:$0xff]
    %v190 = vld [vmem:[%s4 + $0xe8] sm:$0xff]
    %v191 = vld [vmem:[%s4 + $0xf0] sm:$0xff]
    %v192 = vld [vmem:[%s4 + $0xf8] sm:$0xff]
    %v193 = vld [vmem:[%s5] sm:$0x1]
    %v195 = vlaneseq
    %v196 = vshrl.u32 %v195, 7
    %v197 = vsub.s32 0, %v196
    %v198 = vrot.slane %v193, %v197
    %200 = vmatprep.subr.mxu0 0.0
    %201 = vmatpush1.msra.mxu0 %v161
    %202 = vmatprep.subr.mxu0 0.0
    %203 = vmatpush1.msra.mxu0 %v162
    %204 = vmatprep.subr.mxu0 0.0
    %205 = vmatpush1.msra.mxu0 %v163
    %206 = vmatprep.subr.mxu0 0.0
    %207 = vmatpush1.msra.mxu0 %v164
    %208 = vmatprep.subr.mxu0 0.0
    %209 = vmatpush1.msra.mxu0 %v165
    %210 = vmatprep.subr.mxu0 0.0
    %211 = vmatpush1.msra.mxu0 %v166
    %212 = vmatprep.subr.mxu0 0.0
    %213 = vmatpush1.msra.mxu0 %v167
    %214 = vmatprep.subr.mxu0 0.0
    %215 = vmatpush1.msra.mxu0 %v168
    %216 = vmatprep.subr.mxu0 0.0
    %217 = vmatpush1.msra.mxu0 %v169
    %218 = vmatprep.subr.mxu0 0.0
    %219 = vmatpush1.msra.mxu0 %v170
    %220 = vmatprep.subr.mxu0 0.0
    %221 = vmatpush1.msra.mxu0 %v171
    %222 = vmatprep.subr.mxu0 0.0
    %223 = vmatpush1.msra.mxu0 %v172
    %224 = vmatprep.subr.mxu0 0.0
    %225 = vmatpush1.msra.mxu0 %v173
    %226 = vmatprep.subr.mxu0 0.0
    %227 = vmatpush1.msra.mxu0 %v174
    %228 = vmatprep.subr.mxu0 0.0
    %229 = vmatpush1.msra.mxu0 %v175
    %230 = vmatprep.subr.mxu0 0.0
    %231 = vmatpush1.msra.mxu0 %v176
    %232 = vmatprep.subr.mxu0 0.0
    %233 = vmatpush1.msra.mxu0 %v177
    %234 = vmatprep.subr.mxu0 0.0
    %235 = vmatpush1.msra.mxu0 %v178
    %236 = vmatprep.subr.mxu0 0.0
    %237 = vmatpush1.msra.mxu0 %v179
    %238 = vmatprep.subr.mxu0 0.0
    %239 = vmatpush1.msra.mxu0 %v180
    %240 = vmatprep.subr.mxu0 0.0
    %241 = vmatpush1.msra.mxu0 %v181
    %242 = vmatprep.subr.mxu0 0.0
    %243 = vmatpush1.msra.mxu0 %v182
    %244 = vmatprep.subr.mxu0 0.0
    %245 = vmatpush1.msra.mxu0 %v183
    %246 = vmatprep.subr.mxu0 0.0
    %247 = vmatpush1.msra.mxu0 %v184
    %248 = vmatprep.subr.mxu0 0.0
    %249 = vmatpush1.msra.mxu0 %v185
    %250 = vmatprep.subr.mxu0 0.0
    %251 = vmatpush1.msra.mxu0 %v186
    %252 = vmatprep.subr.mxu0 0.0
    %253 = vmatpush1.msra.mxu0 %v187
    %254 = vmatprep.subr.mxu0 0.0
    %255 = vmatpush1.msra.mxu0 %v188
    %256 = vmatprep.subr.mxu0 0.0
    %257 = vmatpush1.msra.mxu0 %v189
    %258 = vmatprep.subr.mxu0 0.0
    %259 = vmatpush1.msra.mxu0 %v190
    %260 = vmatprep.subr.mxu0 0.0
    %261 = vmatpush1.msra.mxu0 %v191
    %262 = vmatprep.subr.mxu0 0.0
    %263 = vmatpush1.msra.mxu0 %v192
    %264 = vmatprep.mubr.f32.mxu0 %v160
    %265 = vmatmul.mubr.f32.gmra.mrb[0].mxu0 %v159
    %v266 = vpop.f32.mrb[0].mxu0
    %v267 = vadd.f32 %v198, %v266
    %v268 = vpop.f32.mrb[0].mxu0
    %269 = vdwg.mxu0
    %vm270 = vcmp.gt.f32.partialorder %v267, 0.0
    %v271 = vmul.f32 %v267, 0.01
    %v272 = vsel %vm270, %v267, %v271
    %v273 = vmul.f32 %v272, %v272
    %274 = vadd.xlane.f32.xlu0 %v273
    %v275 = vpop.xlane.xlu0 %274
    %v276 = vmax.f32 %v275, 1e-24
    %v277 = vrsqrt.pop %v276
    %v278 = vmul.f32 %v272, %v277
    %v279 = vld [vmem:[%s6] sm:$0xff]
    %v280 = vld [vmem:[%s6 + $0x8] sm:$0xff]
    %v281 = vld [vmem:[%s6 + $0x10] sm:$0xff]
    %v282 = vld [vmem:[%s6 + $0x18] sm:$0xff]
    %v283 = vld [vmem:[%s6 + $0x20] sm:$0xff]
    %v284 = vld [vmem:[%s6 + $0x28] sm:$0xff]
    %v285 = vld [vmem:[%s6 + $0x30] sm:$0xff]
    %v286 = vld [vmem:[%s6 + $0x38] sm:$0xff]
    %v287 = vld [vmem:[%s6 + $0x40] sm:$0xff]
    %v288 = vld [vmem:[%s6 + $0x48] sm:$0xff]
    %v289 = vld [vmem:[%s6 + $0x50] sm:$0xff]
    %v290 = vld [vmem:[%s6 + $0x58] sm:$0xff]
    %v291 = vld [vmem:[%s6 + $0x60] sm:$0xff]
    %v292 = vld [vmem:[%s6 + $0x68] sm:$0xff]
    %v293 = vld [vmem:[%s6 + $0x70] sm:$0xff]
    %v294 = vld [vmem:[%s6 + $0x78] sm:$0xff]
    %295 = vmatprep.subr.mxu0 0.0
    %296 = vmatpush1.msra.mxu0 %v279
    %297 = vmatprep.subr.mxu0 0.0
    %298 = vmatpush1.msra.mxu0 %v280
    %299 = vmatprep.subr.mxu0 0.0
    %300 = vmatpush1.msra.mxu0 %v281
    %301 = vmatprep.subr.mxu0 0.0
    %302 = vmatpush1.msra.mxu0 %v282
    %303 = vmatprep.subr.mxu0 0.0
    %304 = vmatpush1.msra.mxu0 %v283
    %305 = vmatprep.subr.mxu0 0.0
    %306 = vmatpush1.msra.mxu0 %v284
    %307 = vmatprep.subr.mxu0 0.0
    %308 = vmatpush1.msra.mxu0 %v285
    %309 = vmatprep.subr.mxu0 0.0
    %310 = vmatpush1.msra.mxu0 %v286
    %311 = vmatprep.subr.mxu0 0.0
    %312 = vmatpush1.msra.mxu0 %v287
    %313 = vmatprep.subr.mxu0 0.0
    %314 = vmatpush1.msra.mxu0 %v288
    %315 = vmatprep.subr.mxu0 0.0
    %316 = vmatpush1.msra.mxu0 %v289
    %317 = vmatprep.subr.mxu0 0.0
    %318 = vmatpush1.msra.mxu0 %v290
    %319 = vmatprep.subr.mxu0 0.0
    %320 = vmatpush1.msra.mxu0 %v291
    %321 = vmatprep.subr.mxu0 0.0
    %322 = vmatpush1.msra.mxu0 %v292
    %323 = vmatprep.subr.mxu0 0.0
    %324 = vmatpush1.msra.mxu0 %v293
    %325 = vmatprep.subr.mxu0 0.0
    %326 = vmatpush1.msra.mxu0 %v294
    %327 = vmatprep.subr.mxu0 0.0
    %328 = vmatpush1.msra.mxu0 0.0
    %329 = vmatprep.subr.mxu0 0.0
    %330 = vmatpush1.msra.mxu0 0.0
    %331 = vmatprep.subr.mxu0 0.0
    %332 = vmatpush1.msra.mxu0 0.0
    %333 = vmatprep.subr.mxu0 0.0
    %334 = vmatpush1.msra.mxu0 0.0
    %335 = vmatprep.subr.mxu0 0.0
    %336 = vmatpush1.msra.mxu0 0.0
    %337 = vmatprep.subr.mxu0 0.0
    %338 = vmatpush1.msra.mxu0 0.0
    %339 = vmatprep.subr.mxu0 0.0
    %340 = vmatpush1.msra.mxu0 0.0
    %341 = vmatprep.subr.mxu0 0.0
    %342 = vmatpush1.msra.mxu0 0.0
    %343 = vmatprep.subr.mxu0 0.0
    %344 = vmatpush1.msra.mxu0 0.0
    %345 = vmatprep.subr.mxu0 0.0
    %346 = vmatpush1.msra.mxu0 0.0
    %347 = vmatprep.subr.mxu0 0.0
    %348 = vmatpush1.msra.mxu0 0.0
    %349 = vmatprep.subr.mxu0 0.0
    %350 = vmatpush1.msra.mxu0 0.0
    %351 = vmatprep.subr.mxu0 0.0
    %352 = vmatpush1.msra.mxu0 0.0
    %353 = vmatprep.subr.mxu0 0.0
    %354 = vmatpush1.msra.mxu0 0.0
    %355 = vmatprep.subr.mxu0 0.0
    %356 = vmatpush1.msra.mxu0 0.0
    %357 = vmatprep.subr.mxu0 0.0
    %358 = vmatpush1.msra.mxu0 0.0
    %359 = vmatprep.mubr.f32.mxu0 0.0
    %360 = vmatmul.mubr.f32.gmra.mrb[0].mxu0 %v158
    %v361 = vpop.f32.mrb[0].mxu0
    %v362 = vadd.f32 0.0, %v361
    %v363 = vpop.f32.mrb[0].mxu0
    %364 = vdwg.mxu0
    %v365 = vld [vmem:[%s7] sm:$0xff]
    %v366 = vld [vmem:[%s7 + $0x8] sm:$0xff]
    %v367 = vld [vmem:[%s7 + $0x10] sm:$0xff]
    %v368 = vld [vmem:[%s7 + $0x18] sm:$0xff]
    %v369 = vld [vmem:[%s7 + $0x20] sm:$0xff]
    %v370 = vld [vmem:[%s7 + $0x28] sm:$0xff]
    %v371 = vld [vmem:[%s7 + $0x30] sm:$0xff]
    %v372 = vld [vmem:[%s7 + $0x38] sm:$0xff]
    %v373 = vld [vmem:[%s7 + $0x40] sm:$0xff]
    %v374 = vld [vmem:[%s7 + $0x48] sm:$0xff]
    %v375 = vld [vmem:[%s7 + $0x50] sm:$0xff]
    %v376 = vld [vmem:[%s7 + $0x58] sm:$0xff]
    %v377 = vld [vmem:[%s7 + $0x60] sm:$0xff]
    %v378 = vld [vmem:[%s7 + $0x68] sm:$0xff]
    %v379 = vld [vmem:[%s7 + $0x70] sm:$0xff]
    %v380 = vld [vmem:[%s7 + $0x78] sm:$0xff]
    %381 = vmatprep.subr.mxu0 0.0
    %382 = vmatpush1.msra.mxu0 %v365
    %383 = vmatprep.subr.mxu0 0.0
    %384 = vmatpush1.msra.mxu0 %v366
    %385 = vmatprep.subr.mxu0 0.0
    %386 = vmatpush1.msra.mxu0 %v367
    %387 = vmatprep.subr.mxu0 0.0
    %388 = vmatpush1.msra.mxu0 %v368
    %389 = vmatprep.subr.mxu0 0.0
    %390 = vmatpush1.msra.mxu0 %v369
    %391 = vmatprep.subr.mxu0 0.0
    %392 = vmatpush1.msra.mxu0 %v370
    %393 = vmatprep.subr.mxu0 0.0
    %394 = vmatpush1.msra.mxu0 %v371
    %395 = vmatprep.subr.mxu0 0.0
    %396 = vmatpush1.msra.mxu0 %v372
    %397 = vmatprep.subr.mxu0 0.0
    %398 = vmatpush1.msra.mxu0 %v373
    %399 = vmatprep.subr.mxu0 0.0
    %400 = vmatpush1.msra.mxu0 %v374
    %401 = vmatprep.subr.mxu0 0.0
    %402 = vmatpush1.msra.mxu0 %v375
    %403 = vmatprep.subr.mxu0 0.0
    %404 = vmatpush1.msra.mxu0 %v376
    %405 = vmatprep.subr.mxu0 0.0
    %406 = vmatpush1.msra.mxu0 %v377
    %407 = vmatprep.subr.mxu0 0.0
    %408 = vmatpush1.msra.mxu0 %v378
    %409 = vmatprep.subr.mxu0 0.0
    %410 = vmatpush1.msra.mxu0 %v379
    %411 = vmatprep.subr.mxu0 0.0
    %412 = vmatpush1.msra.mxu0 %v380
    %413 = vmatprep.subr.mxu0 0.0
    %414 = vmatpush1.msra.mxu0 0.0
    %415 = vmatprep.subr.mxu0 0.0
    %416 = vmatpush1.msra.mxu0 0.0
    %417 = vmatprep.subr.mxu0 0.0
    %418 = vmatpush1.msra.mxu0 0.0
    %419 = vmatprep.subr.mxu0 0.0
    %420 = vmatpush1.msra.mxu0 0.0
    %421 = vmatprep.subr.mxu0 0.0
    %422 = vmatpush1.msra.mxu0 0.0
    %423 = vmatprep.subr.mxu0 0.0
    %424 = vmatpush1.msra.mxu0 0.0
    %425 = vmatprep.subr.mxu0 0.0
    %426 = vmatpush1.msra.mxu0 0.0
    %427 = vmatprep.subr.mxu0 0.0
    %428 = vmatpush1.msra.mxu0 0.0
    %429 = vmatprep.subr.mxu0 0.0
    %430 = vmatpush1.msra.mxu0 0.0
    %431 = vmatprep.subr.mxu0 0.0
    %432 = vmatpush1.msra.mxu0 0.0
    %433 = vmatprep.subr.mxu0 0.0
    %434 = vmatpush1.msra.mxu0 0.0
    %435 = vmatprep.subr.mxu0 0.0
    %436 = vmatpush1.msra.mxu0 0.0
    %437 = vmatprep.subr.mxu0 0.0
    %438 = vmatpush1.msra.mxu0 0.0
    %439 = vmatprep.subr.mxu0 0.0
    %440 = vmatpush1.msra.mxu0 0.0
    %441 = vmatprep.subr.mxu0 0.0
    %442 = vmatpush1.msra.mxu0 0.0
    %443 = vmatprep.subr.mxu0 0.0
    %444 = vmatpush1.msra.mxu0 0.0
    %445 = vmatprep.mubr.f32.mxu0 0.0
    %446 = vmatmul.mubr.f32.gmra.mrb[0].mxu0 %v278
    %v447 = vpop.f32.mrb[0].mxu0
    %v448 = vadd.f32 0.0, %v447
    %v449 = vpop.f32.mrb[0].mxu0
    %450 = vdwg.mxu0
    %451 = vmatprep.subr.mxu0 0.0
    %452 = vmatpush1.xpose.msra.mxu0 %v448
    %453 = vmatprep.subr.mxu0 0.0
    %454 = vmatpush1.xpose.msra.mxu0 0.0
    %455 = vmatprep.subr.mxu0 0.0
    %456 = vmatpush1.xpose.msra.mxu0 0.0
    %457 = vmatprep.subr.mxu0 0.0
    %458 = vmatpush1.xpose.msra.mxu0 0.0
    %459 = vmatprep.subr.mxu0 0.0
    %460 = vmatpush1.xpose.msra.mxu0 0.0
    %461 = vmatprep.subr.mxu0 0.0
    %462 = vmatpush1.xpose.msra.mxu0 0.0
    %463 = vmatprep.subr.mxu0 0.0
    %464 = vmatpush1.xpose.msra.mxu0 0.0
    %465 = vmatprep.subr.mxu0 0.0
    %466 = vmatpush1.xpose.msra.mxu0 0.0
    %467 = vmatprep.subr.mxu0 0.0
    %468 = vmatpush1.xpose.msra.mxu0 0.0
    %469 = vmatprep.subr.mxu0 0.0
    %470 = vmatpush1.xpose.msra.mxu0 0.0
    %471 = vmatprep.subr.mxu0 0.0
    %472 = vmatpush1.xpose.msra.mxu0 0.0
    %473 = vmatprep.subr.mxu0 0.0
    %474 = vmatpush1.xpose.msra.mxu0 0.0
    %475 = vmatprep.subr.mxu0 0.0
    %476 = vmatpush1.xpose.msra.mxu0 0.0
    %477 = vmatprep.subr.mxu0 0.0
    %478 = vmatpush1.xpose.msra.mxu0 0.0
    %479 = vmatprep.subr.mxu0 0.0
    %480 = vmatpush1.xpose.msra.mxu0 0.0
    %481 = vmatprep.subr.mxu0 0.0
    %482 = vmatpush1.xpose.msra.mxu0 0.0
    %483 = vmatprep.subr.mxu0 0.0
    %484 = vmatpush1.xpose.msra.mxu0 0.0
    %485 = vmatprep.subr.mxu0 0.0
    %486 = vmatpush1.xpose.msra.mxu0 0.0
    %487 = vmatprep.subr.mxu0 0.0
    %488 = vmatpush1.xpose.msra.mxu0 0.0
    %489 = vmatprep.subr.mxu0 0.0
    %490 = vmatpush1.xpose.msra.mxu0 0.0
    %491 = vmatprep.subr.mxu0 0.0
    %492 = vmatpush1.xpose.msra.mxu0 0.0
    %493 = vmatprep.subr.mxu0 0.0
    %494 = vmatpush1.xpose.msra.mxu0 0.0
    %495 = vmatprep.subr.mxu0 0.0
    %496 = vmatpush1.xpose.msra.mxu0 0.0
    %497 = vmatprep.subr.mxu0 0.0
    %498 = vmatpush1.xpose.msra.mxu0 0.0
    %499 = vmatprep.subr.mxu0 0.0
    %500 = vmatpush1.xpose.msra.mxu0 0.0
    %501 = vmatprep.subr.mxu0 0.0
    %502 = vmatpush1.xpose.msra.mxu0 0.0
    %503 = vmatprep.subr.mxu0 0.0
    %504 = vmatpush1.xpose.msra.mxu0 0.0
    %505 = vmatprep.subr.mxu0 0.0
    %506 = vmatpush1.xpose.msra.mxu0 0.0
    %507 = vmatprep.subr.mxu0 0.0
    %508 = vmatpush1.xpose.msra.mxu0 0.0
    %509 = vmatprep.subr.mxu0 0.0
    %510 = vmatpush1.xpose.msra.mxu0 0.0
    %511 = vmatprep.subr.mxu0 0.0
    %512 = vmatpush1.xpose.msra.mxu0 0.0
    %513 = vmatprep.subr.mxu0 0.0
    %514 = vmatpush1.xpose.msra.mxu0 0.0
    %515 = vmatprep.mubr.f32.mxu0 0.0
    %516 = vmatmul.mubr.f32.gmra.mrb[0].mxu0 %v362
    %v517 = vpop.f32.mrb[0].mxu0
    %v518 = vadd.f32 0.0, %v517
    %v519 = vpop.f32.mrb[0].mxu0
    %520 = vdwg.mxu0
    %vm521 = vcmask 64512
    %522 = vst.msk [vmem:[#allocation4] sm:$0xff] %vm521, %v518
    %v523 = vld [vmem:[%s9] sm:$0xff]
    %v524 = vld [vmem:[%s8] sm:$0xff]
    %v525 = vsub.f32 %v518, %v524
    %v526 = vmul.f32 %v523, %v525
    %v527 = vmul.f32 %v526, %v526
    %v528 = vsel %vm521, %v527, 0.0
    %529 = vadd.xlane.f32.xlu0 %v528
    %v530 = vpop.xlane.xlu0 %529
    %v531 = vrot.slane %v530, 4
    %v532 = vadd.f32 %v530, %v531
    %v533 = vrot.slane %v532, 2
    %v534 = vadd.f32 %v532, %v533
    %v535 = vrot.slane %v534, 1
    %v536 = vadd.f32 %v534, %v535
    %s537 = vtos %v536
    %v538 = vstv %s537
    %vm539 = vcmask 0
    %540 = vst.msk [vmem:[#allocation2] sm:$0x1] %vm539, %v538
    // Predicated region
    $region42: #{forward.7} parent=1 // pred_check
      _
    $region43: #{forward.7} parent=1 // pred_check_branch
      %542 = sbr.rel (0) target = $region45
    $region44: #{forward.7} parent=1 // pred_region
      %s544 = ssub.s32 16, 16
      %545 = vsyncadd [#allocation3], %s544
      %s547 = sshll.u32 [#allocation2], 4
      %s548 = int_to_ptr.vmem [resolvable:$true] %s547
      %550 = dma.vmem_to_hbm [thread:$0]  %s548, 16, %s10, [#allocation3]
    $region45: #{forward.7} parent=1 // pred_fallthru
      _
    // Predicated region
    $region46: #{forward.7} parent=1 // pred_check
      _
    $region47: #{forward.7} parent=1 // pred_check_branch
      %552 = sbr.rel (0) target = $region49
    $region48: #{forward.7} parent=1 // pred_region
      %s554 = ssub.s32 128, 128
      %555 = vsyncadd [#allocation5], %s554
      %s557 = sshll.u32 [#allocation4], 4
      %s558 = int_to_ptr.vmem [resolvable:$true] %s557
      %560 = dma.vmem_to_hbm [thread:$0]  %s558, 128, %s11, [#allocation5]
    $region49: #{forward.7} parent=1 // pred_fallthru
      _
    // Predicated region
    $region50: #{forward.7} parent=1 // pred_check
      _
    $region51: #{forward.7} parent=1 // pred_check_branch
      %562 = sbr.rel (0) target = $region53
    $region52: #{forward.7} parent=1 // pred_region
      %563 = dma.done [#allocation3], 16
    $region53: #{forward.7} parent=1 // pred_fallthru
      _
    // Predicated region
    $region54: #{forward.7} parent=1 // pred_check
      _
    $region55: #{forward.7} parent=1 // pred_check_branch
      %565 = sbr.rel (0) target = $region57
    $region56: #{forward.7} parent=1 // pred_region
      %566 = dma.done [#allocation5], 128
    $region57: #{forward.7} parent=1 // pred_fallthru
      _
    %567 = vsyncpa [#allocation3], 1
    %568 = vsyncpa [#allocation5], 1

// kernel: forward.5
$region0: #{forward.5}
  #allocation0 [shape = 'u32[]', space=smem, size = 0x4, offset = 0x4, fixed_abs, tag = 'smem constant byte address 0x4 - core index']
  #allocation1 [shape = 'u32[144,128]{1,0:T(1,128)}', space=vmem, size = 0x12000, scoped, tag = 'internal scratch']
  #allocation2 [shape = 'f32[8,512]{1,0:T(8,128)}', space=vmem, size = 0x4000, scoped, tag = 'scratch operand']
  %s0 = inlined_call_operand.vmem [shape: f32[16,128], index: 0, kind: input, shape index: {}]
  %s1 = inlined_call_operand.vmem [shape: bf16[256,384], index: 1, kind: input, shape index: {}]
  %s2 = inlined_call_operand.vmem [shape: f32[16,256], index: 2, kind: input, shape index: {}]
  %s3 = inlined_call_operand.vmem [shape: f32[16,4], index: 3, kind: input, shape index: {}]
  %s4 = inlined_call_operand.vmem [shape: bf16[384,128], index: 4, kind: input, shape index: {}]
  %s5 = inlined_call_operand.vmem [shape: f32[1,128], index: 5, kind: input, shape index: {}]
  %s6 = inlined_call_operand.vmem [shape: f32[512,128], index: 6, kind: input, shape index: {}]
  %s7 = inlined_call_operand.vmem [shape: f32[1,128], index: 7, kind: input, shape index: {}]
  %s8 = inlined_call_operand.vmem [shape: f32[16,128], index: 8, kind: output, shape index: {}]
  %s9 = sld [smem:[#allocation0]]
  $region73: #{forward.5} parent=0
    _
  %s11 = ssub.s32 1, %s9
  %s12 = scalar_select 0, %s11, %s9
  loop: start=0, step=1, limit=6
  $region2: #{forward.5} parent=0 // loop_pre_header
    _
  $region3: #{forward.5} parent=0 // loop_header
    %s14 = sphi 0, %s18
    %p15 = scmp.ge.s32.totalorder %s14, 6
    %s21 = sphi 0, %s33
    %s22 = sphi 0, %s29
    %s23 = sphi 0, %s21
    %s24 = sphi 0, %s22
    %s25 = sphi 0, %s23
    %s26 = sphi 0, %s24
    %s36 = sphi 0, %s38
    %s39 = sphi 0, %s36
    %s40 = sphi 0, %s39
    %s56 = sphi 0, %s40
    %s62 = sphi 0, %s64
    %s65 = sphi 0, %s62
    %s66 = sphi 0, %s65
    %s82 = sphi 0, %s66
    %s90 = sphi 0, %s92
    %s93 = sphi 0, %s90
    %s94 = sphi 0, %s93
    %s110 = sphi 0, %s94
    %s116 = sphi 0, %s118
    %s119 = sphi 0, %s116
    %s120 = sphi 0, %s119
    %s136 = sphi 0, %s120
    %s140 = sphi 0, %s140
    %s142 = sphi 0, %s140
    %s143 = sphi 0, %s142
    %s157 = sphi 0, %s143
    %s161 = sphi 0, %s161
    %s163 = sphi 0, %s161
    %s164 = sphi 0, %s163
    %s178 = sphi 0, %s164
    %s182 = sphi 0, %s182
    %s184 = sphi 0, %s182
    %s185 = sphi 0, %s184
    %s199 = sphi 0, %s185
    %s203 = sphi 0, %s203
    %s205 = sphi 0, %s203
    %s206 = sphi 0, %s205
    %s220 = sphi 0, %s206
    %s226 = sphi 0, %s228
    %s229 = sphi 0, %s226
    %s230 = sphi 0, %s229
    %s246 = sphi 0, %s230
  $region4: #{forward.5} parent=0 // loop_header_branch
    %17 = sbr.rel (%p15) target = $region8
  $region5: #{forward.5} parent=0 // loop_body
    %s19 = ssub.s32 %s14, 1
    %s20 = ssub.s32 %s14, 2
    %s27 = sadd.s32 1, %s22
    %p28 = scmp.ge.s32.totalorder %s27, 2
    %s29 = scalar_select %p28, 0, %s27
    %s30 = sadd.s32 1, %s21
    %s31 = scalar_select %p28, %s30, %s21
    %p32 = scmp.ge.s32.totalorder %s31, 2
    %s33 = scalar_select %p32, 0, %s31
    %s34 = ssub.s32 %s21, %s33
    %p35 = scmp.eq.s32.totalorder %s34, 0
    %s37 = sadd.s32 %s36, 1
    %s38 = scalar_select %p35, %s36, %s37
    %p41 = pneg %p35
    %p42 = scmp.eq.s32.totalorder %s14, 3
    %p43 = por %p41, %p42
    %p44 = scmp.ne.s32.totalorder %s36, %s39
    %p45 = scmp.eq.s32.totalorder %s14, 0
    %p46 = por %p44, %p45
    %p47 = scmp.ne.s32.totalorder %s36, %s39
    %p48 = scmp.eq.s32.totalorder %s19, 3
    %p49 = por %p47, %p48
    %p50 = scmp.ne.s32.totalorder %s39, %s40
    %p51 = scmp.eq.s32.totalorder %s19, 0
    %p52 = por %p50, %p51
    %p53 = scmp.ne.s32.totalorder %s39, %s40
    %p54 = scmp.eq.s32.totalorder %s20, 3
    %p55 = por %p53, %p54
    %p57 = scmp.ne.s32.totalorder %s40, %s56
    %p58 = scmp.eq.s32.totalorder %s20, 0
    %p59 = por %p57, %p58
    %s60 = ssub.s32 %s22, %s29
    %p61 = scmp.eq.s32.totalorder %s60, 0
    %s63 = sadd.s32 %s62, 1
    %s64 = scalar_select %p61, %s62, %s63
    %p67 = pneg %p61
    %p68 = scmp.eq.s32.totalorder %s14, 3
    %p69 = por %p67, %p68
    %p70 = scmp.ne.s32.totalorder %s62, %s65
    %p71 = scmp.eq.s32.totalorder %s14, 0
    %p72 = por %p70, %p71
    %p73 = scmp.ne.s32.totalorder %s62, %s65
    %p74 = scmp.eq.s32.totalorder %s19, 3
    %p75 = por %p73, %p74
    %p76 = scmp.ne.s32.totalorder %s65, %s66
    %p77 = scmp.eq.s32.totalorder %s19, 0
    %p78 = por %p76, %p77
    %p79 = scmp.ne.s32.totalorder %s65, %s66
    %p80 = scmp.eq.s32.totalorder %s20, 3
    %p81 = por %p79, %p80
    %p83 = scmp.ne.s32.totalorder %s66, %s82
    %p84 = scmp.eq.s32.totalorder %s20, 0
    %p85 = por %p83, %p84
    %s86 = ssub.s32 %s21, %s33
    %s87 = ssub.s32 %s22, %s29
    %s88 = sor.u32 %s86, %s87
    %p89 = scmp.eq.s32.totalorder %s88, 0
    %s91 = sadd.s32 %s90, 1
    %s92 = scalar_select %p89, %s90, %s91
    %p95 = pneg %p89
    %p96 = scmp.eq.s32.totalorder %s14, 3
    %p97 = por %p95, %p96
    %p98 = scmp.ne.s32.totalorder %s90, %s93
    %p99 = scmp.eq.s32.totalorder %s14, 0
    %p100 = por %p98, %p99
    %p101 = scmp.ne.s32.totalorder %s90, %s93
    %p102 = scmp.eq.s32.totalorder %s19, 3
    %p103 = por %p101, %p102
    %p104 = scmp.ne.s32.totalorder %s93, %s94
    %p105 = scmp.eq.s32.totalorder %s19, 0
    %p106 = por %p104, %p105
    %p107 = scmp.ne.s32.totalorder %s93, %s94
    %p108 = scmp.eq.s32.totalorder %s20, 3
    %p109 = por %p107, %p108
    %p111 = scmp.ne.s32.totalorder %s94, %s110
    %p112 = scmp.eq.s32.totalorder %s20, 0
    %p113 = por %p111, %p112
    %s114 = ssub.s32 %s21, %s33
    %p115 = scmp.eq.s32.totalorder %s114, 0
    %s117 = sadd.s32 %s116, 1
    %s118 = scalar_select %p115, %s116, %s117
    %p121 = pneg %p115
    %p122 = scmp.eq.s32.totalorder %s14, 3
    %p123 = por %p121, %p122
    %p124 = scmp.ne.s32.totalorder %s116, %s119
    %p125 = scmp.eq.s32.totalorder %s14, 0
    %p126 = por %p124, %p125
    %p127 = scmp.ne.s32.totalorder %s116, %s119
    %p128 = scmp.eq.s32.totalorder %s19, 3
    %p129 = por %p127, %p128
    %p130 = scmp.ne.s32.totalorder %s119, %s120
    %p131 = scmp.eq.s32.totalorder %s19, 0
    %p132 = por %p130, %p131
    %p133 = scmp.ne.s32.totalorder %s119, %s120
    %p134 = scmp.eq.s32.totalorder %s20, 3
    %p135 = por %p133, %p134
    %p137 = scmp.ne.s32.totalorder %s120, %s136
    %p138 = scmp.eq.s32.totalorder %s20, 0
    %p139 = por %p137, %p138
    %s141 = sadd.s32 %s140, 1
    %p144 = scmp.eq.s32.totalorder %s14, 3
    %p145 = scmp.ne.s32.totalorder %s140, %s142
    %p146 = scmp.eq.s32.totalorder %s14, 0
    %p147 = por %p145, %p146
    %p148 = scmp.ne.s32.totalorder %s140, %s142
    %p149 = scmp.eq.s32.totalorder %s19, 3
    %p150 = por %p148, %p149
    %p151 = scmp.ne.s32.totalorder %s142, %s143
    %p152 = scmp.eq.s32.totalorder %s19, 0
    %p153 = por %p151, %p152
    %p154 = scmp.ne.s32.totalorder %s142, %s143
    %p155 = scmp.eq.s32.totalorder %s20, 3
    %p156 = por %p154, %p155
    %p158 = scmp.ne.s32.totalorder %s143, %s157
    %p159 = scmp.eq.s32.totalorder %s20, 0
    %p160 = por %p158, %p159
    %s162 = sadd.s32 %s161, 1
    %p165 = scmp.eq.s32.totalorder %s14, 3
    %p166 = scmp.ne.s32.totalorder %s161, %s163
    %p167 = scmp.eq.s32.totalorder %s14, 0
    %p168 = por %p166, %p167
    %p169 = scmp.ne.s32.totalorder %s161, %s163
    %p170 = scmp.eq.s32.totalorder %s19, 3
    %p171 = por %p169, %p170
    %p172 = scmp.ne.s32.totalorder %s163, %s164
    %p173 = scmp.eq.s32.totalorder %s19, 0
    %p174 = por %p172, %p173
    %p175 = scmp.ne.s32.totalorder %s163, %s164
    %p176 = scmp.eq.s32.totalorder %s20, 3
    %p177 = por %p175, %p176
    %p179 = scmp.ne.s32.totalorder %s164, %s178
    %p180 = scmp.eq.s32.totalorder %s20, 0
    %p181 = por %p179, %p180
    %s183 = sadd.s32 %s182, 1
    %p186 = scmp.eq.s32.totalorder %s14, 3
    %p187 = scmp.ne.s32.totalorder %s182, %s184
    %p188 = scmp.eq.s32.totalorder %s14, 0
    %p189 = por %p187, %p188
    %p190 = scmp.ne.s32.totalorder %s182, %s184
    %p191 = scmp.eq.s32.totalorder %s19, 3
    %p192 = por %p190, %p191
    %p193 = scmp.ne.s32.totalorder %s184, %s185
    %p194 = scmp.eq.s32.totalorder %s19, 0
    %p195 = por %p193, %p194
    %p196 = scmp.ne.s32.totalorder %s184, %s185
    %p197 = scmp.eq.s32.totalorder %s20, 3
    %p198 = por %p196, %p197
    %p200 = scmp.ne.s32.totalorder %s185, %s199
    %p201 = scmp.eq.s32.totalorder %s20, 0
    %p202 = por %p200, %p201
    %s204 = sadd.s32 %s203, 1
    %p207 = scmp.eq.s32.totalorder %s14, 3
    %p208 = scmp.ne.s32.totalorder %s203, %s205
    %p209 = scmp.eq.s32.totalorder %s14, 0
    %p210 = por %p208, %p209
    %p211 = scmp.ne.s32.totalorder %s203, %s205
    %p212 = scmp.eq.s32.totalorder %s19, 3
    %p213 = por %p211, %p212
    %p214 = scmp.ne.s32.totalorder %s205, %s206
    %p215 = scmp.eq.s32.totalorder %s19, 0
    %p216 = por %p214, %p215
    %p217 = scmp.ne.s32.totalorder %s205, %s206
    %p218 = scmp.eq.s32.totalorder %s20, 3
    %p219 = por %p217, %p218
    %p221 = scmp.ne.s32.totalorder %s206, %s220
    %p222 = scmp.eq.s32.totalorder %s20, 0
    %p223 = por %p221, %p222
    %s224 = ssub.s32 %s21, %s33
    %p225 = scmp.eq.s32.totalorder %s224, 0
    %s227 = sadd.s32 %s226, 1
    %s228 = scalar_select %p225, %s226, %s227
    %p231 = pneg %p225
    %p232 = scmp.eq.s32.totalorder %s14, 3
    %p233 = por %p231, %p232
    %p234 = scmp.ne.s32.totalorder %s226, %s229
    %p235 = scmp.eq.s32.totalorder %s14, 0
    %p236 = por %p234, %p235
    %p237 = scmp.ne.s32.totalorder %s226, %s229
    %p238 = scmp.eq.s32.totalorder %s19, 3
    %p239 = por %p237, %p238
    %p240 = scmp.ne.s32.totalorder %s229, %s230
    %p241 = scmp.eq.s32.totalorder %s19, 0
    %p242 = por %p240, %p241
    %p243 = scmp.ne.s32.totalorder %s229, %s230
    %p244 = scmp.eq.s32.totalorder %s20, 3
    %p245 = por %p243, %p244
    %p247 = scmp.ne.s32.totalorder %s230, %s246
    %p248 = scmp.eq.s32.totalorder %s20, 0
    %p249 = por %p247, %p248
    %p250 = scmp.le.s32.totalorder 1, %s14
    %p251 = scmp.lt.s32.totalorder %s14, 5
    %p252 = pnand %p250, %p251
    %p253 = pneg %p252
    // Predicated region
    $region9: #{forward.5} parent=5 // pred_check
      _
    $region10: #{forward.5} parent=5 // pred_check_branch
      %255 = sbr.rel (%p252) target = $region12
    $region11: #{forward.5} parent=5 // pred_region
      %s256 = ssub.s32 %s14, 1
      // Predicated region
      $region13: #{forward.5} parent=11 // pred_check
        %p257 = pneg %p153
      $region14: #{forward.5} parent=11 // pred_check_branch
        %259 = sbr.rel (%p257) target = $region16
      $region15: #{forward.5} parent=11 // pred_region
        _
      $region16: #{forward.5} parent=11 // pred_fallthru
        _
      // Predicated region
      $region17: #{forward.5} parent=11 // pred_check
        %p260 = pneg %p174
      $region18: #{forward.5} parent=11 // pred_check_branch
        %262 = sbr.rel (%p260) target = $region20
      $region19: #{forward.5} parent=11 // pred_region
        _
      $region20: #{forward.5} parent=11 // pred_fallthru
        _
      // Predicated region
      $region21: #{forward.5} parent=11 // pred_check
        %p263 = pneg %p195
      $region22: #{forward.5} parent=11 // pred_check_branch
        %265 = sbr.rel (%p263) target = $region24
      $region23: #{forward.5} parent=11 // pred_region
        _
      $region24: #{forward.5} parent=11 // pred_fallthru
        _
      // Predicated region
      $region25: #{forward.5} parent=11 // pred_check
        %p266 = pneg %p216
      $region26: #{forward.5} parent=11 // pred_check_branch
        %268 = sbr.rel (%p266) target = $region28
      $region27: #{forward.5} parent=11 // pred_region
        _
      $region28: #{forward.5} parent=11 // pred_fallthru
        _
    $region12: #{forward.5} parent=5 // pred_fallthru
      _
    %p269 = scmp.lt.s32.totalorder %s14, 4
    // Predicated region
    $region29: #{forward.5} parent=5 // pred_check
      %p270 = pneg %p269
    $region30: #{forward.5} parent=5 // pred_check_branch
      %272 = sbr.rel (%p270) target = $region32
    $region31: #{forward.5} parent=5 // pred_region
      // Predicated region
      $region33: #{forward.5} parent=31 // pred_check
        %p273 = pneg %p46
      $region34: #{forward.5} parent=31 // pred_check_branch
        %275 = sbr.rel (%p273) target = $region36
      $region35: #{forward.5} parent=31 // pred_region
        %p276 = scmp.lt.s32.totalorder %s21, 1
        %s277 = scalar_select %p276, %s21, 1
        %s278 = smul.addr %s277, 8
        %s279 = scalar_lea.vmem %s0, %s278
      $region36: #{forward.5} parent=31 // pred_fallthru
        _
      // Predicated region
      $region37: #{forward.5} parent=31 // pred_check
        %p280 = pneg %p72
      $region38: #{forward.5} parent=31 // pred_check_branch
        %282 = sbr.rel (%p280) target = $region40
      $region39: #{forward.5} parent=31 // pred_region
        %s283 = smul.u32 16, %s22
        %p284 = scmp.lt.s32.totalorder %s283, 31
        %s285 = scalar_select %p284, %s283, 31
        %s286 = smul.addr %s285, 3
        %s287 = smul.addr %s286, 4
        %s288 = scalar_lea.vmem %s1, %s287
        %s289 = smul.u32 16, %s22
      $region40: #{forward.5} parent=31 // pred_fallthru
        _
      // Predicated region
      $region41: #{forward.5} parent=31 // pred_check
        %p290 = pneg %p100
      $region42: #{forward.5} parent=31 // pred_check_branch
        %292 = sbr.rel (%p290) target = $region44
      $region43: #{forward.5} parent=31 // pred_region
        %p293 = scmp.lt.s32.totalorder %s21, 1
        %s294 = scalar_select %p293, %s21, 1
        %p295 = scmp.lt.s32.totalorder %s22, 1
        %s296 = scalar_select %p295, %s22, 1
        %s297 = smul.addr %s294, 2
        %s298 = sadd.s32 %s296, %s297
        %s299 = smul.addr %s298, 8
        %s300 = scalar_lea.vmem %s2, %s299
      $region44: #{forward.5} parent=31 // pred_fallthru
        _
      // Predicated region
      $region45: #{forward.5} parent=31 // pred_check
        %p301 = pneg %p126
      $region46: #{forward.5} parent=31 // pred_check_branch
        %303 = sbr.rel (%p301) target = $region48
      $region47: #{forward.5} parent=31 // pred_region
        %p304 = scmp.lt.s32.totalorder %s21, 1
        %s305 = scalar_select %p304, %s21, 1
        %s306 = smul.addr %s305, 8
        %s307 = scalar_lea.vmem %s3, %s306
      $region48: #{forward.5} parent=31 // pred_fallthru
        _
    $region32: #{forward.5} parent=5 // pred_fallthru
      _
    %p308 = scmp.le.s32.totalorder 1, %s14
    %p309 = scmp.lt.s32.totalorder %s14, 5
    %p310 = pnand %p308, %p309
    %p311 = pneg %p310
    // Predicated region
    $region49: #{forward.5} parent=5 // pred_check
      _
    $region50: #{forward.5} parent=5 // pred_check_branch
      %313 = sbr.rel (%p310) target = $region52
    $region51: #{forward.5} parent=5 // pred_region
      %s314 = ssub.s32 %s14, 1
      %p315 = scmp.lt.s32.totalorder %s23, 1
      %s316 = scalar_select %p315, %s23, 1
      %s317 = smul.addr %s316, 8
      %s318 = scalar_lea.vmem %s0, %s317
      %p319 = pneg %p52
      %p320 = pneg %p49
      %s321 = smul.u32 16, %s24
      %p322 = scmp.lt.s32.totalorder %s321, 31
      %s323 = scalar_select %p322, %s321, 31
      %s324 = smul.addr %s323, 3
      %s325 = smul.addr %s324, 4
      %s326 = scalar_lea.vmem %s1, %s325
      %p327 = pneg %p78
      %p328 = pneg %p75
      %p329 = scmp.lt.s32.totalorder %s23, 1
      %s330 = scalar_select %p329, %s23, 1
      %p331 = scmp.lt.s32.totalorder %s24, 1
      %s332 = scalar_select %p331, %s24, 1
      %s333 = smul.addr %s330, 2
      %s334 = sadd.s32 %s332, %s333
      %s335 = smul.addr %s334, 8
      %s336 = scalar_lea.vmem %s2, %s335
      %p337 = pneg %p106
      %p338 = pneg %p103
      %p339 = scmp.lt.s32.totalorder %s23, 1
      %s340 = scalar_select %p339, %s23, 1
      %s341 = smul.addr %s340, 8
      %s342 = scalar_lea.vmem %s3, %s341
      %p343 = pneg %p132
      %p344 = pneg %p129
      %p345 = pneg %p153
      %p346 = pneg %p150
      %p347 = pneg %p174
      %p348 = pneg %p171
      %p349 = pneg %p195
      %p350 = pneg %p192
      %p351 = pneg %p216
      %p352 = pneg %p213
      %p353 = pneg %p242
      %p354 = pneg %p239
      %p355 = scmp.lt.s32.totalorder %s23, 1
      %s356 = scalar_select %p355, %s23, 1
      %s357 = smul.addr %s356, 8
      %s358 = scalar_lea.vmem %s8, %s357
      %p359 = scmp.lt.s32.totalorder %s23, 1
      %s360 = scalar_select %p359, %s23, 1
      %s361 = smul.addr %s360, 8
      %s362 = scalar_lea.vmem %s0, %s361
      %s363 = smul.u32 16, %s24
      %p364 = scmp.lt.s32.totalorder %s363, 31
      %s365 = scalar_select %p364, %s363, 31
      %s366 = smul.addr %s365, 3
      %s367 = smul.addr %s366, 4
      %s368 = scalar_lea.vmem %s1, %s367
      %s369 = smul.u32 16, %s24
      %p370 = scmp.lt.s32.totalorder %s23, 1
      %s371 = scalar_select %p370, %s23, 1
      %p372 = scmp.lt.s32.totalorder %s24, 1
      %s373 = scalar_select %p372, %s24, 1
      %s374 = smul.addr %s371, 2
      %s375 = sadd.s32 %s373, %s374
      %s376 = smul.addr %s375, 8
      %s377 = scalar_lea.vmem %s2, %s376
      %p378 = scmp.lt.s32.totalorder %s23, 1
      %s379 = scalar_select %p378, %s23, 1
      %s380 = smul.addr %s379, 8
      %s381 = scalar_lea.vmem %s3, %s380
      %p382 = scmp.lt.s32.totalorder %s23, 1
      %s383 = scalar_select %p382, %s23, 1
      %s384 = smul.addr %s383, 8
      %s385 = scalar_lea.vmem %s8, %s384
      %p387 = scmp.eq.s32.totalorder %s24, 0
      // Predicated region
      $region53: #{forward.5} parent=51 // pred_check
        %p388 = pneg %p387
      $region54: #{forward.5} parent=51 // pred_check_branch
        %390 = sbr.rel (%p388) target = $region56
      $region55: #{forward.5} parent=51 // pred_region
        %391 = vst [vmem:[#allocation2] sm:$0xff] 0.0
        %392 = vst [vmem:[#allocation2 + $0x8] sm:$0xff] 1e+30
        %393 = vst [vmem:[#allocation2 + $0x10] sm:$0xff] -1e+30
        %394 = vst [vmem:[#allocation2 + $0x18] sm:$0xff] 0.0
      $region56: #{forward.5} parent=51 // pred_fallthru
        _
      %v395 = vld [vmem:[%s368] sm:$0xff]
      %v396 = vld [vmem:[%s368 + $0x8] sm:$0xf]
      %v397 = vld [vmem:[%s368 + $0xc] sm:$0xff]
      %v398 = vld [vmem:[%s368 + $0x14] sm:$0xf]
      %v399 = vld [vmem:[%s368 + $0x18] sm:$0xff]
      %v400 = vld [vmem:[%s368 + $0x20] sm:$0xf]
      %v401 = vld [vmem:[%s368 + $0x24] sm:$0xff]
      %v402 = vld [vmem:[%s368 + $0x2c] sm:$0xf]
      %v403 = vld [vmem:[%s368 + $0x30] sm:$0xff]
      %v404 = vld [vmem:[%s368 + $0x38] sm:$0xf]
      %v405 = vld [vmem:[%s368 + $0x3c] sm:$0xff]
      %v406 = vld [vmem:[%s368 + $0x44] sm:$0xf]
      %v407 = vld [vmem:[%s368 + $0x48] sm:$0xff]
      %v408 = vld [vmem:[%s368 + $0x50] sm:$0xf]
      %v409 = vld [vmem:[%s368 + $0x54] sm:$0xff]
      %v410 = vld [vmem:[%s368 + $0x5c] sm:$0xf]
      %v411 = vld [vmem:[%s368 + $0x60] sm:$0xff]
      %v412 = vld [vmem:[%s368 + $0x68] sm:$0xf]
      %v413 = vld [vmem:[%s368 + $0x6c] sm:$0xff]
      %v414 = vld [vmem:[%s368 + $0x74] sm:$0xf]
      %v415 = vld [vmem:[%s368 + $0x78] sm:$0xff]
      %v416 = vld [vmem:[%s368 + $0x80] sm:$0xf]
      %v417 = vld [vmem:[%s368 + $0x84] sm:$0xff]
      %v418 = vld [vmem:[%s368 + $0x8c] sm:$0xf]
      %v419 = vld [vmem:[%s368 + $0x90] sm:$0xff]
      %v420 = vld [vmem:[%s368 + $0x98] sm:$0xf]
      %v421 = vld [vmem:[%s368 + $0x9c] sm:$0xff]
      %v422 = vld [vmem:[%s368 + $0xa4] sm:$0xf]
      %v423 = vld [vmem:[%s368 + $0xa8] sm:$0xff]
      %v424 = vld [vmem:[%s368 + $0xb0] sm:$0xf]
      %v425 = vld [vmem:[%s368 + $0xb4] sm:$0xff]
      %v426 = vld [vmem:[%s368 + $0xbc] sm:$0xf]
      %v427 = vld [vmem:[%s4] sm:$0xf]
      %v428 = vld [vmem:[%s4 + $0x4] sm:$0xf]
      %v429 = vld [vmem:[%s4 + $0x8] sm:$0xf]
      %v430 = vld [vmem:[%s4 + $0xc] sm:$0xf]
      %v431 = vld [vmem:[%s4 + $0x10] sm:$0xf]
      %v432 = vld [vmem:[%s4 + $0x14] sm:$0xf]
      %v433 = vld [vmem:[%s4 + $0x18] sm:$0xf]
      %v434 = vld [vmem:[%s4 + $0x1c] sm:$0xf]
      %v435 = vld [vmem:[%s4 + $0x20] sm:$0xf]
      %v436 = vld [vmem:[%s4 + $0x24] sm:$0xf]
      %v437 = vld [vmem:[%s4 + $0x28] sm:$0xf]
      %v438 = vld [vmem:[%s4 + $0x2c] sm:$0xf]
      %v439 = vld [vmem:[%s4 + $0x30] sm:$0xf]
      %v440 = vld [vmem:[%s4 + $0x34] sm:$0xf]
      %v441 = vld [vmem:[%s4 + $0x38] sm:$0xf]
      %v442 = vld [vmem:[%s4 + $0x3c] sm:$0xf]
      %v443 = vld [vmem:[%s4 + $0x40] sm:$0xf]
      %v444 = vld [vmem:[%s4 + $0x44] sm:$0xf]
      %v445 = vld [vmem:[%s4 + $0x48] sm:$0xf]
      %v446 = vld [vmem:[%s4 + $0x4c] sm:$0xf]
      %v447 = vld [vmem:[%s4 + $0x50] sm:$0xf]
      %v448 = vld [vmem:[%s4 + $0x54] sm:$0xf]
      %v449 = vld [vmem:[%s4 + $0x58] sm:$0xf]
      %v450 = vld [vmem:[%s4 + $0x5c] sm:$0xf]
      %v451 = vld [vmem:[%s4 + $0x60] sm:$0xf]
      %v452 = vld [vmem:[%s4 + $0x64] sm:$0xf]
      %v453 = vld [vmem:[%s4 + $0x68] sm:$0xf]
      %v454 = vld [vmem:[%s4 + $0x6c] sm:$0xf]
      %v455 = vld [vmem:[%s4 + $0x70] sm:$0xf]
      %v456 = vld [vmem:[%s4 + $0x74] sm:$0xf]
      %v457 = vld [vmem:[%s4 + $0x78] sm:$0xf]
      %v458 = vld [vmem:[%s4 + $0x7c] sm:$0xf]
      %v459 = vld [vmem:[%s4 + $0x80] sm:$0xf]
      %v460 = vld [vmem:[%s4 + $0x84] sm:$0xf]
      %v461 = vld [vmem:[%s4 + $0x88] sm:$0xf]
      %v462 = vld [vmem:[%s4 + $0x8c] sm:$0xf]
      %v463 = vld [vmem:[%s4 + $0x90] sm:$0xf]
      %v464 = vld [vmem:[%s4 + $0x94] sm:$0xf]
      %v465 = vld [vmem:[%s4 + $0x98] sm:$0xf]
      %v466 = vld [vmem:[%s4 + $0x9c] sm:$0xf]
      %v467 = vld [vmem:[%s4 + $0xa0] sm:$0xf]
      %v468 = vld [vmem:[%s4 + $0xa4] sm:$0xf]
      %v469 = vld [vmem:[%s4 + $0xa8] sm:$0xf]
      %v470 = vld [vmem:[%s4 + $0xac] sm:$0xf]
      %v471 = vld [vmem:[%s4 + $0xb0] sm:$0xf]
      %v472 = vld [vmem:[%s4 + $0xb4] sm:$0xf]
      %v473 = vld [vmem:[%s4 + $0xb8] sm:$0xf]
      %v474 = vld [vmem:[%s4 + $0xbc] sm:$0xf]
      %v475 = vld [vmem:[%s5] sm:$0x1]
      %v477 = vlaneseq
      %v478 = vshrl.u32 %v477, 7
      %v479 = vsub.s32 0, %v478
      %v480 = vrot.slane %v475, %v479
      %v514 = vunpack.c.l.b16 %v395
      %v515 = vunpack.c.h.b16 %v395
      %v516 = vunpack.c.l.b16 %v396
      %v517 = vunpack.c.l.b16 %v397
      %v518 = vunpack.c.h.b16 %v397
      %v519 = vunpack.c.l.b16 %v398
      %v520 = vunpack.c.l.b16 %v399
      %v521 = vunpack.c.h.b16 %v399
      %v522 = vunpack.c.l.b16 %v400
      %v523 = vunpack.c.l.b16 %v401
      %v524 = vunpack.c.h.b16 %v401
      %v525 = vunpack.c.l.b16 %v402
      %v526 = vunpack.c.l.b16 %v403
      %v527 = vunpack.c.h.b16 %v403
      %v528 = vunpack.c.l.b16 %v404
      %v529 = vunpack.c.l.b16 %v405
      %v530 = vunpack.c.h.b16 %v405
      %v531 = vunpack.c.l.b16 %v406
      %v532 = vunpack.c.l.b16 %v407
      %v533 = vunpack.c.h.b16 %v407
      %v534 = vunpack.c.l.b16 %v408
      %v535 = vunpack.c.l.b16 %v409
      %v536 = vunpack.c.h.b16 %v409
      %v537 = vunpack.c.l.b16 %v410
      %v538 = vunpack.c.l.b16 %v411
      %v539 = vunpack.c.h.b16 %v411
      %v540 = vunpack.c.l.b16 %v412
      %v541 = vunpack.c.l.b16 %v413
      %v542 = vunpack.c.h.b16 %v413
      %v543 = vunpack.c.l.b16 %v414
      %v544 = vunpack.c.l.b16 %v415
      %v545 = vunpack.c.h.b16 %v415
      %v546 = vunpack.c.l.b16 %v416
      %v547 = vunpack.c.l.b16 %v417
      %v548 = vunpack.c.h.b16 %v417
      %v549 = vunpack.c.l.b16 %v418
      %v550 = vunpack.c.l.b16 %v419
      %v551 = vunpack.c.h.b16 %v419
      %v552 = vunpack.c.l.b16 %v420
      %v553 = vunpack.c.l.b16 %v421
      %v554 = vunpack.c.h.b16 %v421
      %v555 = vunpack.c.l.b16 %v422
      %v556 = vunpack.c.l.b16 %v423
      %v557 = vunpack.c.h.b16 %v423
      %v558 = vunpack.c.l.b16 %v424
      %v559 = vunpack.c.l.b16 %v425
      %v560 = vunpack.c.h.b16 %v425
      %v561 = vunpack.c.l.b16 %v426
      %v562 = vpack.c.b16 %v517, %v514
      %v563 = vpack.c.b16 %v518, %v515
      %v564 = vpack.c.b16 %v519, %v516
      %v565 = vpack.c.b16 %v523, %v520
      %v566 = vpack.c.b16 %v524, %v521
      %v567 = vpack.c.b16 %v525, %v522
      %v568 = vpack.c.b16 %v529, %v526
      %v569 = vpack.c.b16 %v530, %v527
      %v570 = vpack.c.b16 %v531, %v528
      %v571 = vpack.c.b16 %v535, %v532
      %v572 = vpack.c.b16 %v536, %v533
      %v573 = vpack.c.b16 %v537, %v534
      %v574 = vpack.c.b16 %v541, %v538
      %v575 = vpack.c.b16 %v542, %v539
      %v576 = vpack.c.b16 %v543, %v540
      %v577 = vpack.c.b16 %v547, %v544
      %v578 = vpack.c.b16 %v548, %v545
      %v579 = vpack.c.b16 %v549, %v546
      %v580 = vpack.c.b16 %v553, %v550
      %v581 = vpack.c.b16 %v554, %v551
      %v582 = vpack.c.b16 %v555, %v552
      %v583 = vpack.c.b16 %v559, %v556
      %v584 = vpack.c.b16 %v560, %v557
      %v585 = vpack.c.b16 %v561, %v558
      %v658 = vunpack.c.l.b16 %v427
      %v659 = vunpack.c.l.b16 %v428
      %v660 = vunpack.c.l.b16 %v429
      %v661 = vunpack.c.l.b16 %v430
      %v662 = vunpack.c.l.b16 %v431
      %v663 = vunpack.c.l.b16 %v432
      %v664 = vunpack.c.l.b16 %v433
      %v665 = vunpack.c.l.b16 %v434
      %v666 = vunpack.c.l.b16 %v435
      %v667 = vunpack.c.l.b16 %v436
      %v668 = vunpack.c.l.b16 %v437
      %v669 = vunpack.c.l.b16 %v438
      %v670 = vunpack.c.l.b16 %v439
      %v671 = vunpack.c.l.b16 %v440
      %v672 = vunpack.c.l.b16 %v441
      %v673 = vunpack.c.l.b16 %v442
      %v674 = vunpack.c.l.b16 %v443
      %v675 = vunpack.c.l.b16 %v444
      %v676 = vunpack.c.l.b16 %v445
      %v677 = vunpack.c.l.b16 %v446
      %v678 = vunpack.c.l.b16 %v447
      %v679 = vunpack.c.l.b16 %v448
      %v680 = vunpack.c.l.b16 %v449
      %v681 = vunpack.c.l.b16 %v450
      %v682 = vunpack.c.l.b16 %v451
      %v683 = vunpack.c.l.b16 %v452
      %v684 = vunpack.c.l.b16 %v453
      %v685 = vunpack.c.l.b16 %v454
      %v686 = vunpack.c.l.b16 %v455
      %v687 = vunpack.c.l.b16 %v456
      %v688 = vunpack.c.l.b16 %v457
      %v689 = vunpack.c.l.b16 %v458
      %v690 = vunpack.c.l.b16 %v459
      %v691 = vunpack.c.l.b16 %v460
      %v692 = vunpack.c.l.b16 %v461
      %v693 = vunpack.c.l.b16 %v462
      %v694 = vunpack.c.l.b16 %v463
      %v695 = vunpack.c.l.b16 %v464
      %v696 = vunpack.c.l.b16 %v465
      %v697 = vunpack.c.l.b16 %v466
      %v698 = vunpack.c.l.b16 %v467
      %v699 = vunpack.c.l.b16 %v468
      %v700 = vunpack.c.l.b16 %v469
      %v701 = vunpack.c.l.b16 %v470
      %v702 = vunpack.c.l.b16 %v471
      %v703 = vunpack.c.l.b16 %v472
      %v704 = vunpack.c.l.b16 %v473
      %v705 = vunpack.c.l.b16 %v474
      %v706 = vpack.c.b16 %v659, %v658
      %v707 = vpack.c.b16 %v661, %v660
      %v708 = vpack.c.b16 %v663, %v662
      %v709 = vpack.c.b16 %v665, %v664
      %v710 = vpack.c.b16 %v667, %v666
      %v711 = vpack.c.b16 %v669, %v668
      %v712 = vpack.c.b16 %v671, %v670
      %v713 = vpack.c.b16 %v673, %v672
      %v714 = vpack.c.b16 %v675, %v674
      %v715 = vpack.c.b16 %v677, %v676
      %v716 = vpack.c.b16 %v679, %v678
      %v717 = vpack.c.b16 %v681, %v680
      %v718 = vpack.c.b16 %v683, %v682
      %v719 = vpack.c.b16 %v685, %v684
      %v720 = vpack.c.b16 %v687, %v686
      %v721 = vpack.c.b16 %v689, %v688
      %v722 = vpack.c.b16 %v691, %v690
      %v723 = vpack.c.b16 %v693, %v692
      %v724 = vpack.c.b16 %v695, %v694
      %v725 = vpack.c.b16 %v697, %v696
      %v726 = vpack.c.b16 %v699, %v698
      %v727 = vpack.c.b16 %v701, %v700
      %v728 = vpack.c.b16 %v703, %v702
      %v729 = vpack.c.b16 %v705, %v704
      %754 = vmatprep.subr.bf16.mxu0 0
      %755 = vmatpush1.bf16.msra.mxu0 %v706
      %756 = vmatprep.subr.bf16.mxu0 0
      %757 = vmatpush1.bf16.msra.mxu0 %v707
      %758 = vmatprep.subr.bf16.mxu0 0
      %759 = vmatpush1.bf16.msra.mxu0 %v708
      %760 = vmatprep.subr.bf16.mxu0 0
      %761 = vmatpush1.bf16.msra.mxu0 %v709
      %762 = vmatprep.subr.bf16.mxu0 0
      %763 = vmatpush1.bf16.msra.mxu0 %v710
      %764 = vmatprep.subr.bf16.mxu0 0
      %765 = vmatpush1.bf16.msra.mxu0 %v711
      %766 = vmatprep.subr.bf16.mxu0 0
      %767 = vmatpush1.bf16.msra.mxu0 %v712
      %768 = vmatprep.subr.bf16.mxu0 0
      %769 = vmatpush1.bf16.msra.mxu0 %v713
      %770 = vmatprep.subr.bf16.mxu0 0
      %771 = vmatpush1.bf16.msra.mxu0 %v714
      %772 = vmatprep.subr.bf16.mxu0 0
      %773 = vmatpush1.bf16.msra.mxu0 %v715
      %774 = vmatprep.subr.bf16.mxu0 0
      %775 = vmatpush1.bf16.msra.mxu0 %v716
      %776 = vmatprep.subr.bf16.mxu0 0
      %777 = vmatpush1.bf16.msra.mxu0 %v717
      %778 = vmatprep.subr.bf16.mxu0 0
      %779 = vmatpush1.bf16.msra.mxu0 %v718
      %780 = vmatprep.subr.bf16.mxu0 0
      %781 = vmatpush1.bf16.msra.mxu0 %v719
      %782 = vmatprep.subr.bf16.mxu0 0
      %783 = vmatpush1.bf16.msra.mxu0 %v720
      %784 = vmatprep.subr.bf16.mxu0 0
      %785 = vmatpush1.bf16.msra.mxu0 %v721
      %786 = vmatprep.mubr.bf16.mxu0 %v563
      %787 = vmatmul.mubr.bf16.gmra.mrb[0].mxu0 %v562
      %v788 = vpop.f32.mrb[0].mxu0
      %v789 = vadd.f32 %v480, %v788
      %v790 = vpop.f32.mrb[0].mxu0
      %v791 = vpop.f32.mrb[0].mxu0
      %v792 = vadd.f32 %v480, %v791
      %v793 = vpop.f32.mrb[0].mxu0
      %794 = vmatprep.mubr.bf16.mxu0 %v566
      %795 = vmatmul.mubr.bf16.gmra.mrb[0].mxu0 %v565
      %v796 = vpop.f32.mrb[0].mxu0
      %v797 = vadd.f32 %v480, %v796
      %v798 = vpop.f32.mrb[0].mxu0
      %v799 = vpop.f32.mrb[0].mxu0
      %v800 = vadd.f32 %v480, %v799
      %v801 = vpop.f32.mrb[0].mxu0
      %802 = vmatprep.mubr.bf16.mxu0 %v569
      %803 = vmatmul.mubr.bf16.gmra.mrb[0].mxu0 %v568
      %v804 = vpop.f32.mrb[0].mxu0
      %v805 = vadd.f32 %v480, %v804
      %v806 = vpop.f32.mrb[0].mxu0
      %v807 = vpop.f32.mrb[0].mxu0
      %v808 = vadd.f32 %v480, %v807
      %v809 = vpop.f32.mrb[0].mxu0
      %810 = vmatprep.mubr.bf16.mxu0 %v572
      %811 = vmatmul.mubr.bf16.gmra.mrb[0].mxu0 %v571
      %v812 = vpop.f32.mrb[0].mxu0
      %v813 = vadd.f32 %v480, %v812
      %v814 = vpop.f32.mrb[0].mxu0
      %v815 = vpop.f32.mrb[0].mxu0
      %v816 = vadd.f32 %v480, %v815
      %v817 = vpop.f32.mrb[0].mxu0
      %818 = vmatprep.mubr.bf16.mxu0 %v575
      %819 = vmatmul.mubr.bf16.gmra.mrb[0].mxu0 %v574
      %v820 = vpop.f32.mrb[0].mxu0
      %v821 = vadd.f32 %v480, %v820
      %v822 = vpop.f32.mrb[0].mxu0
      %v823 = vpop.f32.mrb[0].mxu0
      %v824 = vadd.f32 %v480, %v823
      %v825 = vpop.f32.mrb[0].mxu0
      %826 = vmatprep.mubr.bf16.mxu0 %v578
      %827 = vmatmul.mubr.bf16.gmra.mrb[0].mxu0 %v577
      %v828 = vpop.f32.mrb[0].mxu0
      %v829 = vadd.f32 %v480, %v828
      %v830 = vpop.f32.mrb[0].mxu0
      %v831 = vpop.f32.mrb[0].mxu0
      %v832 = vadd.f32 %v480, %v831
      %v833 = vpop.f32.mrb[0].mxu0
      %834 = vmatprep.mubr.bf16.mxu0 %v581
      %835 = vmatmul.mubr.bf16.gmra.mrb[0].mxu0 %v580
      %v836 = vpop.f32.mrb[0].mxu0
      %v837 = vadd.f32 %v480, %v836
      %v838 = vpop.f32.mrb[0].mxu0
      %v839 = vpop.f32.mrb[0].mxu0
      %v840 = vadd.f32 %v480, %v839
      %v841 = vpop.f32.mrb[0].mxu0
      %842 = vmatprep.mubr.bf16.mxu0 %v584
      %843 = vmatmul.mubr.bf16.gmra.mrb[0].mxu0 %v583
      %v844 = vpop.f32.mrb[0].mxu0
      %v845 = vadd.f32 %v480, %v844
      %v846 = vpop.f32.mrb[0].mxu0
      %v847 = vpop.f32.mrb[0].mxu0
      %v848 = vadd.f32 %v480, %v847
      %v849 = vpop.f32.mrb[0].mxu0
      %850 = vdwg.mxu0
      %851 = vmatprep.subr.bf16.mxu0 0
      %852 = vmatpush1.bf16.msra.mxu0 %v722
      %853 = vmatprep.subr.bf16.mxu0 0
      %854 = vmatpush1.bf16.msra.mxu0 %v723
      %855 = vmatprep.subr.bf16.mxu0 0
      %856 = vmatpush1.bf16.msra.mxu0 %v724
      %857 = vmatprep.subr.bf16.mxu0 0
      %858 = vmatpush1.bf16.msra.mxu0 %v725
      %859 = vmatprep.subr.bf16.mxu0 0
      %860 = vmatpush1.bf16.msra.mxu0 %v726
      %861 = vmatprep.subr.bf16.mxu0 0
      %862 = vmatpush1.bf16.msra.mxu0 %v727
      %863 = vmatprep.subr.bf16.mxu0 0
      %864 = vmatpush1.bf16.msra.mxu0 %v728
      %865 = vmatprep.subr.bf16.mxu0 0
      %866 = vmatpush1.bf16.msra.mxu0 %v729
      %867 = vmatprep.subr.bf16.mxu0 0
      %868 = vmatpush1.bf16.msra.mxu0 0
      %869 = vmatprep.subr.bf16.mxu0 0
      %870 = vmatpush1.bf16.msra.mxu0 0
      %871 = vmatprep.subr.bf16.mxu0 0
      %872 = vmatpush1.bf16.msra.mxu0 0
      %873 = vmatprep.subr.bf16.mxu0 0
      %874 = vmatpush1.bf16.msra.mxu0 0
      %875 = vmatprep.subr.bf16.mxu0 0
      %876 = vmatpush1.bf16.msra.mxu0 0
      %877 = vmatprep.subr.bf16.mxu0 0
      %878 = vmatpush1.bf16.msra.mxu0 0
      %879 = vmatprep.subr.bf16.mxu0 0
      %880 = vmatpush1.bf16.msra.mxu0 0
      %881 = vmatprep.subr.bf16.mxu0 0
      %882 = vmatpush1.bf16.msra.mxu0 0
      %883 = vmatprep.mubr.bf16.mxu0 0
      %884 = vmatmul.mubr.bf16.gmra.mrb[0].mxu0 %v564
      %v885 = vpop.f32.mrb[0].mxu0
      %v886 = vadd.f32 %v789, %v885
      %v887 = vpop.f32.mrb[0].mxu0
      %v888 = vpop.f32.mrb[0].mxu0
      %v889 = vadd.f32 %v792, %v888
      %v890 = vpop.f32.mrb[0].mxu0
      %891 = vmatprep.mubr.bf16.mxu0 0
      %892 = vmatmul.mubr.bf16.gmra.mrb[0].mxu0 %v567
      %v893 = vpop.f32.mrb[0].mxu0
      %v894 = vadd.f32 %v797, %v893
      %v895 = vpop.f32.mrb[0].mxu0
      %v896 = vpop.f32.mrb[0].mxu0
      %v897 = vadd.f32 %v800, %v896
      %v898 = vpop.f32.mrb[0].mxu0
      %899 = vmatprep.mubr.bf16.mxu0 0
      %900 = vmatmul.mubr.bf16.gmra.mrb[0].mxu0 %v570
      %v901 = vpop.f32.mrb[0].mxu0
      %v902 = vadd.f32 %v805, %v901
      %v903 = vpop.f32.mrb[0].mxu0
      %v904 = vpop.f32.mrb[0].mxu0
      %v905 = vadd.f32 %v808, %v904
      %v906 = vpop.f32.mrb[0].mxu0
      %907 = vmatprep.mubr.bf16.mxu0 0
      %908 = vmatmul.mubr.bf16.gmra.mrb[0].mxu0 %v573
      %v909 = vpop.f32.mrb[0].mxu0
      %v910 = vadd.f32 %v813, %v909
      %v911 = vpop.f32.mrb[0].mxu0
      %v912 = vpop.f32.mrb[0].mxu0
      %v913 = vadd.f32 %v816, %v912
      %v914 = vpop.f32.mrb[0].mxu0
      %915 = vmatprep.mubr.bf16.mxu0 0
      %916 = vmatmul.mubr.bf16.gmra.mrb[0].mxu0 %v576
      %v917 = vpop.f32.mrb[0].mxu0
      %v918 = vadd.f32 %v821, %v917
      %v919 = vpop.f32.mrb[0].mxu0
      %v920 = vpop.f32.mrb[0].mxu0
      %v921 = vadd.f32 %v824, %v920
      %v922 = vpop.f32.mrb[0].mxu0
      %923 = vmatprep.mubr.bf16.mxu0 0
      %924 = vmatmul.mubr.bf16.gmra.mrb[0].mxu0 %v579
      %v925 = vpop.f32.mrb[0].mxu0
      %v926 = vadd.f32 %v829, %v925
      %v927 = vpop.f32.mrb[0].mxu0
      %v928 = vpop.f32.mrb[0].mxu0
      %v929 = vadd.f32 %v832, %v928
      %v930 = vpop.f32.mrb[0].mxu0
      %931 = vmatprep.mubr.bf16.mxu0 0
      %932 = vmatmul.mubr.bf16.gmra.mrb[0].mxu0 %v582
      %v933 = vpop.f32.mrb[0].mxu0
      %v934 = vadd.f32 %v837, %v933
      %v935 = vpop.f32.mrb[0].mxu0
      %v936 = vpop.f32.mrb[0].mxu0
      %v937 = vadd.f32 %v840, %v936
      %v938 = vpop.f32.mrb[0].mxu0
      %939 = vmatprep.mubr.bf16.mxu0 0
      %940 = vmatmul.mubr.bf16.gmra.mrb[0].mxu0 %v585
      %v941 = vpop.f32.mrb[0].mxu0
      %v942 = vadd.f32 %v845, %v941
      %v943 = vpop.f32.mrb[0].mxu0
      %v944 = vpop.f32.mrb[0].mxu0
      %v945 = vadd.f32 %v848, %v944
      %v946 = vpop.f32.mrb[0].mxu0
      %947 = vdwg.mxu0
      %v948 = vld [vmem:[%s377] sm:$0xff]
      %v949 = vld [vmem:[#allocation2] sm:$0xff]
      %950 = vmatprep.subr.mxu0 0.0
      %951 = vmatpush1.msra.mxu0 %v886
      %952 = vmatprep.subr.mxu0 0.0
      %953 = vmatpush1.msra.mxu0 %v889
      %954 = vmatprep.subr.mxu0 0.0
      %955 = vmatpush1.msra.mxu0 %v894
      %956 = vmatprep.subr.mxu0 0.0
      %957 = vmatpush1.msra.mxu0 %v897
      %958 = vmatprep.subr.mxu0 0.0
      %959 = vmatpush1.msra.mxu0 %v902
      %960 = vmatprep.subr.mxu0 0.0
      %961 = vmatpush1.msra.mxu0 %v905
      %962 = vmatprep.subr.mxu0 0.0
      %963 = vmatpush1.msra.mxu0 %v910
      %964 = vmatprep.subr.mxu0 0.0
      %965 = vmatpush1.msra.mxu0 %v913
      %966 = vmatprep.subr.mxu0 0.0
      %967 = vmatpush1.msra.mxu0 %v918
      %968 = vmatprep.subr.mxu0 0.0
      %969 = vmatpush1.msra.mxu0 %v921
      %970 = vmatprep.subr.mxu0 0.0
      %971 = vmatpush1.msra.mxu0 %v926
      %972 = vmatprep.subr.mxu0 0.0
      %973 = vmatpush1.msra.mxu0 %v929
      %974 = vmatprep.subr.mxu0 0.0
      %975 = vmatpush1.msra.mxu0 %v934
      %976 = vmatprep.subr.mxu0 0.0
      %977 = vmatpush1.msra.mxu0 %v937
      %978 = vmatprep.subr.mxu0 0.0
      %979 = vmatpush1.msra.mxu0 %v942
      %980 = vmatprep.subr.mxu0 0.0
      %981 = vmatpush1.msra.mxu0 %v945
      %982 = vmatprep.subr.mxu0 0.0
      %983 = vmatpush1.msra.mxu0 0.0
      %984 = vmatprep.subr.mxu0 0.0
      %985 = vmatpush1.msra.mxu0 0.0
      %986 = vmatprep.subr.mxu0 0.0
      %987 = vmatpush1.msra.mxu0 0.0
      %988 = vmatprep.subr.mxu0 0.0
      %989 = vmatpush1.msra.mxu0 0.0
      %990 = vmatprep.subr.mxu0 0.0
      %991 = vmatpush1.msra.mxu0 0.0
      %992 = vmatprep.subr.mxu0 0.0
      %993 = vmatpush1.msra.mxu0 0.0
      %994 = vmatprep.subr.mxu0 0.0
      %995 = vmatpush1.msra.mxu0 0.0
      %996 = vmatprep.subr.mxu0 0.0
      %997 = vmatpush1.msra.mxu0 0.0
      %998 = vmatprep.subr.mxu0 0.0
      %999 = vmatpush1.msra.mxu0 0.0
      %1000 = vmatprep.subr.mxu0 0.0
      %1001 = vmatpush1.msra.mxu0 0.0
      %1002 = vmatprep.subr.mxu0 0.0
      %1003 = vmatpush1.msra.mxu0 0.0
      %1004 = vmatprep.subr.mxu0 0.0
      %1005 = vmatpush1.msra.mxu0 0.0
      %1006 = vmatprep.subr.mxu0 0.0
      %1007 = vmatpush1.msra.mxu0 0.0
      %1008 = vmatprep.subr.mxu0 0.0
      %1009 = vmatpush1.msra.mxu0 0.0
      %1010 = vmatprep.subr.mxu0 0.0
      %1011 = vmatpush1.msra.mxu0 0.0
      %1012 = vmatprep.subr.mxu0 0.0
      %1013 = vmatpush1.msra.mxu0 0.0
      %1014 = vmatprep.mubr.f32.mxu0 0.0
      %1015 = vmatmul.mubr.f32.gmra.mrb[0].mxu0 %v948
      %v1016 = vpop.f32.mrb[0].mxu0
      %v1017 = vadd.f32 0.0, %v1016
      %v1018 = vpop.f32.mrb[0].mxu0
      %1019 = vdwg.mxu0
      %v1020 = vadd.f32 %v949, %v1017
      %1021 = vst [vmem:[#allocation2] sm:$0xff] %v1020
      %v1022 = vld [vmem:[#allocation2 + $0x18] sm:$0xff]
      %v1023 = vmul.f32 %v886, %v886
      %v1024 = vmul.f32 %v889, %v889
      %v1025 = vmul.f32 %v894, %v894
      %v1026 = vmul.f32 %v897, %v897
      %v1027 = vmul.f32 %v902, %v902
      %v1028 = vmul.f32 %v905, %v905
      %v1029 = vmul.f32 %v910, %v910
      %v1030 = vmul.f32 %v913, %v913
      %v1031 = vmul.f32 %v918, %v918
      %v1032 = vmul.f32 %v921, %v921
      %v1033 = vmul.f32 %v926, %v926
      %v1034 = vmul.f32 %v929, %v929
      %v1035 = vmul.f32 %v934, %v934
      %v1036 = vmul.f32 %v937, %v937
      %v1037 = vmul.f32 %v942, %v942
      %v1038 = vmul.f32 %v945, %v945
      %1039 = vmatprep.subr.mxu0 0.0
      %1040 = vmatpush1.msra.mxu0 %v1023
      %1041 = vmatprep.subr.mxu0 0.0
      %1042 = vmatpush1.msra.mxu0 %v1024
      %1043 = vmatprep.subr.mxu0 0.0
      %1044 = vmatpush1.msra.mxu0 %v1025
      %1045 = vmatprep.subr.mxu0 0.0
      %1046 = vmatpush1.msra.mxu0 %v1026
      %1047 = vmatprep.subr.mxu0 0.0
      %1048 = vmatpush1.msra.mxu0 %v1027
      %1049 = vmatprep.subr.mxu0 0.0
      %1050 = vmatpush1.msra.mxu0 %v1028
      %1051 = vmatprep.subr.mxu0 0.0
      %1052 = vmatpush1.msra.mxu0 %v1029
      %1053 = vmatprep.subr.mxu0 0.0
      %1054 = vmatpush1.msra.mxu0 %v1030
      %1055 = vmatprep.subr.mxu0 0.0
      %1056 = vmatpush1.msra.mxu0 %v1031
      %1057 = vmatprep.subr.mxu0 0.0
      %1058 = vmatpush1.msra.mxu0 %v1032
      %1059 = vmatprep.subr.mxu0 0.0
      %1060 = vmatpush1.msra.mxu0 %v1033
      %1061 = vmatprep.subr.mxu0 0.0
      %1062 = vmatpush1.msra.mxu0 %v1034
      %1063 = vmatprep.subr.mxu0 0.0
      %1064 = vmatpush1.msra.mxu0 %v1035
      %1065 = vmatprep.subr.mxu0 0.0
      %1066 = vmatpush1.msra.mxu0 %v1036
      %1067 = vmatprep.subr.mxu0 0.0
      %1068 = vmatpush1.msra.mxu0 %v1037
      %1069 = vmatprep.subr.mxu0 0.0
      %1070 = vmatpush1.msra.mxu0 %v1038
      %1071 = vmatprep.subr.mxu0 0.0
      %1072 = vmatpush1.msra.mxu0 0.0
      %1073 = vmatprep.subr.mxu0 0.0
      %1074 = vmatpush1.msra.mxu0 0.0
      %1075 = vmatprep.subr.mxu0 0.0
      %1076 = vmatpush1.msra.mxu0 0.0
      %1077 = vmatprep.subr.mxu0 0.0
      %1078 = vmatpush1.msra.mxu0 0.0
      %1079 = vmatprep.subr.mxu0 0.0
      %1080 = vmatpush1.msra.mxu0 0.0
      %1081 = vmatprep.subr.mxu0 0.0
      %1082 = vmatpush1.msra.mxu0 0.0
      %1083 = vmatprep.subr.mxu0 0.0
      %1084 = vmatpush1.msra.mxu0 0.0
      %1085 = vmatprep.subr.mxu0 0.0
      %1086 = vmatpush1.msra.mxu0 0.0
      %1087 = vmatprep.subr.mxu0 0.0
      %1088 = vmatpush1.msra.mxu0 0.0
      %1089 = vmatprep.subr.mxu0 0.0
      %1090 = vmatpush1.msra.mxu0 0.0
      %1091 = vmatprep.subr.mxu0 0.0
      %1092 = vmatpush1.msra.mxu0 0.0
      %1093 = vmatprep.subr.mxu0 0.0
      %1094 = vmatpush1.msra.mxu0 0.0
      %1095 = vmatprep.subr.mxu0 0.0
      %1096 = vmatpush1.msra.mxu0 0.0
      %1097 = vmatprep.subr.mxu0 0.0
      %1098 = vmatpush1.msra.mxu0 0.0
      %1099 = vmatprep.subr.mxu0 0.0
      %1100 = vmatpush1.msra.mxu0 0.0
      %1101 = vmatprep.subr.mxu0 0.0
      %1102 = vmatpush1.msra.mxu0 0.0
      %1103 = vmatprep.mubr.f32.mxu0 0.0
      %1104 = vmatmul.mubr.f32.gmra.mrb[0].mxu0 %v948
      %v1105 = vpop.f32.mrb[0].mxu0
      %v1106 = vadd.f32 0.0, %v1105
      %v1107 = vpop.f32.mrb[0].mxu0
      %1108 = vdwg.mxu0
      %v1109 = vadd.f32 %v1022, %v1106
      %1110 = vst [vmem:[#allocation2 + $0x18] sm:$0xff] %v1109
      %v1111 = vsub.f32 1.0, %v948
      %v1112 = vlaneseq
      %v1113 = vshrl.u32 %v1112, 7
      %v1114 = vsub.s32 0, %v1113
      %v1115 = vrot.slane %v1111, %v1114
      %1117 = vbcast.lane.b32.xlu0 %v1115, 256
      %v1118 = vpop.permute.xlu0 %1117
      %s1120 = sor.u32 256, 8
      %1121 = vbcast.lane.b32.xlu0 %v1115, %s1120
      %v1122 = vpop.permute.xlu0 %1121
      %s1124 = sor.u32 256, 16
      %1125 = vbcast.lane.b32.xlu0 %v1115, %s1124
      %v1126 = vpop.permute.xlu0 %1125
      %s1128 = sor.u32 256, 24
      %1129 = vbcast.lane.b32.xlu0 %v1115, %s1128
      %v1130 = vpop.permute.xlu0 %1129
      %s1132 = sor.u32 256, 32
      %1133 = vbcast.lane.b32.xlu0 %v1115, %s1132
      %v1134 = vpop.permute.xlu0 %1133
      %s1136 = sor.u32 256, 40
      %1137 = vbcast.lane.b32.xlu0 %v1115, %s1136
      %v1138 = vpop.permute.xlu0 %1137
      %s1140 = sor.u32 256, 48
      %1141 = vbcast.lane.b32.xlu0 %v1115, %s1140
      %v1142 = vpop.permute.xlu0 %1141
      %s1144 = sor.u32 256, 56
      %1145 = vbcast.lane.b32.xlu0 %v1115, %s1144
      %v1146 = vpop.permute.xlu0 %1145
      %s1148 = sor.u32 256, 64
      %1149 = vbcast.lane.b32.xlu0 %v1115, %s1148
      %v1150 = vpop.permute.xlu0 %1149
      %s1152 = sor.u32 256, 72
      %1153 = vbcast.lane.b32.xlu0 %v1115, %s1152
      %v1154 = vpop.permute.xlu0 %1153
      %s1156 = sor.u32 256, 80
      %1157 = vbcast.lane.b32.xlu0 %v1115, %s1156
      %v1158 = vpop.permute.xlu0 %1157
      %s1160 = sor.u32 256, 88
      %1161 = vbcast.lane.b32.xlu0 %v1115, %s1160
      %v1162 = vpop.permute.xlu0 %1161
      %s1164 = sor.u32 256, 96
      %1165 = vbcast.lane.b32.xlu0 %v1115, %s1164
      %v1166 = vpop.permute.xlu0 %1165
      %s1168 = sor.u32 256, 104
      %1169 = vbcast.lane.b32.xlu0 %v1115, %s1168
      %v1170 = vpop.permute.xlu0 %1169
      %s1172 = sor.u32 256, 112
      %1173 = vbcast.lane.b32.xlu0 %v1115, %s1172
      %v1174 = vpop.permute.xlu0 %1173
      %s1176 = sor.u32 256, 120
      %1177 = vbcast.lane.b32.xlu0 %v1115, %s1176
      %v1178 = vpop.permute.xlu0 %1177
      %v1179 = vlaneseq
      %v1180 = vshrl.u32 %v1179, 7
      %v1181 = vsub.s32 1, %v1180
      %v1182 = vrot.slane %v1111, %v1181
      %1184 = vbcast.lane.b32.xlu0 %v1182, 256
      %v1185 = vpop.permute.xlu0 %1184
      %s1187 = sor.u32 256, 8
      %1188 = vbcast.lane.b32.xlu0 %v1182, %s1187
      %v1189 = vpop.permute.xlu0 %1188
      %s1191 = sor.u32 256, 16
      %1192 = vbcast.lane.b32.xlu0 %v1182, %s1191
      %v1193 = vpop.permute.xlu0 %1192
      %s1195 = sor.u32 256, 24
      %1196 = vbcast.lane.b32.xlu0 %v1182, %s1195
      %v1197 = vpop.permute.xlu0 %1196
      %s1199 = sor.u32 256, 32
      %1200 = vbcast.lane.b32.xlu0 %v1182, %s1199
      %v1201 = vpop.permute.xlu0 %1200
      %s1203 = sor.u32 256, 40
      %1204 = vbcast.lane.b32.xlu0 %v1182, %s1203
      %v1205 = vpop.permute.xlu0 %1204
      %s1207 = sor.u32 256, 48
      %1208 = vbcast.lane.b32.xlu0 %v1182, %s1207
      %v1209 = vpop.permute.xlu0 %1208
      %s1211 = sor.u32 256, 56
      %1212 = vbcast.lane.b32.xlu0 %v1182, %s1211
      %v1213 = vpop.permute.xlu0 %1212
      %s1215 = sor.u32 256, 64
      %1216 = vbcast.lane.b32.xlu0 %v1182, %s1215
      %v1217 = vpop.permute.xlu0 %1216
      %s1219 = sor.u32 256, 72
      %1220 = vbcast.lane.b32.xlu0 %v1182, %s1219
      %v1221 = vpop.permute.xlu0 %1220
      %s1223 = sor.u32 256, 80
      %1224 = vbcast.lane.b32.xlu0 %v1182, %s1223
      %v1225 = vpop.permute.xlu0 %1224
      %s1227 = sor.u32 256, 88
      %1228 = vbcast.lane.b32.xlu0 %v1182, %s1227
      %v1229 = vpop.permute.xlu0 %1228
      %s1231 = sor.u32 256, 96
      %1232 = vbcast.lane.b32.xlu0 %v1182, %s1231
      %v1233 = vpop.permute.xlu0 %1232
      %s1235 = sor.u32 256, 104
      %1236 = vbcast.lane.b32.xlu0 %v1182, %s1235
      %v1237 = vpop.permute.xlu0 %1236
      %s1239 = sor.u32 256, 112
      %1240 = vbcast.lane.b32.xlu0 %v1182, %s1239
      %v1241 = vpop.permute.xlu0 %1240
      %s1243 = sor.u32 256, 120
      %1244 = vbcast.lane.b32.xlu0 %v1182, %s1243
      %v1245 = vpop.permute.xlu0 %1244
      %v1246 = vlaneseq
      %v1247 = vshrl.u32 %v1246, 7
      %v1248 = vsub.s32 2, %v1247
      %v1249 = vrot.slane %v1111, %v1248
      %1251 = vbcast.lane.b32.xlu0 %v1249, 256
      %v1252 = vpop.permute.xlu0 %1251
      %s1254 = sor.u32 256, 8
      %1255 = vbcast.lane.b32.xlu0 %v1249, %s1254
      %v1256 = vpop.permute.xlu0 %1255
      %s1258 = sor.u32 256, 16
      %1259 = vbcast.lane.b32.xlu0 %v1249, %s1258
      %v1260 = vpop.permute.xlu0 %1259
      %s1262 = sor.u32 256, 24
      %1263 = vbcast.lane.b32.xlu0 %v1249, %s1262
      %v1264 = vpop.permute.xlu0 %1263
      %s1266 = sor.u32 256, 32
      %1267 = vbcast.lane.b32.xlu0 %v1249, %s1266
      %v1268 = vpop.permute.xlu0 %1267
      %s1270 = sor.u32 256, 40
      %1271 = vbcast.lane.b32.xlu0 %v1249, %s1270
      %v1272 = vpop.permute.xlu0 %1271
      %s1274 = sor.u32 256, 48
      %1275 = vbcast.lane.b32.xlu0 %v1249, %s1274
      %v1276 = vpop.permute.xlu0 %1275
      %s1278 = sor.u32 256, 56
      %1279 = vbcast.lane.b32.xlu0 %v1249, %s1278
      %v1280 = vpop.permute.xlu0 %1279
      %s1282 = sor.u32 256, 64
      %1283 = vbcast.lane.b32.xlu0 %v1249, %s1282
      %v1284 = vpop.permute.xlu0 %1283
      %s1286 = sor.u32 256, 72
      %1287 = vbcast.lane.b32.xlu0 %v1249, %s1286
      %v1288 = vpop.permute.xlu0 %1287
      %s1290 = sor.u32 256, 80
      %1291 = vbcast.lane.b32.xlu0 %v1249, %s1290
      %v1292 = vpop.permute.xlu0 %1291
      %s1294 = sor.u32 256, 88
      %1295 = vbcast.lane.b32.xlu0 %v1249, %s1294
      %v1296 = vpop.permute.xlu0 %1295
      %s1298 = sor.u32 256, 96
      %1299 = vbcast.lane.b32.xlu0 %v1249, %s1298
      %v1300 = vpop.permute.xlu0 %1299
      %s1302 = sor.u32 256, 104
      %1303 = vbcast.lane.b32.xlu0 %v1249, %s1302
      %v1304 = vpop.permute.xlu0 %1303
      %s1306 = sor.u32 256, 112
      %1307 = vbcast.lane.b32.xlu0 %v1249, %s1306
      %v1308 = vpop.permute.xlu0 %1307
      %s1310 = sor.u32 256, 120
      %1311 = vbcast.lane.b32.xlu0 %v1249, %s1310
      %v1312 = vpop.permute.xlu0 %1311
      %v1313 = vlaneseq
      %v1314 = vshrl.u32 %v1313, 7
      %v1315 = vsub.s32 3, %v1314
      %v1316 = vrot.slane %v1111, %v1315
      %1318 = vbcast.lane.b32.xlu0 %v1316, 256
      %v1319 = vpop.permute.xlu0 %1318
      %s1321 = sor.u32 256, 8
      %1322 = vbcast.lane.b32.xlu0 %v1316, %s1321
      %v1323 = vpop.permute.xlu0 %1322
      %s1325 = sor.u32 256, 16
      %1326 = vbcast.lane.b32.xlu0 %v1316, %s1325
      %v1327 = vpop.permute.xlu0 %1326
      %s1329 = sor.u32 256, 24
      %1330 = vbcast.lane.b32.xlu0 %v1316, %s1329
      %v1331 = vpop.permute.xlu0 %1330
      %s1333 = sor.u32 256, 32
      %1334 = vbcast.lane.b32.xlu0 %v1316, %s1333
      %v1335 = vpop.permute.xlu0 %1334
      %s1337 = sor.u32 256, 40
      %1338 = vbcast.lane.b32.xlu0 %v1316, %s1337
      %v1339 = vpop.permute.xlu0 %1338
      %s1341 = sor.u32 256, 48
      %1342 = vbcast.lane.b32.xlu0 %v1316, %s1341
      %v1343 = vpop.permute.xlu0 %1342
      %s1345 = sor.u32 256, 56
      %1346 = vbcast.lane.b32.xlu0 %v1316, %s1345
      %v1347 = vpop.permute.xlu0 %1346
      %s1349 = sor.u32 256, 64
      %1350 = vbcast.lane.b32.xlu0 %v1316, %s1349
      %v1351 = vpop.permute.xlu0 %1350
      %s1353 = sor.u32 256, 72
      %1354 = vbcast.lane.b32.xlu0 %v1316, %s1353
      %v1355 = vpop.permute.xlu0 %1354
      %s1357 = sor.u32 256, 80
      %1358 = vbcast.lane.b32.xlu0 %v1316, %s1357
      %v1359 = vpop.permute.xlu0 %1358
      %s1361 = sor.u32 256, 88
      %1362 = vbcast.lane.b32.xlu0 %v1316, %s1361
      %v1363 = vpop.permute.xlu0 %1362
      %s1365 = sor.u32 256, 96
      %1366 = vbcast.lane.b32.xlu0 %v1316, %s1365
      %v1367 = vpop.permute.xlu0 %1366
      %s1369 = sor.u32 256, 104
      %1370 = vbcast.lane.b32.xlu0 %v1316, %s1369
      %v1371 = vpop.permute.xlu0 %1370
      %s1373 = sor.u32 256, 112
      %1374 = vbcast.lane.b32.xlu0 %v1316, %s1373
      %v1375 = vpop.permute.xlu0 %1374
      %s1377 = sor.u32 256, 120
      %1378 = vbcast.lane.b32.xlu0 %v1316, %s1377
      %v1379 = vpop.permute.xlu0 %1378
      %v1380 = vlaneseq
      %v1381 = vshrl.u32 %v1380, 7
      %v1382 = vsub.s32 4, %v1381
      %v1383 = vrot.slane %v1111, %v1382
      %1385 = vbcast.lane.b32.xlu0 %v1383, 256
      %v1386 = vpop.permute.xlu0 %1385
      %s1388 = sor.u32 256, 8
      %1389 = vbcast.lane.b32.xlu0 %v1383, %s1388
      %v1390 = vpop.permute.xlu0 %1389
      %s1392 = sor.u32 256, 16
      %1393 = vbcast.lane.b32.xlu0 %v1383, %s1392
      %v1394 = vpop.permute.xlu0 %1393
      %s1396 = sor.u32 256, 24
      %1397 = vbcast.lane.b32.xlu0 %v1383, %s1396
      %v1398 = vpop.permute.xlu0 %1397
      %s1400 = sor.u32 256, 32
      %1401 = vbcast.lane.b32.xlu0 %v1383, %s1400
      %v1402 = vpop.permute.xlu0 %1401
      %s1404 = sor.u32 256, 40
      %1405 = vbcast.lane.b32.xlu0 %v1383, %s1404
      %v1406 = vpop.permute.xlu0 %1405
      %s1408 = sor.u32 256, 48
      %1409 = vbcast.lane.b32.xlu0 %v1383, %s1408
      %v1410 = vpop.permute.xlu0 %1409
      %s1412 = sor.u32 256, 56
      %1413 = vbcast.lane.b32.xlu0 %v1383, %s1412
      %v1414 = vpop.permute.xlu0 %1413
      %s1416 = sor.u32 256, 64
      %1417 = vbcast.lane.b32.xlu0 %v1383, %s1416
      %v1418 = vpop.permute.xlu0 %1417
      %s1420 = sor.u32 256, 72
      %1421 = vbcast.lane.b32.xlu0 %v1383, %s1420
      %v1422 = vpop.permute.xlu0 %1421
      %s1424 = sor.u32 256, 80
      %1425 = vbcast.lane.b32.xlu0 %v1383, %s1424
      %v1426 = vpop.permute.xlu0 %1425
      %s1428 = sor.u32 256, 88
      %1429 = vbcast.lane.b32.xlu0 %v1383, %s1428
      %v1430 = vpop.permute.xlu0 %1429
      %s1432 = sor.u32 256, 96
      %1433 = vbcast.lane.b32.xlu0 %v1383, %s1432
      %v1434 = vpop.permute.xlu0 %1433
      %s1436 = sor.u32 256, 104
      %1437 = vbcast.lane.b32.xlu0 %v1383, %s1436
      %v1438 = vpop.permute.xlu0 %1437
      %s1440 = sor.u32 256, 112
      %1441 = vbcast.lane.b32.xlu0 %v1383, %s1440
      %v1442 = vpop.permute.xlu0 %1441
      %s1444 = sor.u32 256, 120
      %1445 = vbcast.lane.b32.xlu0 %v1383, %s1444
      %v1446 = vpop.permute.xlu0 %1445
      %v1447 = vlaneseq
      %v1448 = vshrl.u32 %v1447, 7
      %v1449 = vsub.s32 5, %v1448
      %v1450 = vrot.slane %v1111, %v1449
      %1452 = vbcast.lane.b32.xlu0 %v1450, 256
      %v1453 = vpop.permute.xlu0 %1452
      %s1455 = sor.u32 256, 8
      %1456 = vbcast.lane.b32.xlu0 %v1450, %s1455
      %v1457 = vpop.permute.xlu0 %1456
      %s1459 = sor.u32 256, 16
      %1460 = vbcast.lane.b32.xlu0 %v1450, %s1459
      %v1461 = vpop.permute.xlu0 %1460
      %s1463 = sor.u32 256, 24
      %1464 = vbcast.lane.b32.xlu0 %v1450, %s1463
      %v1465 = vpop.permute.xlu0 %1464
      %s1467 = sor.u32 256, 32
      %1468 = vbcast.lane.b32.xlu0 %v1450, %s1467
      %v1469 = vpop.permute.xlu0 %1468
      %s1471 = sor.u32 256, 40
      %1472 = vbcast.lane.b32.xlu0 %v1450, %s1471
      %v1473 = vpop.permute.xlu0 %1472
      %s1475 = sor.u32 256, 48
      %1476 = vbcast.lane.b32.xlu0 %v1450, %s1475
      %v1477 = vpop.permute.xlu0 %1476
      %s1479 = sor.u32 256, 56
      %1480 = vbcast.lane.b32.xlu0 %v1450, %s1479
      %v1481 = vpop.permute.xlu0 %1480
      %s1483 = sor.u32 256, 64
      %1484 = vbcast.lane.b32.xlu0 %v1450, %s1483
      %v1485 = vpop.permute.xlu0 %1484
      %s1487 = sor.u32 256, 72
      %1488 = vbcast.lane.b32.xlu0 %v1450, %s1487
      %v1489 = vpop.permute.xlu0 %1488
      %s1491 = sor.u32 256, 80
      %1492 = vbcast.lane.b32.xlu0 %v1450, %s1491
      %v1493 = vpop.permute.xlu0 %1492
      %s1495 = sor.u32 256, 88
      %1496 = vbcast.lane.b32.xlu0 %v1450, %s1495
      %v1497 = vpop.permute.xlu0 %1496
      %s1499 = sor.u32 256, 96
      %1500 = vbcast.lane.b32.xlu0 %v1450, %s1499
      %v1501 = vpop.permute.xlu0 %1500
      %s1503 = sor.u32 256, 104
      %1504 = vbcast.lane.b32.xlu0 %v1450, %s1503
      %v1505 = vpop.permute.xlu0 %1504
      %s1507 = sor.u32 256, 112
      %1508 = vbcast.lane.b32.xlu0 %v1450, %s1507
      %v1509 = vpop.permute.xlu0 %1508
      %s1511 = sor.u32 256, 120
      %1512 = vbcast.lane.b32.xlu0 %v1450, %s1511
      %v1513 = vpop.permute.xlu0 %1512
      %v1514 = vlaneseq
      %v1515 = vshrl.u32 %v1514, 7
      %v1516 = vsub.s32 6, %v1515
      %v1517 = vrot.slane %v1111, %v1516
      %1519 = vbcast.lane.b32.xlu0 %v1517, 256
      %v1520 = vpop.permute.xlu0 %1519
      %s1522 = sor.u32 256, 8
      %1523 = vbcast.lane.b32.xlu0 %v1517, %s1522
      %v1524 = vpop.permute.xlu0 %1523
      %s1526 = sor.u32 256, 16
      %1527 = vbcast.lane.b32.xlu0 %v1517, %s1526
      %v1528 = vpop.permute.xlu0 %1527
      %s1530 = sor.u32 256, 24
      %1531 = vbcast.lane.b32.xlu0 %v1517, %s1530
      %v1532 = vpop.permute.xlu0 %1531
      %s1534 = sor.u32 256, 32
      %1535 = vbcast.lane.b32.xlu0 %v1517, %s1534
      %v1536 = vpop.permute.xlu0 %1535
      %s1538 = sor.u32 256, 40
      %1539 = vbcast.lane.b32.xlu0 %v1517, %s1538
      %v1540 = vpop.permute.xlu0 %1539
      %s1542 = sor.u32 256, 48
      %1543 = vbcast.lane.b32.xlu0 %v1517, %s1542
      %v1544 = vpop.permute.xlu0 %1543
      %s1546 = sor.u32 256, 56
      %1547 = vbcast.lane.b32.xlu0 %v1517, %s1546
      %v1548 = vpop.permute.xlu0 %1547
      %s1550 = sor.u32 256, 64
      %1551 = vbcast.lane.b32.xlu0 %v1517, %s1550
      %v1552 = vpop.permute.xlu0 %1551
      %s1554 = sor.u32 256, 72
      %1555 = vbcast.lane.b32.xlu0 %v1517, %s1554
      %v1556 = vpop.permute.xlu0 %1555
      %s1558 = sor.u32 256, 80
      %1559 = vbcast.lane.b32.xlu0 %v1517, %s1558
      %v1560 = vpop.permute.xlu0 %1559
      %s1562 = sor.u32 256, 88
      %1563 = vbcast.lane.b32.xlu0 %v1517, %s1562
      %v1564 = vpop.permute.xlu0 %1563
      %s1566 = sor.u32 256, 96
      %1567 = vbcast.lane.b32.xlu0 %v1517, %s1566
      %v1568 = vpop.permute.xlu0 %1567
      %s1570 = sor.u32 256, 104
      %1571 = vbcast.lane.b32.xlu0 %v1517, %s1570
      %v1572 = vpop.permute.xlu0 %1571
      %s1574 = sor.u32 256, 112
      %1575 = vbcast.lane.b32.xlu0 %v1517, %s1574
      %v1576 = vpop.permute.xlu0 %1575
      %s1578 = sor.u32 256, 120
      %1579 = vbcast.lane.b32.xlu0 %v1517, %s1578
      %v1580 = vpop.permute.xlu0 %1579
      %v1581 = vlaneseq
      %v1582 = vshrl.u32 %v1581, 7
      %v1583 = vsub.s32 7, %v1582
      %v1584 = vrot.slane %v1111, %v1583
      %1586 = vbcast.lane.b32.xlu0 %v1584, 256
      %v1587 = vpop.permute.xlu0 %1586
      %s1589 = sor.u32 256, 8
      %1590 = vbcast.lane.b32.xlu0 %v1584, %s1589
      %v1591 = vpop.permute.xlu0 %1590
      %s1593 = sor.u32 256, 16
      %1594 = vbcast.lane.b32.xlu0 %v1584, %s1593
      %v1595 = vpop.permute.xlu0 %1594
      %s1597 = sor.u32 256, 24
      %1598 = vbcast.lane.b32.xlu0 %v1584, %s1597
      %v1599 = vpop.permute.xlu0 %1598
      %s1601 = sor.u32 256, 32
      %1602 = vbcast.lane.b32.xlu0 %v1584, %s1601
      %v1603 = vpop.permute.xlu0 %1602
      %s1605 = sor.u32 256, 40
      %1606 = vbcast.lane.b32.xlu0 %v1584, %s1605
      %v1607 = vpop.permute.xlu0 %1606
      %s1609 = sor.u32 256, 48
      %1610 = vbcast.lane.b32.xlu0 %v1584, %s1609
      %v1611 = vpop.permute.xlu0 %1610
      %s1613 = sor.u32 256, 56
      %1614 = vbcast.lane.b32.xlu0 %v1584, %s1613
      %v1615 = vpop.permute.xlu0 %1614
      %s1617 = sor.u32 256, 64
      %1618 = vbcast.lane.b32.xlu0 %v1584, %s1617
      %v1619 = vpop.permute.xlu0 %1618
      %s1621 = sor.u32 256, 72
      %1622 = vbcast.lane.b32.xlu0 %v1584, %s1621
      %v1623 = vpop.permute.xlu0 %1622
      %s1625 = sor.u32 256, 80
      %1626 = vbcast.lane.b32.xlu0 %v1584, %s1625
      %v1627 = vpop.permute.xlu0 %1626
      %s1629 = sor.u32 256, 88
      %1630 = vbcast.lane.b32.xlu0 %v1584, %s1629
      %v1631 = vpop.permute.xlu0 %1630
      %s1633 = sor.u32 256, 96
      %1634 = vbcast.lane.b32.xlu0 %v1584, %s1633
      %v1635 = vpop.permute.xlu0 %1634
      %s1637 = sor.u32 256, 104
      %1638 = vbcast.lane.b32.xlu0 %v1584, %s1637
      %v1639 = vpop.permute.xlu0 %1638
      %s1641 = sor.u32 256, 112
      %1642 = vbcast.lane.b32.xlu0 %v1584, %s1641
      %v1643 = vpop.permute.xlu0 %1642
      %s1645 = sor.u32 256, 120
      %1646 = vbcast.lane.b32.xlu0 %v1584, %s1645
      %v1647 = vpop.permute.xlu0 %1646
      %v1648 = vmul.f32 %v1118, 1e+30
      %v1649 = vmul.f32 %v1122, 1e+30
      %v1650 = vmul.f32 %v1126, 1e+30
      %v1651 = vmul.f32 %v1130, 1e+30
      %v1652 = vmul.f32 %v1134, 1e+30
      %v1653 = vmul.f32 %v1138, 1e+30
      %v1654 = vmul.f32 %v1142, 1e+30
      %v1655 = vmul.f32 %v1146, 1e+30
      %v1656 = vmul.f32 %v1150, 1e+30
      %v1657 = vmul.f32 %v1154, 1e+30
      %v1658 = vmul.f32 %v1158, 1e+30
      %v1659 = vmul.f32 %v1162, 1e+30
      %v1660 = vmul.f32 %v1166, 1e+30
      %v1661 = vmul.f32 %v1170, 1e+30
      %v1662 = vmul.f32 %v1174, 1e+30
      %v1663 = vmul.f32 %v1178, 1e+30
      %v1664 = vmul.f32 %v1185, 1e+30
      %v1665 = vmul.f32 %v1189, 1e+30
      %v1666 = vmul.f32 %v1193, 1e+30
      %v1667 = vmul.f32 %v1197, 1e+30
      %v1668 = vmul.f32 %v1201, 1e+30
      %v1669 = vmul.f32 %v1205, 1e+30
      %v1670 = vmul.f32 %v1209, 1e+30
      %v1671 = vmul.f32 %v1213, 1e+30
      %v1672 = vmul.f32 %v1217, 1e+30
      %v1673 = vmul.f32 %v1221, 1e+30
      %v1674 = vmul.f32 %v1225, 1e+30
      %v1675 = vmul.f32 %v1229, 1e+30
      %v1676 = vmul.f32 %v1233, 1e+30
      %v1677 = vmul.f32 %v1237, 1e+30
      %v1678 = vmul.f32 %v1241, 1e+30
      %v1679 = vmul.f32 %v1245, 1e+30
      %v1680 = vmul.f32 %v1252, 1e+30
      %v1681 = vmul.f32 %v1256, 1e+30
      %v1682 = vmul.f32 %v1260, 1e+30
      %v1683 = vmul.f32 %v1264, 1e+30
      %v1684 = vmul.f32 %v1268, 1e+30
      %v1685 = vmul.f32 %v1272, 1e+30
      %v1686 = vmul.f32 %v1276, 1e+30
      %v1687 = vmul.f32 %v1280, 1e+30
      %v1688 = vmul.f32 %v1284, 1e+30
      %v1689 = vmul.f32 %v1288, 1e+30
      %v1690 = vmul.f32 %v1292, 1e+30
      %v1691 = vmul.f32 %v1296, 1e+30
      %v1692 = vmul.f32 %v1300, 1e+30
      %v1693 = vmul.f32 %v1304, 1e+30
      %v1694 = vmul.f32 %v1308, 1e+30
      %v1695 = vmul.f32 %v1312, 1e+30
      %v1696 = vmul.f32 %v1319, 1e+30
      %v1697 = vmul.f32 %v1323, 1e+30
      %v1698 = vmul.f32 %v1327, 1e+30
      %v1699 = vmul.f32 %v1331, 1e+30
      %v1700 = vmul.f32 %v1335, 1e+30
      %v1701 = vmul.f32 %v1339, 1e+30
      %v1702 = vmul.f32 %v1343, 1e+30
      %v1703 = vmul.f32 %v1347, 1e+30
      %v1704 = vmul.f32 %v1351, 1e+30
      %v1705 = vmul.f32 %v1355, 1e+30
      %v1706 = vmul.f32 %v1359, 1e+30
      %v1707 = vmul.f32 %v1363, 1e+30
      %v1708 = vmul.f32 %v1367, 1e+30
      %v1709 = vmul.f32 %v1371, 1e+30
      %v1710 = vmul.f32 %v1375, 1e+30
      %v1711 = vmul.f32 %v1379, 1e+30
      %v1712 = vmul.f32 %v1386, 1e+30
      %v1713 = vmul.f32 %v1390, 1e+30
      %v1714 = vmul.f32 %v1394, 1e+30
      %v1715 = vmul.f32 %v1398, 1e+30
      %v1716 = vmul.f32 %v1402, 1e+30
      %v1717 = vmul.f32 %v1406, 1e+30
      %v1718 = vmul.f32 %v1410, 1e+30
      %v1719 = vmul.f32 %v1414, 1e+30
      %v1720 = vmul.f32 %v1418, 1e+30
      %v1721 = vmul.f32 %v1422, 1e+30
      %v1722 = vmul.f32 %v1426, 1e+30
      %v1723 = vmul.f32 %v1430, 1e+30
      %v1724 = vmul.f32 %v1434, 1e+30
      %v1725 = vmul.f32 %v1438, 1e+30
      %v1726 = vmul.f32 %v1442, 1e+30
      %v1727 = vmul.f32 %v1446, 1e+30
      %v1728 = vmul.f32 %v1453, 1e+30
      %v1729 = vmul.f32 %v1457, 1e+30
      %v1730 = vmul.f32 %v1461, 1e+30
      %v1731 = vmul.f32 %v1465, 1e+30
      %v1732 = vmul.f32 %v1469, 1e+30
      %v1733 = vmul.f32 %v1473, 1e+30
      %v1734 = vmul.f32 %v1477, 1e+30
      %v1735 = vmul.f32 %v1481, 1e+30
      %v1736 = vmul.f32 %v1485, 1e+30
      %v1737 = vmul.f32 %v1489, 1e+30
      %v1738 = vmul.f32 %v1493, 1e+30
      %v1739 = vmul.f32 %v1497, 1e+30
      %v1740 = vmul.f32 %v1501, 1e+30
      %v1741 = vmul.f32 %v1505, 1e+30
      %v1742 = vmul.f32 %v1509, 1e+30
      %v1743 = vmul.f32 %v1513, 1e+30
      %v1744 = vmul.f32 %v1520, 1e+30
      %v1745 = vmul.f32 %v1524, 1e+30
      %v1746 = vmul.f32 %v1528, 1e+30
      %v1747 = vmul.f32 %v1532, 1e+30
      %v1748 = vmul.f32 %v1536, 1e+30
      %v1749 = vmul.f32 %v1540, 1e+30
      %v1750 = vmul.f32 %v1544, 1e+30
      %v1751 = vmul.f32 %v1548, 1e+30
      %v1752 = vmul.f32 %v1552, 1e+30
      %v1753 = vmul.f32 %v1556, 1e+30
      %v1754 = vmul.f32 %v1560, 1e+30
      %v1755 = vmul.f32 %v1564, 1e+30
      %v1756 = vmul.f32 %v1568, 1e+30
      %v1757 = vmul.f32 %v1572, 1e+30
      %v1758 = vmul.f32 %v1576, 1e+30
      %v1759 = vmul.f32 %v1580, 1e+30
      %v1760 = vmul.f32 %v1587, 1e+30
      %v1761 = vmul.f32 %v1591, 1e+30
      %v1762 = vmul.f32 %v1595, 1e+30
      %v1763 = vmul.f32 %v1599, 1e+30
      %v1764 = vmul.f32 %v1603, 1e+30
      %v1765 = vmul.f32 %v1607, 1e+30
      %v1766 = vmul.f32 %v1611, 1e+30
      %v1767 = vmul.f32 %v1615, 1e+30
      %v1768 = vmul.f32 %v1619, 1e+30
      %v1769 = vmul.f32 %v1623, 1e+30
      %v1770 = vmul.f32 %v1627, 1e+30
      %v1771 = vmul.f32 %v1631, 1e+30
      %v1772 = vmul.f32 %v1635, 1e+30
      %v1773 = vmul.f32 %v1639, 1e+30
      %v1774 = vmul.f32 %v1643, 1e+30
      %v1775 = vmul.f32 %v1647, 1e+30
      %v1776 = vld [vmem:[#allocation2 + $0x8] sm:$0xff]
      %v1777 = vadd.f32 %v886, %v1648
      %v1778 = vadd.f32 %v889, %v1649
      %v1779 = vadd.f32 %v894, %v1650
      %v1780 = vadd.f32 %v897, %v1651
      %v1781 = vadd.f32 %v902, %v1652
      %v1782 = vadd.f32 %v905, %v1653
      %v1783 = vadd.f32 %v910, %v1654
      %v1784 = vadd.f32 %v913, %v1655
      %v1785 = vadd.f32 %v918, %v1656
      %v1786 = vadd.f32 %v921, %v1657
      %v1787 = vadd.f32 %v926, %v1658
      %v1788 = vadd.f32 %v929, %v1659
      %v1789 = vadd.f32 %v934, %v1660
      %v1790 = vadd.f32 %v937, %v1661
      %v1791 = vadd.f32 %v942, %v1662
      %v1792 = vadd.f32 %v945, %v1663
      %v1793 = vadd.f32 %v886, %v1664
      %v1794 = vadd.f32 %v889, %v1665
      %v1795 = vadd.f32 %v894, %v1666
      %v1796 = vadd.f32 %v897, %v1667
      %v1797 = vadd.f32 %v902, %v1668
      %v1798 = vadd.f32 %v905, %v1669
      %v1799 = vadd.f32 %v910, %v1670
      %v1800 = vadd.f32 %v913, %v1671
      %v1801 = vadd.f32 %v918, %v1672
      %v1802 = vadd.f32 %v921, %v1673
      %v1803 = vadd.f32 %v926, %v1674
      %v1804 = vadd.f32 %v929, %v1675
      %v1805 = vadd.f32 %v934, %v1676
      %v1806 = vadd.f32 %v937, %v1677
      %v1807 = vadd.f32 %v942, %v1678
      %v1808 = vadd.f32 %v945, %v1679
      %v1809 = vadd.f32 %v886, %v1680
      %v1810 = vadd.f32 %v889, %v1681
      %v1811 = vadd.f32 %v894, %v1682
      %v1812 = vadd.f32 %v897, %v1683
      %v1813 = vadd.f32 %v902, %v1684
      %v1814 = vadd.f32 %v905, %v1685
      %v1815 = vadd.f32 %v910, %v1686
      %v1816 = vadd.f32 %v913, %v1687
      %v1817 = vadd.f32 %v918, %v1688
      %v1818 = vadd.f32 %v921, %v1689
      %v1819 = vadd.f32 %v926, %v1690
      %v1820 = vadd.f32 %v929, %v1691
      %v1821 = vadd.f32 %v934, %v1692
      %v1822 = vadd.f32 %v937, %v1693
      %v1823 = vadd.f32 %v942, %v1694
      %v1824 = vadd.f32 %v945, %v1695
      %v1825 = vadd.f32 %v886, %v1696
      %v1826 = vadd.f32 %v889, %v1697
      %v1827 = vadd.f32 %v894, %v1698
      %v1828 = vadd.f32 %v897, %v1699
      %v1829 = vadd.f32 %v902, %v1700
      %v1830 = vadd.f32 %v905, %v1701
      %v1831 = vadd.f32 %v910, %v1702
      %v1832 = vadd.f32 %v913, %v1703
      %v1833 = vadd.f32 %v918, %v1704
      %v1834 = vadd.f32 %v921, %v1705
      %v1835 = vadd.f32 %v926, %v1706
      %v1836 = vadd.f32 %v929, %v1707
      %v1837 = vadd.f32 %v934, %v1708
      %v1838 = vadd.f32 %v937, %v1709
      %v1839 = vadd.f32 %v942, %v1710
      %v1840 = vadd.f32 %v945, %v1711
      %v1841 = vadd.f32 %v886, %v1712
      %v1842 = vadd.f32 %v889, %v1713
      %v1843 = vadd.f32 %v894, %v1714
      %v1844 = vadd.f32 %v897, %v1715
      %v1845 = vadd.f32 %v902, %v1716
      %v1846 = vadd.f32 %v905, %v1717
      %v1847 = vadd.f32 %v910, %v1718
      %v1848 = vadd.f32 %v913, %v1719
      %v1849 = vadd.f32 %v918, %v1720
      %v1850 = vadd.f32 %v921, %v1721
      %v1851 = vadd.f32 %v926, %v1722
      %v1852 = vadd.f32 %v929, %v1723
      %v1853 = vadd.f32 %v934, %v1724
      %v1854 = vadd.f32 %v937, %v1725
      %v1855 = vadd.f32 %v942, %v1726
      %v1856 = vadd.f32 %v945, %v1727
      %v1857 = vadd.f32 %v886, %v1728
      %v1858 = vadd.f32 %v889, %v1729
      %v1859 = vadd.f32 %v894, %v1730
      %v1860 = vadd.f32 %v897, %v1731
      %v1861 = vadd.f32 %v902, %v1732
      %v1862 = vadd.f32 %v905, %v1733
      %v1863 = vadd.f32 %v910, %v1734
      %v1864 = vadd.f32 %v913, %v1735
      %v1865 = vadd.f32 %v918, %v1736
      %v1866 = vadd.f32 %v921, %v1737
      %v1867 = vadd.f32 %v926, %v1738
      %v1868 = vadd.f32 %v929, %v1739
      %v1869 = vadd.f32 %v934, %v1740
      %v1870 = vadd.f32 %v937, %v1741
      %v1871 = vadd.f32 %v942, %v1742
      %v1872 = vadd.f32 %v945, %v1743
      %v1873 = vadd.f32 %v886, %v1744
      %v1874 = vadd.f32 %v889, %v1745
      %v1875 = vadd.f32 %v894, %v1746
      %v1876 = vadd.f32 %v897, %v1747
      %v1877 = vadd.f32 %v902, %v1748
      %v1878 = vadd.f32 %v905, %v1749
      %v1879 = vadd.f32 %v910, %v1750
      %v1880 = vadd.f32 %v913, %v1751
      %v1881 = vadd.f32 %v918, %v1752
      %v1882 = vadd.f32 %v921, %v1753
      %v1883 = vadd.f32 %v926, %v1754
      %v1884 = vadd.f32 %v929, %v1755
      %v1885 = vadd.f32 %v934, %v1756
      %v1886 = vadd.f32 %v937, %v1757
      %v1887 = vadd.f32 %v942, %v1758
      %v1888 = vadd.f32 %v945, %v1759
      %v1889 = vadd.f32 %v886, %v1760
      %v1890 = vadd.f32 %v889, %v1761
      %v1891 = vadd.f32 %v894, %v1762
      %v1892 = vadd.f32 %v897, %v1763
      %v1893 = vadd.f32 %v902, %v1764
      %v1894 = vadd.f32 %v905, %v1765
      %v1895 = vadd.f32 %v910, %v1766
      %v1896 = vadd.f32 %v913, %v1767
      %v1897 = vadd.f32 %v918, %v1768
      %v1898 = vadd.f32 %v921, %v1769
      %v1899 = vadd.f32 %v926, %v1770
      %v1900 = vadd.f32 %v929, %v1771
      %v1901 = vadd.f32 %v934, %v1772
      %v1902 = vadd.f32 %v937, %v1773
      %v1903 = vadd.f32 %v942, %v1774
      %v1904 = vadd.f32 %v945, %v1775
      %v1905 = vmin.f32 %v1777, %v1778
      %v1906 = vmin.f32 %v1905, %v1779
      %v1907 = vmin.f32 %v1906, %v1780
      %v1908 = vmin.f32 %v1907, %v1781
      %v1909 = vmin.f32 %v1908, %v1782
      %v1910 = vmin.f32 %v1909, %v1783
      %v1911 = vmin.f32 %v1910, %v1784
      %v1912 = vmin.f32 %v1911, %v1785
      %v1913 = vmin.f32 %v1912, %v1786
      %v1914 = vmin.f32 %v1913, %v1787
      %v1915 = vmin.f32 %v1914, %v1788
      %v1916 = vmin.f32 %v1915, %v1789
      %v1917 = vmin.f32 %v1916, %v1790
      %v1918 = vmin.f32 %v1917, %v1791
      %v1919 = vmin.f32 %v1918, %v1792
      %v1920 = vrot.slane %v1919, 4
      %v1921 = vmin.f32 %v1919, %v1920
      %v1922 = vrot.slane %v1921, 2
      %v1923 = vmin.f32 %v1921, %v1922
      %v1924 = vrot.slane %v1923, 1
      %v1925 = vmin.f32 %v1923, %v1924
      %v1926 = vmin.f32 %v1793, %v1794
      %v1927 = vmin.f32 %v1926, %v1795
      %v1928 = vmin.f32 %v1927, %v1796
      %v1929 = vmin.f32 %v1928, %v1797
      %v1930 = vmin.f32 %v1929, %v1798
      %v1931 = vmin.f32 %v1930, %v1799
      %v1932 = vmin.f32 %v1931, %v1800
      %v1933 = vmin.f32 %v1932, %v1801
      %v1934 = vmin.f32 %v1933, %v1802
      %v1935 = vmin.f32 %v1934, %v1803
      %v1936 = vmin.f32 %v1935, %v1804
      %v1937 = vmin.f32 %v1936, %v1805
      %v1938 = vmin.f32 %v1937, %v1806
      %v1939 = vmin.f32 %v1938, %v1807
      %v1940 = vmin.f32 %v1939, %v1808
      %v1941 = vrot.slane %v1940, 4
      %v1942 = vmin.f32 %v1940, %v1941
      %v1943 = vrot.slane %v1942, 2
      %v1944 = vmin.f32 %v1942, %v1943
      %v1945 = vrot.slane %v1944, 1
      %v1946 = vmin.f32 %v1944, %v1945
      %v1947 = vmin.f32 %v1809, %v1810
      %v1948 = vmin.f32 %v1947, %v1811
      %v1949 = vmin.f32 %v1948, %v1812
      %v1950 = vmin.f32 %v1949, %v1813
      %v1951 = vmin.f32 %v1950, %v1814
      %v1952 = vmin.f32 %v1951, %v1815
      %v1953 = vmin.f32 %v1952, %v1816
      %v1954 = vmin.f32 %v1953, %v1817
      %v1955 = vmin.f32 %v1954, %v1818
      %v1956 = vmin.f32 %v1955, %v1819
      %v1957 = vmin.f32 %v1956, %v1820
      %v1958 = vmin.f32 %v1957, %v1821
      %v1959 = vmin.f32 %v1958, %v1822
      %v1960 = vmin.f32 %v1959, %v1823
      %v1961 = vmin.f32 %v1960, %v1824
      %v1962 = vrot.slane %v1961, 4
      %v1963 = vmin.f32 %v1961, %v1962
      %v1964 = vrot.slane %v1963, 2
      %v1965 = vmin.f32 %v1963, %v1964
      %v1966 = vrot.slane %v1965, 1
      %v1967 = vmin.f32 %v1965, %v1966
      %v1968 = vmin.f32 %v1825, %v1826
      %v1969 = vmin.f32 %v1968, %v1827
      %v1970 = vmin.f32 %v1969, %v1828
      %v1971 = vmin.f32 %v1970, %v1829
      %v1972 = vmin.f32 %v1971, %v1830
      %v1973 = vmin.f32 %v1972, %v1831
      %v1974 = vmin.f32 %v1973, %v1832
      %v1975 = vmin.f32 %v1974, %v1833
      %v1976 = vmin.f32 %v1975, %v1834
      %v1977 = vmin.f32 %v1976, %v1835
      %v1978 = vmin.f32 %v1977, %v1836
      %v1979 = vmin.f32 %v1978, %v1837
      %v1980 = vmin.f32 %v1979, %v1838
      %v1981 = vmin.f32 %v1980, %v1839
      %v1982 = vmin.f32 %v1981, %v1840
      %v1983 = vrot.slane %v1982, 4
      %v1984 = vmin.f32 %v1982, %v1983
      %v1985 = vrot.slane %v1984, 2
      %v1986 = vmin.f32 %v1984, %v1985
      %v1987 = vrot.slane %v1986, 1
      %v1988 = vmin.f32 %v1986, %v1987
      %v1989 = vmin.f32 %v1841, %v1842
      %v1990 = vmin.f32 %v1989, %v1843
      %v1991 = vmin.f32 %v1990, %v1844
      %v1992 = vmin.f32 %v1991, %v1845
      %v1993 = vmin.f32 %v1992, %v1846
      %v1994 = vmin.f32 %v1993, %v1847
      %v1995 = vmin.f32 %v1994, %v1848
      %v1996 = vmin.f32 %v1995, %v1849
      %v1997 = vmin.f32 %v1996, %v1850
      %v1998 = vmin.f32 %v1997, %v1851
      %v1999 = vmin.f32 %v1998, %v1852
      %v2000 = vmin.f32 %v1999, %v1853
      %v2001 = vmin.f32 %v2000, %v1854
      %v2002 = vmin.f32 %v2001, %v1855
      %v2003 = vmin.f32 %v2002, %v1856
      %v2004 = vrot.slane %v2003, 4
      %v2005 = vmin.f32 %v2003, %v2004
      %v2006 = vrot.slane %v2005, 2
      %v2007 = vmin.f32 %v2005, %v2006
      %v2008 = vrot.slane %v2007, 1
      %v2009 = vmin.f32 %v2007, %v2008
      %v2010 = vmin.f32 %v1857, %v1858
      %v2011 = vmin.f32 %v2010, %v1859
      %v2012 = vmin.f32 %v2011, %v1860
      %v2013 = vmin.f32 %v2012, %v1861
      %v2014 = vmin.f32 %v2013, %v1862
      %v2015 = vmin.f32 %v2014, %v1863
      %v2016 = vmin.f32 %v2015, %v1864
      %v2017 = vmin.f32 %v2016, %v1865
      %v2018 = vmin.f32 %v2017, %v1866
      %v2019 = vmin.f32 %v2018, %v1867
      %v2020 = vmin.f32 %v2019, %v1868
      %v2021 = vmin.f32 %v2020, %v1869
      %v2022 = vmin.f32 %v2021, %v1870
      %v2023 = vmin.f32 %v2022, %v1871
      %v2024 = vmin.f32 %v2023, %v1872
      %v2025 = vrot.slane %v2024, 4
      %v2026 = vmin.f32 %v2024, %v2025
      %v2027 = vrot.slane %v2026, 2
      %v2028 = vmin.f32 %v2026, %v2027
      %v2029 = vrot.slane %v2028, 1
      %v2030 = vmin.f32 %v2028, %v2029
      %v2031 = vmin.f32 %v1873, %v1874
      %v2032 = vmin.f32 %v2031, %v1875
      %v2033 = vmin.f32 %v2032, %v1876
      %v2034 = vmin.f32 %v2033, %v1877
      %v2035 = vmin.f32 %v2034, %v1878
      %v2036 = vmin.f32 %v2035, %v1879
      %v2037 = vmin.f32 %v2036, %v1880
      %v2038 = vmin.f32 %v2037, %v1881
      %v2039 = vmin.f32 %v2038, %v1882
      %v2040 = vmin.f32 %v2039, %v1883
      %v2041 = vmin.f32 %v2040, %v1884
      %v2042 = vmin.f32 %v2041, %v1885
      %v2043 = vmin.f32 %v2042, %v1886
      %v2044 = vmin.f32 %v2043, %v1887
      %v2045 = vmin.f32 %v2044, %v1888
      %v2046 = vrot.slane %v2045, 4
      %v2047 = vmin.f32 %v2045, %v2046
      %v2048 = vrot.slane %v2047, 2
      %v2049 = vmin.f32 %v2047, %v2048
      %v2050 = vrot.slane %v2049, 1
      %v2051 = vmin.f32 %v2049, %v2050
      %v2052 = vmin.f32 %v1889, %v1890
      %v2053 = vmin.f32 %v2052, %v1891
      %v2054 = vmin.f32 %v2053, %v1892
      %v2055 = vmin.f32 %v2054, %v1893
      %v2056 = vmin.f32 %v2055, %v1894
      %v2057 = vmin.f32 %v2056, %v1895
      %v2058 = vmin.f32 %v2057, %v1896
      %v2059 = vmin.f32 %v2058, %v1897
      %v2060 = vmin.f32 %v2059, %v1898
      %v2061 = vmin.f32 %v2060, %v1899
      %v2062 = vmin.f32 %v2061, %v1900
      %v2063 = vmin.f32 %v2062, %v1901
      %v2064 = vmin.f32 %v2063, %v1902
      %v2065 = vmin.f32 %v2064, %v1903
      %v2066 = vmin.f32 %v2065, %v1904
      %v2067 = vrot.slane %v2066, 4
      %v2068 = vmin.f32 %v2066, %v2067
      %v2069 = vrot.slane %v2068, 2
      %v2070 = vmin.f32 %v2068, %v2069
      %v2071 = vrot.slane %v2070, 1
      %v2072 = vmin.f32 %v2070, %v2071
      %vm2081 = vcmask 1041409
      %v2082 = vsel %vm2081, %v1946, %v1925
      %vm2083 = vcmask 1042434
      %v2084 = vsel %vm2083, %v1967, %v2082
      %vm2085 = vcmask 1043459
      %v2086 = vsel %vm2085, %v1988, %v2084
      %vm2087 = vcmask 1044484
      %v2088 = vsel %vm2087, %v2009, %v2086
      %vm2089 = vcmask 1045509
      %v2090 = vsel %vm2089, %v2030, %v2088
      %vm2091 = vcmask 1046534
      %v2092 = vsel %vm2091, %v2051, %v2090
      %vm2093 = vcmask 1047559
      %v2094 = vsel %vm2093, %v2072, %v2092
      %v2096 = vmin.f32 %v1776, %v2094
      %2097 = vst [vmem:[#allocation2 + $0x8] sm:$0xff] %v2096
      %v2098 = vld [vmem:[#allocation2 + $0x10] sm:$0xff]
      %v2099 = vsub.f32 %v886, %v1648
      %v2100 = vsub.f32 %v889, %v1649
      %v2101 = vsub.f32 %v894, %v1650
      %v2102 = vsub.f32 %v897, %v1651
      %v2103 = vsub.f32 %v902, %v1652
      %v2104 = vsub.f32 %v905, %v1653
      %v2105 = vsub.f32 %v910, %v1654
      %v2106 = vsub.f32 %v913, %v1655
      %v2107 = vsub.f32 %v918, %v1656
      %v2108 = vsub.f32 %v921, %v1657
      %v2109 = vsub.f32 %v926, %v1658
      %v2110 = vsub.f32 %v929, %v1659
      %v2111 = vsub.f32 %v934, %v1660
      %v2112 = vsub.f32 %v937, %v1661
      %v2113 = vsub.f32 %v942, %v1662
      %v2114 = vsub.f32 %v945, %v1663
      %v2115 = vsub.f32 %v886, %v1664
      %v2116 = vsub.f32 %v889, %v1665
      %v2117 = vsub.f32 %v894, %v1666
      %v2118 = vsub.f32 %v897, %v1667
      %v2119 = vsub.f32 %v902, %v1668
      %v2120 = vsub.f32 %v905, %v1669
      %v2121 = vsub.f32 %v910, %v1670
      %v2122 = vsub.f32 %v913, %v1671
      %v2123 = vsub.f32 %v918, %v1672
      %v2124 = vsub.f32 %v921, %v1673
      %v2125 = vsub.f32 %v926, %v1674
      %v2126 = vsub.f32 %v929, %v1675
      %v2127 = vsub.f32 %v934, %v1676
      %v2128 = vsub.f32 %v937, %v1677
      %v2129 = vsub.f32 %v942, %v1678
      %v2130 = vsub.f32 %v945, %v1679
      %v2131 = vsub.f32 %v886, %v1680
      %v2132 = vsub.f32 %v889, %v1681
      %v2133 = vsub.f32 %v894, %v1682
      %v2134 = vsub.f32 %v897, %v1683
      %v2135 = vsub.f32 %v902, %v1684
      %v2136 = vsub.f32 %v905, %v1685
      %v2137 = vsub.f32 %v910, %v1686
      %v2138 = vsub.f32 %v913, %v1687
      %v2139 = vsub.f32 %v918, %v1688
      %v2140 = vsub.f32 %v921, %v1689
      %v2141 = vsub.f32 %v926, %v1690
      %v2142 = vsub.f32 %v929, %v1691
      %v2143 = vsub.f32 %v934, %v1692
      %v2144 = vsub.f32 %v937, %v1693
      %v2145 = vsub.f32 %v942, %v1694
      %v2146 = vsub.f32 %v945, %v1695
      %v2147 = vsub.f32 %v886, %v1696
      %v2148 = vsub.f32 %v889, %v1697
      %v2149 = vsub.f32 %v894, %v1698
      %v2150 = vsub.f32 %v897, %v1699
      %v2151 = vsub.f32 %v902, %v1700
      %v2152 = vsub.f32 %v905, %v1701
      %v2153 = vsub.f32 %v910, %v1702
      %v2154 = vsub.f32 %v913, %v1703
      %v2155 = vsub.f32 %v918, %v1704
      %v2156 = vsub.f32 %v921, %v1705
      %v2157 = vsub.f32 %v926, %v1706
      %v2158 = vsub.f32 %v929, %v1707
      %v2159 = vsub.f32 %v934, %v1708
      %v2160 = vsub.f32 %v937, %v1709
      %v2161 = vsub.f32 %v942, %v1710
      %v2162 = vsub.f32 %v945, %v1711
      %v2163 = vsub.f32 %v886, %v1712
      %v2164 = vsub.f32 %v889, %v1713
      %v2165 = vsub.f32 %v894, %v1714
      %v2166 = vsub.f32 %v897, %v1715
      %v2167 = vsub.f32 %v902, %v1716
      %v2168 = vsub.f32 %v905, %v1717
      %v2169 = vsub.f32 %v910, %v1718
      %v2170 = vsub.f32 %v913, %v1719
      %v2171 = vsub.f32 %v918, %v1720
      %v2172 = vsub.f32 %v921, %v1721
      %v2173 = vsub.f32 %v926, %v1722
      %v2174 = vsub.f32 %v929, %v1723
      %v2175 = vsub.f32 %v934, %v1724
      %v2176 = vsub.f32 %v937, %v1725
      %v2177 = vsub.f32 %v942, %v1726
      %v2178 = vsub.f32 %v945, %v1727
      %v2179 = vsub.f32 %v886, %v1728
      %v2180 = vsub.f32 %v889, %v1729
      %v2181 = vsub.f32 %v894, %v1730
      %v2182 = vsub.f32 %v897, %v1731
      %v2183 = vsub.f32 %v902, %v1732
      %v2184 = vsub.f32 %v905, %v1733
      %v2185 = vsub.f32 %v910, %v1734
      %v2186 = vsub.f32 %v913, %v1735
      %v2187 = vsub.f32 %v918, %v1736
      %v2188 = vsub.f32 %v921, %v1737
      %v2189 = vsub.f32 %v926, %v1738
      %v2190 = vsub.f32 %v929, %v1739
      %v2191 = vsub.f32 %v934, %v1740
      %v2192 = vsub.f32 %v937, %v1741
      %v2193 = vsub.f32 %v942, %v1742
      %v2194 = vsub.f32 %v945, %v1743
      %v2195 = vsub.f32 %v886, %v1744
      %v2196 = vsub.f32 %v889, %v1745
      %v2197 = vsub.f32 %v894, %v1746
      %v2198 = vsub.f32 %v897, %v1747
      %v2199 = vsub.f32 %v902, %v1748
      %v2200 = vsub.f32 %v905, %v1749
      %v2201 = vsub.f32 %v910, %v1750
      %v2202 = vsub.f32 %v913, %v1751
      %v2203 = vsub.f32 %v918, %v1752
      %v2204 = vsub.f32 %v921, %v1753
      %v2205 = vsub.f32 %v926, %v1754
      %v2206 = vsub.f32 %v929, %v1755
      %v2207 = vsub.f32 %v934, %v1756
      %v2208 = vsub.f32 %v937, %v1757
      %v2209 = vsub.f32 %v942, %v1758
      %v2210 = vsub.f32 %v945, %v1759
      %v2211 = vsub.f32 %v886, %v1760
      %v2212 = vsub.f32 %v889, %v1761
      %v2213 = vsub.f32 %v894, %v1762
      %v2214 = vsub.f32 %v897, %v1763
      %v2215 = vsub.f32 %v902, %v1764
      %v2216 = vsub.f32 %v905, %v1765
      %v2217 = vsub.f32 %v910, %v1766
      %v2218 = vsub.f32 %v913, %v1767
      %v2219 = vsub.f32 %v918, %v1768
      %v2220 = vsub.f32 %v921, %v1769
      %v2221 = vsub.f32 %v926, %v1770
      %v2222 = vsub.f32 %v929, %v1771
      %v2223 = vsub.f32 %v934, %v1772
      %v2224 = vsub.f32 %v937, %v1773
      %v2225 = vsub.f32 %v942, %v1774
      %v2226 = vsub.f32 %v945, %v1775
      %v2227 = vmax.f32 %v2099, %v2100
      %v2228 = vmax.f32 %v2227, %v2101
      %v2229 = vmax.f32 %v2228, %v2102
      %v2230 = vmax.f32 %v2229, %v2103
      %v2231 = vmax.f32 %v2230, %v2104
      %v2232 = vmax.f32 %v2231, %v2105
      %v2233 = vmax.f32 %v2232, %v2106
      %v2234 = vmax.f32 %v2233, %v2107
      %v2235 = vmax.f32 %v2234, %v2108
      %v2236 = vmax.f32 %v2235, %v2109
      %v2237 = vmax.f32 %v2236, %v2110
      %v2238 = vmax.f32 %v2237, %v2111
      %v2239 = vmax.f32 %v2238, %v2112
      %v2240 = vmax.f32 %v2239, %v2113
      %v2241 = vmax.f32 %v2240, %v2114
      %v2242 = vrot.slane %v2241, 4
      %v2243 = vmax.f32 %v2241, %v2242
      %v2244 = vrot.slane %v2243, 2
      %v2245 = vmax.f32 %v2243, %v2244
      %v2246 = vrot.slane %v2245, 1
      %v2247 = vmax.f32 %v2245, %v2246
      %v2248 = vmax.f32 %v2115, %v2116
      %v2249 = vmax.f32 %v2248, %v2117
      %v2250 = vmax.f32 %v2249, %v2118
      %v2251 = vmax.f32 %v2250, %v2119
      %v2252 = vmax.f32 %v2251, %v2120
      %v2253 = vmax.f32 %v2252, %v2121
      %v2254 = vmax.f32 %v2253, %v2122
      %v2255 = vmax.f32 %v2254, %v2123
      %v2256 = vmax.f32 %v2255, %v2124
      %v2257 = vmax.f32 %v2256, %v2125
      %v2258 = vmax.f32 %v2257, %v2126
      %v2259 = vmax.f32 %v2258, %v2127
      %v2260 = vmax.f32 %v2259, %v2128
      %v2261 = vmax.f32 %v2260, %v2129
      %v2262 = vmax.f32 %v2261, %v2130
      %v2263 = vrot.slane %v2262, 4
      %v2264 = vmax.f32 %v2262, %v2263
      %v2265 = vrot.slane %v2264, 2
      %v2266 = vmax.f32 %v2264, %v2265
      %v2267 = vrot.slane %v2266, 1
      %v2268 = vmax.f32 %v2266, %v2267
      %v2269 = vmax.f32 %v2131, %v2132
      %v2270 = vmax.f32 %v2269, %v2133
      %v2271 = vmax.f32 %v2270, %v2134
      %v2272 = vmax.f32 %v2271, %v2135
      %v2273 = vmax.f32 %v2272, %v2136
      %v2274 = vmax.f32 %v2273, %v2137
      %v2275 = vmax.f32 %v2274, %v2138
      %v2276 = vmax.f32 %v2275, %v2139
      %v2277 = vmax.f32 %v2276, %v2140
      %v2278 = vmax.f32 %v2277, %v2141
      %v2279 = vmax.f32 %v2278, %v2142
      %v2280 = vmax.f32 %v2279, %v2143
      %v2281 = vmax.f32 %v2280, %v2144
      %v2282 = vmax.f32 %v2281, %v2145
      %v2283 = vmax.f32 %v2282, %v2146
      %v2284 = vrot.slane %v2283, 4
      %v2285 = vmax.f32 %v2283, %v2284
      %v2286 = vrot.slane %v2285, 2
      %v2287 = vmax.f32 %v2285, %v2286
      %v2288 = vrot.slane %v2287, 1
      %v2289 = vmax.f32 %v2287, %v2288
      %v2290 = vmax.f32 %v2147, %v2148
      %v2291 = vmax.f32 %v2290, %v2149
      %v2292 = vmax.f32 %v2291, %v2150
      %v2293 = vmax.f32 %v2292, %v2151
      %v2294 = vmax.f32 %v2293, %v2152
      %v2295 = vmax.f32 %v2294, %v2153
      %v2296 = vmax.f32 %v2295, %v2154
      %v2297 = vmax.f32 %v2296, %v2155
      %v2298 = vmax.f32 %v2297, %v2156
      %v2299 = vmax.f32 %v2298, %v2157
      %v2300 = vmax.f32 %v2299, %v2158
      %v2301 = vmax.f32 %v2300, %v2159
      %v2302 = vmax.f32 %v2301, %v2160
      %v2303 = vmax.f32 %v2302, %v2161
      %v2304 = vmax.f32 %v2303, %v2162
      %v2305 = vrot.slane %v2304, 4
      %v2306 = vmax.f32 %v2304, %v2305
      %v2307 = vrot.slane %v2306, 2
      %v2308 = vmax.f32 %v2306, %v2307
      %v2309 = vrot.slane %v2308, 1
      %v2310 = vmax.f32 %v2308, %v2309
      %v2311 = vmax.f32 %v2163, %v2164
      %v2312 = vmax.f32 %v2311, %v2165
      %v2313 = vmax.f32 %v2312, %v2166
      %v2314 = vmax.f32 %v2313, %v2167
      %v2315 = vmax.f32 %v2314, %v2168
      %v2316 = vmax.f32 %v2315, %v2169
      %v2317 = vmax.f32 %v2316, %v2170
      %v2318 = vmax.f32 %v2317, %v2171
      %v2319 = vmax.f32 %v2318, %v2172
      %v2320 = vmax.f32 %v2319, %v2173
      %v2321 = vmax.f32 %v2320, %v2174
      %v2322 = vmax.f32 %v2321, %v2175
      %v2323 = vmax.f32 %v2322, %v2176
      %v2324 = vmax.f32 %v2323, %v2177
      %v2325 = vmax.f32 %v2324, %v2178
      %v2326 = vrot.slane %v2325, 4
      %v2327 = vmax.f32 %v2325, %v2326
      %v2328 = vrot.slane %v2327, 2
      %v2329 = vmax.f32 %v2327, %v2328
      %v2330 = vrot.slane %v2329, 1
      %v2331 = vmax.f32 %v2329, %v2330
      %v2332 = vmax.f32 %v2179, %v2180
      %v2333 = vmax.f32 %v2332, %v2181
      %v2334 = vmax.f32 %v2333, %v2182
      %v2335 = vmax.f32 %v2334, %v2183
      %v2336 = vmax.f32 %v2335, %v2184
      %v2337 = vmax.f32 %v2336, %v2185
      %v2338 = vmax.f32 %v2337, %v2186
      %v2339 = vmax.f32 %v2338, %v2187
      %v2340 = vmax.f32 %v2339, %v2188
      %v2341 = vmax.f32 %v2340, %v2189
      %v2342 = vmax.f32 %v2341, %v2190
      %v2343 = vmax.f32 %v2342, %v2191
      %v2344 = vmax.f32 %v2343, %v2192
      %v2345 = vmax.f32 %v2344, %v2193
      %v2346 = vmax.f32 %v2345, %v2194
      %v2347 = vrot.slane %v2346, 4
      %v2348 = vmax.f32 %v2346, %v2347
      %v2349 = vrot.slane %v2348, 2
      %v2350 = vmax.f32 %v2348, %v2349
      %v2351 = vrot.slane %v2350, 1
      %v2352 = vmax.f32 %v2350, %v2351
      %v2353 = vmax.f32 %v2195, %v2196
      %v2354 = vmax.f32 %v2353, %v2197
      %v2355 = vmax.f32 %v2354, %v2198
      %v2356 = vmax.f32 %v2355, %v2199
      %v2357 = vmax.f32 %v2356, %v2200
      %v2358 = vmax.f32 %v2357, %v2201
      %v2359 = vmax.f32 %v2358, %v2202
      %v2360 = vmax.f32 %v2359, %v2203
      %v2361 = vmax.f32 %v2360, %v2204
      %v2362 = vmax.f32 %v2361, %v2205
      %v2363 = vmax.f32 %v2362, %v2206
      %v2364 = vmax.f32 %v2363, %v2207
      %v2365 = vmax.f32 %v2364, %v2208
      %v2366 = vmax.f32 %v2365, %v2209
      %v2367 = vmax.f32 %v2366, %v2210
      %v2368 = vrot.slane %v2367, 4
      %v2369 = vmax.f32 %v2367, %v2368
      %v2370 = vrot.slane %v2369, 2
      %v2371 = vmax.f32 %v2369, %v2370
      %v2372 = vrot.slane %v2371, 1
      %v2373 = vmax.f32 %v2371, %v2372
      %v2374 = vmax.f32 %v2211, %v2212
      %v2375 = vmax.f32 %v2374, %v2213
      %v2376 = vmax.f32 %v2375, %v2214
      %v2377 = vmax.f32 %v2376, %v2215
      %v2378 = vmax.f32 %v2377, %v2216
      %v2379 = vmax.f32 %v2378, %v2217
      %v2380 = vmax.f32 %v2379, %v2218
      %v2381 = vmax.f32 %v2380, %v2219
      %v2382 = vmax.f32 %v2381, %v2220
      %v2383 = vmax.f32 %v2382, %v2221
      %v2384 = vmax.f32 %v2383, %v2222
      %v2385 = vmax.f32 %v2384, %v2223
      %v2386 = vmax.f32 %v2385, %v2224
      %v2387 = vmax.f32 %v2386, %v2225
      %v2388 = vmax.f32 %v2387, %v2226
      %v2389 = vrot.slane %v2388, 4
      %v2390 = vmax.f32 %v2388, %v2389
      %v2391 = vrot.slane %v2390, 2
      %v2392 = vmax.f32 %v2390, %v2391
      %v2393 = vrot.slane %v2392, 1
      %v2394 = vmax.f32 %v2392, %v2393
      %v2403 = vsel %vm2081, %v2268, %v2247
      %v2404 = vsel %vm2083, %v2289, %v2403
      %v2405 = vsel %vm2085, %v2310, %v2404
      %v2406 = vsel %vm2087, %v2331, %v2405
      %v2407 = vsel %vm2089, %v2352, %v2406
      %v2408 = vsel %vm2091, %v2373, %v2407
      %v2409 = vsel %vm2093, %v2394, %v2408
      %v2411 = vmax.f32 %v2098, %v2409
      %2412 = vst [vmem:[#allocation2 + $0x10] sm:$0xff] %v2411
      %p2413 = scmp.eq.s32.totalorder %s24, 1
      // Predicated region
      $region57: #{forward.5} parent=51 // pred_check
        %p2414 = pneg %p2413
      $region58: #{forward.5} parent=51 // pred_check_branch
        %2416 = sbr.rel (%p2414) target = $region60
      $region59: #{forward.5} parent=51 // pred_region
        %v2417 = vld [vmem:[%s381] sm:$0xff]
        %vm2418 = vcmp.gt.f32.partialorder %v2417, 0.5
        %v2419 = vld [vmem:[#allocation2] sm:$0xff]
        %2421 = vset.pattern.permute.xlu0 1
        %2422 = vperm.xlu0 %2421, %v2417
        %v2423 = vpop.permute.xlu0 %2422
        %v2425 = vmul.f32 %v2419, %v2423
        %v2426 = vld [vmem:[#allocation2 + $0x18] sm:$0xff]
        %v2427 = vmul.f32 %v2426, %v2423
        %v2428 = vmul.f32 %v2425, %v2425
        %v2429 = vsub.f32 %v2427, %v2428
        %v2430 = vmax.f32 %v2429, 0.0
        %v2431 = vadd.f32 %v2430, 1e-05
        %v2432 = vrsqrt.pop %v2431
        %v2433 = vmul.f32 %v2431, %v2432
        %vm2434 = vcmp.eq.f32.partialorder %v2431, inf
        %v2435 = vsel %vm2434, %v2431, %v2433
        %vm2436 = vcmp.eq.f32.partialorder %v2431, 0.0
        %v2437 = vand.u32 %v2431, 2147483648
        %v2438 = vsel %vm2436, %v2437, %v2435
        %v2439 = vld [vmem:[#allocation2 + $0x8] sm:$0xff]
        %v2440 = vsel %vm2418, 1, 0
        %2441 = vset.pattern.permute.xlu0 0
        %2442 = vperm.xlu0 %2441, %v2440
        %v2443 = vpop.permute.xlu0 %2442
        %vm2444 = vcmp.eq.s32.totalorder %v2443, 1
        %v2445 = vsel %vm2444, %v2439, 0.0
        %v2446 = vld [vmem:[#allocation2 + $0x10] sm:$0xff]
        %v2447 = vsel %vm2444, %v2446, 0.0
        %2449 = vrot.lane.b32.xlu0 %v2445, 32
        %v2450 = vpop.permute.xlu0 %2449
        %2453 = vrot.lane.b32.xlu0 %v2447, 64
        %v2454 = vpop.permute.xlu0 %2453
        %2457 = vrot.lane.b32.xlu0 %v2438, 96
        %v2458 = vpop.permute.xlu0 %2457
        %vm2460 = vcmask 261120
        %v2461 = vsel %vm2460, %v2425, %v2450
        %vm2462 = vcmask 523264
        %v2463 = vsel %vm2462, %v2461, %v2454
        %vm2464 = vcmask 785408
        %v2465 = vsel %vm2464, %v2463, %v2458
        %v2466 = vld [vmem:[%s362] sm:$0xff]
        %2467 = vset.pattern.permute.xlu0 2
        %2468 = vperm.xlu0 %2467, %v2417
        %v2469 = vpop.permute.xlu0 %2468
        %v2471 = vmul.f32 %v2465, %v2469
        %2472 = vset.pattern.permute.xlu0 3
        %2473 = vperm.xlu0 %2472, %v2417
        %v2474 = vpop.permute.xlu0 %2473
        %v2476 = vmul.f32 %v2465, %v2474
        %v2477 = vld [vmem:[%s6] sm:$0xff]
        %v2478 = vld [vmem:[%s6 + $0x8] sm:$0xff]
        %v2479 = vld [vmem:[%s6 + $0x10] sm:$0xff]
        %v2480 = vld [vmem:[%s6 + $0x18] sm:$0xff]
        %v2481 = vld [vmem:[%s6 + $0x20] sm:$0xff]
        %v2482 = vld [vmem:[%s6 + $0x28] sm:$0xff]
        %v2483 = vld [vmem:[%s6 + $0x30] sm:$0xff]
        %v2484 = vld [vmem:[%s6 + $0x38] sm:$0xff]
        %v2485 = vld [vmem:[%s6 + $0x40] sm:$0xff]
        %v2486 = vld [vmem:[%s6 + $0x48] sm:$0xff]
        %v2487 = vld [vmem:[%s6 + $0x50] sm:$0xff]
        %v2488 = vld [vmem:[%s6 + $0x58] sm:$0xff]
        %v2489 = vld [vmem:[%s6 + $0x60] sm:$0xff]
        %v2490 = vld [vmem:[%s6 + $0x68] sm:$0xff]
        %v2491 = vld [vmem:[%s6 + $0x70] sm:$0xff]
        %v2492 = vld [vmem:[%s6 + $0x78] sm:$0xff]
        %v2493 = vld [vmem:[%s6 + $0x80] sm:$0xff]
        %v2494 = vld [vmem:[%s6 + $0x88] sm:$0xff]
        %v2495 = vld [vmem:[%s6 + $0x90] sm:$0xff]
        %v2496 = vld [vmem:[%s6 + $0x98] sm:$0xff]
        %v2497 = vld [vmem:[%s6 + $0xa0] sm:$0xff]
        %v2498 = vld [vmem:[%s6 + $0xa8] sm:$0xff]
        %v2499 = vld [vmem:[%s6 + $0xb0] sm:$0xff]
        %v2500 = vld [vmem:[%s6 + $0xb8] sm:$0xff]
        %v2501 = vld [vmem:[%s6 + $0xc0] sm:$0xff]
        %v2502 = vld [vmem:[%s6 + $0xc8] sm:$0xff]
        %v2503 = vld [vmem:[%s6 + $0xd0] sm:$0xff]
        %v2504 = vld [vmem:[%s6 + $0xd8] sm:$0xff]
        %v2505 = vld [vmem:[%s6 + $0xe0] sm:$0xff]
        %v2506 = vld [vmem:[%s6 + $0xe8] sm:$0xff]
        %v2507 = vld [vmem:[%s6 + $0xf0] sm:$0xff]
        %v2508 = vld [vmem:[%s6 + $0xf8] sm:$0xff]
        %v2509 = vld [vmem:[%s6 + $0x100] sm:$0xff]
        %v2510 = vld [vmem:[%s6 + $0x108] sm:$0xff]
        %v2511 = vld [vmem:[%s6 + $0x110] sm:$0xff]
        %v2512 = vld [vmem:[%s6 + $0x118] sm:$0xff]
        %v2513 = vld [vmem:[%s6 + $0x120] sm:$0xff]
        %v2514 = vld [vmem:[%s6 + $0x128] sm:$0xff]
        %v2515 = vld [vmem:[%s6 + $0x130] sm:$0xff]
        %v2516 = vld [vmem:[%s6 + $0x138] sm:$0xff]
        %v2517 = vld [vmem:[%s6 + $0x140] sm:$0xff]
        %v2518 = vld [vmem:[%s6 + $0x148] sm:$0xff]
        %v2519 = vld [vmem:[%s6 + $0x150] sm:$0xff]
        %v2520 = vld [vmem:[%s6 + $0x158] sm:$0xff]
        %v2521 = vld [vmem:[%s6 + $0x160] sm:$0xff]
        %v2522 = vld [vmem:[%s6 + $0x168] sm:$0xff]
        %v2523 = vld [vmem:[%s6 + $0x170] sm:$0xff]
        %v2524 = vld [vmem:[%s6 + $0x178] sm:$0xff]
        %v2525 = vld [vmem:[%s6 + $0x180] sm:$0xff]
        %v2526 = vld [vmem:[%s6 + $0x188] sm:$0xff]
        %v2527 = vld [vmem:[%s6 + $0x190] sm:$0xff]
        %v2528 = vld [vmem:[%s6 + $0x198] sm:$0xff]
        %v2529 = vld [vmem:[%s6 + $0x1a0] sm:$0xff]
        %v2530 = vld [vmem:[%s6 + $0x1a8] sm:$0xff]
        %v2531 = vld [vmem:[%s6 + $0x1b0] sm:$0xff]
        %v2532 = vld [vmem:[%s6 + $0x1b8] sm:$0xff]
        %v2533 = vld [vmem:[%s6 + $0x1c0] sm:$0xff]
        %v2534 = vld [vmem:[%s6 + $0x1c8] sm:$0xff]
        %v2535 = vld [vmem:[%s6 + $0x1d0] sm:$0xff]
        %v2536 = vld [vmem:[%s6 + $0x1d8] sm:$0xff]
        %v2537 = vld [vmem:[%s6 + $0x1e0] sm:$0xff]
        %v2538 = vld [vmem:[%s6 + $0x1e8] sm:$0xff]
        %v2539 = vld [vmem:[%s6 + $0x1f0] sm:$0xff]
        %v2540 = vld [vmem:[%s6 + $0x1f8] sm:$0xff]
        %v2541 = vld [vmem:[%s7] sm:$0x1]
        %v2543 = vlaneseq
        %v2544 = vshrl.u32 %v2543, 7
        %v2545 = vsub.s32 0, %v2544
        %v2546 = vrot.slane %v2541, %v2545
        %2548 = vmatprep.subr.mxu0 0.0
        %2549 = vmatpush1.msra.mxu0 %v2477
        %2550 = vmatprep.subr.mxu0 0.0
        %2551 = vmatpush1.msra.mxu0 %v2478
        %2552 = vmatprep.subr.mxu0 0.0
        %2553 = vmatpush1.msra.mxu0 %v2479
        %2554 = vmatprep.subr.mxu0 0.0
        %2555 = vmatpush1.msra.mxu0 %v2480
        %2556 = vmatprep.subr.mxu0 0.0
        %2557 = vmatpush1.msra.mxu0 %v2481
        %2558 = vmatprep.subr.mxu0 0.0
        %2559 = vmatpush1.msra.mxu0 %v2482
        %2560 = vmatprep.subr.mxu0 0.0
        %2561 = vmatpush1.msra.mxu0 %v2483
        %2562 = vmatprep.subr.mxu0 0.0
        %2563 = vmatpush1.msra.mxu0 %v2484
        %2564 = vmatprep.subr.mxu0 0.0
        %2565 = vmatpush1.msra.mxu0 %v2485
        %2566 = vmatprep.subr.mxu0 0.0
        %2567 = vmatpush1.msra.mxu0 %v2486
        %2568 = vmatprep.subr.mxu0 0.0
        %2569 = vmatpush1.msra.mxu0 %v2487
        %2570 = vmatprep.subr.mxu0 0.0
        %2571 = vmatpush1.msra.mxu0 %v2488
        %2572 = vmatprep.subr.mxu0 0.0
        %2573 = vmatpush1.msra.mxu0 %v2489
        %2574 = vmatprep.subr.mxu0 0.0
        %2575 = vmatpush1.msra.mxu0 %v2490
        %2576 = vmatprep.subr.mxu0 0.0
        %2577 = vmatpush1.msra.mxu0 %v2491
        %2578 = vmatprep.subr.mxu0 0.0
        %2579 = vmatpush1.msra.mxu0 %v2492
        %2580 = vmatprep.subr.mxu0 0.0
        %2581 = vmatpush1.msra.mxu0 %v2493
        %2582 = vmatprep.subr.mxu0 0.0
        %2583 = vmatpush1.msra.mxu0 %v2494
        %2584 = vmatprep.subr.mxu0 0.0
        %2585 = vmatpush1.msra.mxu0 %v2495
        %2586 = vmatprep.subr.mxu0 0.0
        %2587 = vmatpush1.msra.mxu0 %v2496
        %2588 = vmatprep.subr.mxu0 0.0
        %2589 = vmatpush1.msra.mxu0 %v2497
        %2590 = vmatprep.subr.mxu0 0.0
        %2591 = vmatpush1.msra.mxu0 %v2498
        %2592 = vmatprep.subr.mxu0 0.0
        %2593 = vmatpush1.msra.mxu0 %v2499
        %2594 = vmatprep.subr.mxu0 0.0
        %2595 = vmatpush1.msra.mxu0 %v2500
        %2596 = vmatprep.subr.mxu0 0.0
        %2597 = vmatpush1.msra.mxu0 %v2501
        %2598 = vmatprep.subr.mxu0 0.0
        %2599 = vmatpush1.msra.mxu0 %v2502
        %2600 = vmatprep.subr.mxu0 0.0
        %2601 = vmatpush1.msra.mxu0 %v2503
        %2602 = vmatprep.subr.mxu0 0.0
        %2603 = vmatpush1.msra.mxu0 %v2504
        %2604 = vmatprep.subr.mxu0 0.0
        %2605 = vmatpush1.msra.mxu0 %v2505
        %2606 = vmatprep.subr.mxu0 0.0
        %2607 = vmatpush1.msra.mxu0 %v2506
        %2608 = vmatprep.subr.mxu0 0.0
        %2609 = vmatpush1.msra.mxu0 %v2507
        %2610 = vmatprep.subr.mxu0 0.0
        %2611 = vmatpush1.msra.mxu0 %v2508
        %2612 = vmatprep.mubr.f32.mxu0 %v2465
        %2613 = vmatmul.mubr.f32.gmra.mrb[0].mxu0 %v2466
        %v2614 = vpop.f32.mrb[0].mxu0
        %v2615 = vadd.f32 %v2546, %v2614
        %v2616 = vpop.f32.mrb[0].mxu0
        %2617 = vdwg.mxu0
        %2618 = vmatprep.subr.mxu0 0.0
        %2619 = vmatpush1.msra.mxu0 %v2509
        %2620 = vmatprep.subr.mxu0 0.0
        %2621 = vmatpush1.msra.mxu0 %v2510
        %2622 = vmatprep.subr.mxu0 0.0
        %2623 = vmatpush1.msra.mxu0 %v2511
        %2624 = vmatprep.subr.mxu0 0.0
        %2625 = vmatpush1.msra.mxu0 %v2512
        %2626 = vmatprep.subr.mxu0 0.0
        %2627 = vmatpush1.msra.mxu0 %v2513
        %2628 = vmatprep.subr.mxu0 0.0
        %2629 = vmatpush1.msra.mxu0 %v2514
        %2630 = vmatprep.subr.mxu0 0.0
        %2631 = vmatpush1.msra.mxu0 %v2515
        %2632 = vmatprep.subr.mxu0 0.0
        %2633 = vmatpush1.msra.mxu0 %v2516
        %2634 = vmatprep.subr.mxu0 0.0
        %2635 = vmatpush1.msra.mxu0 %v2517
        %2636 = vmatprep.subr.mxu0 0.0
        %2637 = vmatpush1.msra.mxu0 %v2518
        %2638 = vmatprep.subr.mxu0 0.0
        %2639 = vmatpush1.msra.mxu0 %v2519
        %2640 = vmatprep.subr.mxu0 0.0
        %2641 = vmatpush1.msra.mxu0 %v2520
        %2642 = vmatprep.subr.mxu0 0.0
        %2643 = vmatpush1.msra.mxu0 %v2521
        %2644 = vmatprep.subr.mxu0 0.0
        %2645 = vmatpush1.msra.mxu0 %v2522
        %2646 = vmatprep.subr.mxu0 0.0
        %2647 = vmatpush1.msra.mxu0 %v2523
        %2648 = vmatprep.subr.mxu0 0.0
        %2649 = vmatpush1.msra.mxu0 %v2524
        %2650 = vmatprep.subr.mxu0 0.0
        %2651 = vmatpush1.msra.mxu0 %v2525
        %2652 = vmatprep.subr.mxu0 0.0
        %2653 = vmatpush1.msra.mxu0 %v2526
        %2654 = vmatprep.subr.mxu0 0.0
        %2655 = vmatpush1.msra.mxu0 %v2527
        %2656 = vmatprep.subr.mxu0 0.0
        %2657 = vmatpush1.msra.mxu0 %v2528
        %2658 = vmatprep.subr.mxu0 0.0
        %2659 = vmatpush1.msra.mxu0 %v2529
        %2660 = vmatprep.subr.mxu0 0.0
        %2661 = vmatpush1.msra.mxu0 %v2530
        %2662 = vmatprep.subr.mxu0 0.0
        %2663 = vmatpush1.msra.mxu0 %v2531
        %2664 = vmatprep.subr.mxu0 0.0
        %2665 = vmatpush1.msra.mxu0 %v2532
        %2666 = vmatprep.subr.mxu0 0.0
        %2667 = vmatpush1.msra.mxu0 %v2533
        %2668 = vmatprep.subr.mxu0 0.0
        %2669 = vmatpush1.msra.mxu0 %v2534
        %2670 = vmatprep.subr.mxu0 0.0
        %2671 = vmatpush1.msra.mxu0 %v2535
        %2672 = vmatprep.subr.mxu0 0.0
        %2673 = vmatpush1.msra.mxu0 %v2536
        %2674 = vmatprep.subr.mxu0 0.0
        %2675 = vmatpush1.msra.mxu0 %v2537
        %2676 = vmatprep.subr.mxu0 0.0
        %2677 = vmatpush1.msra.mxu0 %v2538
        %2678 = vmatprep.subr.mxu0 0.0
        %2679 = vmatpush1.msra.mxu0 %v2539
        %2680 = vmatprep.subr.mxu0 0.0
        %2681 = vmatpush1.msra.mxu0 %v2540
        %2682 = vmatprep.mubr.f32.mxu0 %v2476
        %2683 = vmatmul.mubr.f32.gmra.mrb[0].mxu0 %v2471
        %v2684 = vpop.f32.mrb[0].mxu0
        %v2685 = vadd.f32 %v2615, %v2684
        %v2686 = vpop.f32.mrb[0].mxu0
        %2687 = vdwg.mxu0
        %2688 = vst [vmem:[%s385] sm:$0xff] %v2685
      $region60: #{forward.5} parent=51 // pred_fallthru
        _
      %p2689 = scmp.lt.s32.totalorder %s23, 1
      %s2690 = scalar_select %p2689, %s23, 1
      %s2691 = smul.addr %s2690, 8
      %s2692 = scalar_lea.vmem %s8, %s2691
      // Predicated region
      $region61: #{forward.5} parent=51 // pred_check
        %p2693 = pneg %p239
      $region62: #{forward.5} parent=51 // pred_check_branch
        %2695 = sbr.rel (%p2693) target = $region64
      $region63: #{forward.5} parent=51 // pred_region
        _
      $region64: #{forward.5} parent=51 // pred_fallthru
        _
    $region52: #{forward.5} parent=5 // pred_fallthru
      _
    %p2696 = scmp.le.s32.totalorder 2, %s14
    // Predicated region
    $region65: #{forward.5} parent=5 // pred_check
      %p2697 = pneg %p2696
    $region66: #{forward.5} parent=5 // pred_check_branch
      %2699 = sbr.rel (%p2697) target = $region68
    $region67: #{forward.5} parent=5 // pred_region
      %s2700 = ssub.s32 %s14, 2
      // Predicated region
      $region69: #{forward.5} parent=67 // pred_check
        %p2701 = pneg %p245
      $region70: #{forward.5} parent=67 // pred_check_branch
        %2703 = sbr.rel (%p2701) target = $region72
      $region71: #{forward.5} parent=67 // pred_region
        %p2704 = scmp.lt.s32.totalorder %s25, 1
        %s2705 = scalar_select %p2704, %s25, 1
        %s2706 = smul.addr %s2705, 8
        %s2707 = scalar_lea.vmem %s8, %s2706
      $region72: #{forward.5} parent=67 // pred_fallthru
        _
    $region68: #{forward.5} parent=5 // pred_fallthru
      _
  $region6: #{forward.5} parent=0 // loop_footer
    %s18 = sadd.s32 1, %s14
  $region7: #{forward.5} parent=0 // loop_footer_branch
    %13 = sbr.rel target = $region3
  $region8: #{forward.5} parent=0 // loop_exit
    _

</llo_original>
